<compile_context>
chip_gen: v7x
topology: tpu7x:2x2x1
jax: 0.10.0
libtpu: 0.0.40
codegen_flags: <defaults>
</compile_context>

<pallas_src>
import math

import jax
import jax.numpy as jnp
from jax.experimental import pallas as pl
from jax.experimental.pallas import tpu as pltpu

CONP = 3      # self.conp
HIDE = 16     # self.hide

# (in_ch, out_ch, has_shortcut_conv) for the 6 ResidualBlocks (all 1x1 convs)
LAYER_DEFS = (
    (2 * CONP, 16, True),
    (16, 16, False),
    (16, 32, True),
    (32, 64, True),
    (64, 64, False),
    (64, 64, False),
)

SLAB_LANES = 256   # widest fused layer output: block-diag(64) x [conv1|sc] = 256


# ---------------------------------------------------------------- helpers
def _round_up(x, m):
    return ((x + m - 1) // m) * m


def _block_diag(wa, wb):
    ra, ca = wa.shape
    rb, cb = wb.shape
    top = jnp.concatenate([wa, jnp.zeros((ra, cb), wa.dtype)], axis=1)
    bot = jnp.concatenate([jnp.zeros((rb, ca), wb.dtype), wb], axis=1)
    return jnp.concatenate([top, bot], axis=0)


def _fuse_nets(lam_params, l_params):
    """Block-diag fusion of cal_lam & cal_L, plus conv1+shortcut column fusion."""
    ws, bs, layers = [], [], []
    idx = 0
    for li, (cin, cout_o, has_sc) in enumerate(LAYER_DEFS):
        n = 6 if has_sc else 4
        pa = lam_params[idx:idx + n]
        pb = l_params[idx:idx + n]
        idx += n
        first = (li == 0)
        # first layer: both nets share the same 6-channel input -> concat cols;
        # later layers: inputs are already [lam | L] stacked -> block diagonal.
        fuse_in = ((lambda wa, wb: jnp.concatenate([wa, wb], axis=1))
                   if first else _block_diag)
        w1 = fuse_in(pa[0], pb[0])                                   # conv1 W
        b1 = jnp.concatenate([pa[1], pb[1]], axis=1)                 # conv1 b
        w2 = _block_diag(pa[2], pb[2])                               # conv2 W
        b2 = jnp.concatenate([pa[3], pb[3]], axis=1)                 # conv2 b
        if has_sc:
            wsc = fuse_in(pa[4], pb[4])
            bsc = jnp.concatenate([pa[5], pb[5]], axis=1)
            w1 = jnp.concatenate([w1, wsc], axis=1)    # [conv1 | shortcut]
            b1 = jnp.concatenate([b1, bsc], axis=1)
        ws += [w1, w2]
        bs += [b1, b2]
        layers.append((cin if first else 2 * cin, 2 * cout_o, has_sc))
    ws.append(_block_diag(lam_params[idx], l_params[idx]))           # final W
    bs.append(jnp.concatenate([lam_params[idx + 1], l_params[idx + 1]], axis=1))
    return ws, bs, tuple(layers)


def _pack_weights(ws):
    """Pack all weight matrices into one (R, 256) bf16 slab, 16-row aligned."""
    meta, off = [], 0
    for w in ws:
        cin, cout = w.shape
        meta.append((off, cin, cout))
        off += _round_up(cin, 16)          # bf16 sublane-tile aligned offsets
    slab = jnp.zeros((off, SLAB_LANES), jnp.bfloat16)
    for (o, cin, cout), w in zip(meta, ws):
        slab = slab.at[o:o + cin, :cout].set(w.astype(jnp.bfloat16))
    return slab, tuple(meta)


def _pack_biases(bs):
    """Pack all bias rows into one (NB, 256) f32 slab, one row per bias."""
    rows = _round_up(len(bs), 8)
    slab = jnp.zeros((rows, SLAB_LANES), jnp.float32)
    meta = []
    for i, b in enumerate(bs):
        cout = b.shape[1]
        meta.append((i, cout))
        slab = slab.at[i, :cout].set(b[0].astype(jnp.float32))
    return slab, tuple(meta)


# ---------------------------------------------------------------- kernel body
def _run_fused_net(x, w_ref, b_ref, wmeta, bmeta, layers):
    """Fused residual 1x1-conv stack == per-row MLP.  x: (M, 6) f32 -> (M, 64) f32.

    Matmuls are bf16 on the MXU with f32 accumulation; bias/residual/relu in f32.
    """
    wi, bi = [0], [0]

    def get_w():
        off, cin, cout = wmeta[wi[0]]
        wi[0] += 1
        return w_ref[off:off + cin, :cout]            # bf16

    def get_b():
        row, cout = bmeta[bi[0]]
        bi[0] += 1
        return b_ref[row:row + 1, :cout]              # f32

    for _, cout, has_sc in layers:
        xb = x.astype(jnp.bfloat16)
        w1, b1 = get_w(), get_b()
        h = jnp.dot(xb, w1, preferred_element_type=jnp.float32) + b1
        if has_sc:
            # w1 was column-fused [conv1 | shortcut]; split the single result.
            sc = h[:, cout:2 * cout]
            h = h[:, :cout]
        else:
            sc = x
        h = jnp.maximum(h, 0.0)
        w2, b2 = get_w(), get_b()
        h = jnp.dot(h.astype(jnp.bfloat16), w2,
                    preferred_element_type=jnp.float32) + b2
        x = jnp.maximum(h + sc, 0.0)
    wf, bf = get_w(), get_b()
    return jnp.dot(x.astype(jnp.bfloat16), wf,
                   preferred_element_type=jnp.float32) + bf


def _side(lam_mod, l_out, d):
    """inv(L^T L) @ L^T @ diag(lam_mod) @ L @ d  per row.

    lam_mod: (M, 16)   l_out: (M, 48) as [L[:,:,0] | L[:,:,1] | L[:,:,2]]
    d: (M, 3).  Returns list of three (M, 1) columns.
    """
    ls = [l_out[:, HIDE * j:HIDE * (j + 1)] for j in range(CONP)]   # each (M, 16)

    # A = L^T L (3x3 symmetric per row), entries as (M, 1) columns.
    a00 = jnp.sum(ls[0] * ls[0], axis=-1, keepdims=True)
    a01 = jnp.sum(ls[0] * ls[1], axis=-1, keepdims=True)
    a02 = jnp.sum(ls[0] * ls[2], axis=-1, keepdims=True)
    a11 = jnp.sum(ls[1] * ls[1], axis=-1, keepdims=True)
    a12 = jnp.sum(ls[1] * ls[2], axis=-1, keepdims=True)
    a22 = jnp.sum(ls[2] * ls[2], axis=-1, keepdims=True)

    # Closed-form 3x3 inverse (adjugate) == torch.inverse for 3x3.
    # NOTE: like torch.inverse, no regularization -- near-singular L^T L
    # would produce inf/nan (kept for semantic fidelity).
    det = (a00 * (a11 * a22 - a12 * a12)
           - a01 * (a01 * a22 - a12 * a02)
           + a02 * (a01 * a12 - a11 * a02))
    inv_det = 1.0 / det
    i00 = (a11 * a22 - a12 * a12) * inv_det
    i01 = (a02 * a12 - a01 * a22) * inv_det
    i02 = (a01 * a12 - a02 * a11) * inv_det
    i11 = (a00 * a22 - a02 * a02) * inv_det
    i12 = (a02 * a01 - a00 * a12) * inv_det
    i22 = (a00 * a11 - a01 * a01) * inv_det
    inv = ((i00, i01, i02), (i01, i11, i12), (i02, i12, i22))

    # v = L @ d ; w = diag(lam_mod) @ v ; y = L^T @ w
    v = ls[0] * d[:, 0:1] + ls[1] * d[:, 1:2] + ls[2] * d[:, 2:3]
    w = lam_mod * v
    y = [jnp.sum(ls[i] * w, axis=-1, keepdims=True) for i in range(CONP)]
    return [inv[i][0] * y[0] + inv[i][1] * y[1] + inv[i][2] * y[2]
            for i in range(CONP)]


def _make_kernel(dx, wmeta, bmeta, layers):
    scale = -1.0 / (2.0 * dx)

    def kernel(io_ref, w_ref, b_ref, out_ref):
        t = out_ref.shape[0]
        # io rows 0:t  = left stencil  [ul | um]
        # io rows t:2t = right stencil [um | ur]
        x = io_ref[...]                                   # (2t, 6) f32
        d = x[:, CONP:2 * CONP] - x[:, 0:CONP]            # um-ul / ur-um

        net = _run_fused_net(x, w_ref, b_ref, wmeta, bmeta, layers)   # (2t, 64)
        lam = net[:, :HIDE] / 10.0                        # cal_lam / 10
        l_out = net[:, HIDE:HIDE + HIDE * CONP]           # cal_L (48)

        # left rows (0:t): lam + |lam|, right rows (t:2t): lam - |lam|
        row = jax.lax.broadcasted_iota(jnp.int32, (2 * t, 1), 0)
        sign = jnp.where(row < t, 1.0, -1.0).astype(jnp.float32)
        lam_mod = lam + sign * jnp.abs(lam)

        cols = _side(lam_mod, l_out, d)                   # 3 x (2t, 1)
        out_ref[...] = jnp.concatenate(
            [(c[:t] + c[t:]) * scale for c in cols], axis=-1)         # (t, 3)

    return kernel


# ---------------------------------------------------------------- wrappers
def make_cal_du(dx, lam_params, l_params, tile=1024):
    """Build cal_du(z) for rows-major state z of shape (B, G, 3)."""
    lam_params = list(lam_params)
    l_params = list(l_params)

    # Reorder cal_L final (weight, bias) columns so column block [16*j:16*(j+1)]
    # equals L[:, :, j] of the PyTorch reshape(..., hide, conp)
    # (original channel index = conp*h + j).
    perm = jnp.array([CONP * h + j for j in range(CONP) for h in range(HIDE)],
                     dtype=jnp.int32)
    l_params[-2] = l_params[-2][:, perm]
    l_params[-1] = l_params[-1][:, perm]

    fused_ws, fused_bs, layers = _fuse_nets(lam_params, l_params)
    w_slab, wmeta = _pack_weights(fused_ws)
    b_slab, bmeta = _pack_biases(fused_bs)
    w_rows = w_slab.shape[0]
    b_rows = b_slab.shape[0]
    kernel = _make_kernel(dx, wmeta, bmeta, layers)

    def _choose_tile(N):
        # Row tile: cap at `tile`, 8-aligned; force >=2 tiles for larger
        # problems so both v7x TensorCores get work (no-op cost on v5e/v6e).
        nt = max(1, -(-_round_up(N, 8) // tile))
        if nt == 1 and N > 256:
            nt = 2
        t = _round_up(-(-N // nt), 8)
        return t, nt

    def cal_du(z):
        # z: (B, G, 3) rows-major state (NOT NCW); returns du of the same shape.
        B, G, _ = z.shape
        N = B * G

        # Replicate-padded stencil (per batch, along the spatial axis).
        ul = jnp.concatenate([z[:, :1], z[:, :-1]], axis=1)
        ur = jnp.concatenate([z[:, 1:], z[:, -1:]], axis=1)
        left = jnp.concatenate([ul, z], axis=-1).reshape(N, 2 * CONP)   # [ul|um]
        right = jnp.concatenate([z, ur], axis=-1).reshape(N, 2 * CONP)  # [um|ur]

        t, nt = _choose_tile(N)
        n_pad = nt * t
        if n_pad != N:
            pad = ((0, n_pad - N), (0, 0))
            left = jnp.pad(left, pad, mode="edge")    # padded rows are benign,
            right = jnp.pad(right, pad, mode="edge")  # sliced off afterwards
        # Single stacked input: per tile, t left rows followed by t right rows.
        io = jnp.concatenate(
            [left.reshape(nt, t, 2 * CONP), right.reshape(nt, t, 2 * CONP)],
            axis=1).reshape(2 * n_pad, 2 * CONP)

        du = pl.pallas_call(
            kernel,
            out_shape=jax.ShapeDtypeStruct((n_pad, CONP), jnp.float32),
            grid=(nt,),
            in_specs=[
                pl.BlockSpec((2 * t, 2 * CONP), lambda i: (i, 0)),
                pl.BlockSpec((w_rows, SLAB_LANES), lambda i: (0, 0)),  # resident
                pl.BlockSpec((b_rows, SLAB_LANES), lambda i: (0, 0)),  # resident
            ],
            out_specs=pl.BlockSpec((t, CONP), lambda i: (i, 0)),
            compiler_params=pltpu.CompilerParams(
                dimension_semantics=("parallel",),
                vmem_limit_bytes=48 * 1024 * 1024),
        )(io, w_slab, b_slab)

        return du[:N].reshape(B, G, CONP)

    return cal_du


def odenet_forward(z0_ncw, t1_t0, eps, cal_du):
    """Euler integration.  z0_ncw: (B, 3, G) NCW like PyTorch."""
    n_steps = int(round(t1_t0 / eps))
    h = t1_t0 / n_steps

    @jax.jit
    def run(z_ncw):
        z = jnp.transpose(z_ncw, (0, 2, 1))      # rows-major (B, G, 3), once
        for _ in range(n_steps):
            z = z + h * cal_du(z)
        return jnp.transpose(z, (0, 2, 1))       # back to NCW, once

    return run(z0_ncw)


# ---------------------------------------------------------------- params init
def _uniform(key, shape, bound):
    return jax.random.uniform(key, shape, jnp.float32, -bound, bound)


def init_net_params(key, out_ch):
    """Deterministic Conv1d-style init; weights stored as (in, out), bias (1, out)."""
    params = []
    for cin, cout, has_sc in LAYER_DEFS:
        key, k1, k2, k3, k4, k5, k6 = jax.random.split(key, 7)
        b_in = 1.0 / math.sqrt(cin)
        b_mid = 1.0 / math.sqrt(cout)
        params.append(_uniform(k1, (cin, cout), b_in))
        params.append(_uniform(k2, (1, cout), b_in))
        params.append(_uniform(k3, (cout, cout), b_mid))
        params.append(_uniform(k4, (1, cout), b_mid))
        if has_sc:
            params.append(_uniform(k5, (cin, cout), b_in))
            params.append(_uniform(k6, (1, cout), b_in))
    key, kf1, kf2 = jax.random.split(key, 3)
    b_f = 1.0 / math.sqrt(64)
    params.append(_uniform(kf1, (64, out_ch), b_f))
    params.append(_uniform(kf2, (1, out_ch), b_f))
    return params


if __name__ == "__main__":
    # Small shapes consistent with the module: conp=3 channels, batch=2, grid=16.
    B, G = 2, 16
    dx = 1.0 / G          # module uses dx = lx / grid_size; scaled to small grid
    eps = 0.1
    t1_t0 = 0.4           # -> 4 Euler steps

    key = jax.random.PRNGKey(0)
    k_lam, k_l, k_z = jax.random.split(key, 3)

    lam_params = init_net_params(k_lam, HIDE)            # cal_lam: 64 -> 16
    l_params = init_net_params(k_l, HIDE * CONP)         # cal_L:   64 -> 48

    cal_du = make_cal_du(dx, lam_params, l_params)

    z0 = jax.random.normal(k_z, (B, CONP, G), jnp.float32)   # NCW, like PyTorch
    z1 = odenet_forward(z0, t1_t0, eps, cal_du)
    z1 = jax.block_until_ready(z1)

    assert z1.shape == (B, CONP, G)
    assert bool(jnp.all(jnp.isfinite(z1)))
    print("KERNEL_OK")
</pallas_src>

<mosaic_0001>
module attributes {stable_mosaic.version = 11 : i64} {
  func.func @kernel(%arg0: i32, %arg1: memref<64x6xf32, #tpu.memory_space<vmem>>, %arg2: memref<1040x256xbf16, #tpu.memory_space<vmem>>, %arg3: memref<16x256xf32, #tpu.memory_space<vmem>>, %arg4: memref<32x3xf32, #tpu.memory_space<vmem>>) attributes {dimension_semantics = [#tpu.dimension_semantics<parallel>], iteration_bounds = array<i64: 1>, scalar_prefetch = 0 : i64, scratch_operands = 0 : i64, tpu.core_type = #tpu.core_type<tc>, window_params = [{transform_indices = @transform_0, window_bounds = array<i64: 64, 6>}, {pipeline_mode = #tpu.pipeline_mode<synchronous>, transform_indices = @transform_1, window_bounds = array<i64: 1040, 256>}, {pipeline_mode = #tpu.pipeline_mode<synchronous>, transform_indices = @transform_2, window_bounds = array<i64: 16, 256>}, {transform_indices = @transform_3, window_bounds = array<i64: 32, 3>}]} {
    %c0 = arith.constant 0 : index
    %c0_0 = arith.constant 0 : index
    %0 = vector.load %arg1[%c0, %c0_0] : memref<64x6xf32, #tpu.memory_space<vmem>>, vector<64x6xf32>
    %1 = vector.extract_strided_slice %0 {offsets = [0, 3], sizes = [64, 3], strides = [1, 1]} : vector<64x6xf32> to vector<64x3xf32>
    %2 = vector.extract_strided_slice %0 {offsets = [0, 0], sizes = [64, 3], strides = [1, 1]} : vector<64x6xf32> to vector<64x3xf32>
    %3 = arith.subf %1, %2 : vector<64x3xf32>
    %4 = arith.truncf %0 : vector<64x6xf32> to vector<64x6xbf16>
    %c0_1 = arith.constant 0 : index
    %c0_2 = arith.constant 0 : index
    %5 = vector.load %arg2[%c0_1, %c0_2] : memref<1040x256xbf16, #tpu.memory_space<vmem>>, vector<6x64xbf16>
    %c0_3 = arith.constant 0 : index
    %c0_4 = arith.constant 0 : index
    %6 = vector.load %arg3[%c0_3, %c0_4] : memref<16x256xf32, #tpu.memory_space<vmem>>, vector<1x64xf32>
    %cst = arith.constant dense<0.000000e+00> : vector<64x64xf32>
    %7 = tpu.matmul %4, %5, %cst {dimension_numbers = #tpu.dot_dimension_numbers<[1], [0], [0], [1], [0, 0, 1, 1], [], []>} : vector<64x6xbf16>, vector<6x64xbf16>, vector<64x64xf32> -> vector<64x64xf32>
    %8 = vector.broadcast %6 : vector<1x64xf32> to vector<64x64xf32>
    %9 = arith.addf %7, %8 : vector<64x64xf32>
    %10 = vector.extract_strided_slice %9 {offsets = [0, 32], sizes = [64, 32], strides = [1, 1]} : vector<64x64xf32> to vector<64x32xf32>
    %11 = vector.extract_strided_slice %9 {offsets = [0, 0], sizes = [64, 32], strides = [1, 1]} : vector<64x64xf32> to vector<64x32xf32>
    %cst_5 = arith.constant 0.000000e+00 : f32
    %12 = vector.broadcast %cst_5 : f32 to vector<64x32xf32>
    %13 = arith.maximumf %11, %12 : vector<64x32xf32>
    %c16 = arith.constant 16 : index
    %c0_6 = arith.constant 0 : index
    %14 = vector.load %arg2[%c16, %c0_6] : memref<1040x256xbf16, #tpu.memory_space<vmem>>, vector<32x32xbf16>
    %c1 = arith.constant 1 : index
    %c0_7 = arith.constant 0 : index
    %15 = vector.load %arg3[%c1, %c0_7] : memref<16x256xf32, #tpu.memory_space<vmem>>, vector<1x32xf32>
    %16 = arith.truncf %13 : vector<64x32xf32> to vector<64x32xbf16>
    %cst_8 = arith.constant dense<0.000000e+00> : vector<64x32xf32>
    %17 = tpu.matmul %16, %14, %cst_8 {dimension_numbers = #tpu.dot_dimension_numbers<[1], [0], [0], [1], [0, 0, 1, 1], [], []>} : vector<64x32xbf16>, vector<32x32xbf16>, vector<64x32xf32> -> vector<64x32xf32>
    %18 = vector.broadcast %15 : vector<1x32xf32> to vector<64x32xf32>
    %19 = arith.addf %17, %18 : vector<64x32xf32>
    %20 = arith.addf %19, %10 : vector<64x32xf32>
    %cst_9 = arith.constant 0.000000e+00 : f32
    %21 = vector.broadcast %cst_9 : f32 to vector<64x32xf32>
    %22 = arith.maximumf %20, %21 : vector<64x32xf32>
    %23 = arith.truncf %22 : vector<64x32xf32> to vector<64x32xbf16>
    %c48 = arith.constant 48 : index
    %c0_10 = arith.constant 0 : index
    %24 = vector.load %arg2[%c48, %c0_10] : memref<1040x256xbf16, #tpu.memory_space<vmem>>, vector<32x32xbf16>
    %c2 = arith.constant 2 : index
    %c0_11 = arith.constant 0 : index
    %25 = vector.load %arg3[%c2, %c0_11] : memref<16x256xf32, #tpu.memory_space<vmem>>, vector<1x32xf32>
    %cst_12 = arith.constant dense<0.000000e+00> : vector<64x32xf32>
    %26 = tpu.matmul %23, %24, %cst_12 {dimension_numbers = #tpu.dot_dimension_numbers<[1], [0], [0], [1], [0, 0, 1, 1], [], []>} : vector<64x32xbf16>, vector<32x32xbf16>, vector<64x32xf32> -> vector<64x32xf32>
    %27 = vector.broadcast %25 : vector<1x32xf32> to vector<64x32xf32>
    %28 = arith.addf %26, %27 : vector<64x32xf32>
    %cst_13 = arith.constant 0.000000e+00 : f32
    %29 = vector.broadcast %cst_13 : f32 to vector<64x32xf32>
    %30 = arith.maximumf %28, %29 : vector<64x32xf32>
    %c80 = arith.constant 80 : index
    %c0_14 = arith.constant 0 : index
    %31 = vector.load %arg2[%c80, %c0_14] : memref<1040x256xbf16, #tpu.memory_space<vmem>>, vector<32x32xbf16>
    %c3 = arith.constant 3 : index
    %c0_15 = arith.constant 0 : index
    %32 = vector.load %arg3[%c3, %c0_15] : memref<16x256xf32, #tpu.memory_space<vmem>>, vector<1x32xf32>
    %33 = arith.truncf %30 : vector<64x32xf32> to vector<64x32xbf16>
    %cst_16 = arith.constant dense<0.000000e+00> : vector<64x32xf32>
    %34 = tpu.matmul %33, %31, %cst_16 {dimension_numbers = #tpu.dot_dimension_numbers<[1], [0], [0], [1], [0, 0, 1, 1], [], []>} : vector<64x32xbf16>, vector<32x32xbf16>, vector<64x32xf32> -> vector<64x32xf32>
    %35 = vector.broadcast %32 : vector<1x32xf32> to vector<64x32xf32>
    %36 = arith.addf %34, %35 : vector<64x32xf32>
    %37 = arith.addf %36, %22 : vector<64x32xf32>
    %cst_17 = arith.constant 0.000000e+00 : f32
    %38 = vector.broadcast %cst_17 : f32 to vector<64x32xf32>
    %39 = arith.maximumf %37, %38 : vector<64x32xf32>
    %40 = arith.truncf %39 : vector<64x32xf32> to vector<64x32xbf16>
    %c112 = arith.constant 112 : index
    %c0_18 = arith.constant 0 : index
    %41 = vector.load %arg2[%c112, %c0_18] : memref<1040x256xbf16, #tpu.memory_space<vmem>>, vector<32x128xbf16>
    %c4 = arith.constant 4 : index
    %c0_19 = arith.constant 0 : index
    %42 = vector.load %arg3[%c4, %c0_19] : memref<16x256xf32, #tpu.memory_space<vmem>>, vector<1x128xf32>
    %cst_20 = arith.constant dense<0.000000e+00> : vector<64x128xf32>
    %43 = tpu.matmul %40, %41, %cst_20 {dimension_numbers = #tpu.dot_dimension_numbers<[1], [0], [0], [1], [0, 0, 1, 1], [], []>} : vector<64x32xbf16>, vector<32x128xbf16>, vector<64x128xf32> -> vector<64x128xf32>
    %44 = vector.broadcast %42 : vector<1x128xf32> to vector<64x128xf32>
    %45 = arith.addf %43, %44 : vector<64x128xf32>
    %46 = vector.extract_strided_slice %45 {offsets = [0, 64], sizes = [64, 64], strides = [1, 1]} : vector<64x128xf32> to vector<64x64xf32>
    %47 = vector.extract_strided_slice %45 {offsets = [0, 0], sizes = [64, 64], strides = [1, 1]} : vector<64x128xf32> to vector<64x64xf32>
    %cst_21 = arith.constant 0.000000e+00 : f32
    %48 = vector.broadcast %cst_21 : f32 to vector<64x64xf32>
    %49 = arith.maximumf %47, %48 : vector<64x64xf32>
    %c144 = arith.constant 144 : index
    %c0_22 = arith.constant 0 : index
    %50 = vector.load %arg2[%c144, %c0_22] : memref<1040x256xbf16, #tpu.memory_space<vmem>>, vector<64x64xbf16>
    %c5 = arith.constant 5 : index
    %c0_23 = arith.constant 0 : index
    %51 = vector.load %arg3[%c5, %c0_23] : memref<16x256xf32, #tpu.memory_space<vmem>>, vector<1x64xf32>
    %52 = arith.truncf %49 : vector<64x64xf32> to vector<64x64xbf16>
    %cst_24 = arith.constant dense<0.000000e+00> : vector<64x64xf32>
    %53 = tpu.matmul %52, %50, %cst_24 {dimension_numbers = #tpu.dot_dimension_numbers<[1], [0], [0], [1], [0, 0, 1, 1], [], []>} : vector<64x64xbf16>, vector<64x64xbf16>, vector<64x64xf32> -> vector<64x64xf32>
    %54 = vector.broadcast %51 : vector<1x64xf32> to vector<64x64xf32>
    %55 = arith.addf %53, %54 : vector<64x64xf32>
    %56 = arith.addf %55, %46 : vector<64x64xf32>
    %cst_25 = arith.constant 0.000000e+00 : f32
    %57 = vector.broadcast %cst_25 : f32 to vector<64x64xf32>
    %58 = arith.maximumf %56, %57 : vector<64x64xf32>
    %59 = arith.truncf %58 : vector<64x64xf32> to vector<64x64xbf16>
    %c208 = arith.constant 208 : index
    %c0_26 = arith.constant 0 : index
    %60 = vector.load %arg2[%c208, %c0_26] : memref<1040x256xbf16, #tpu.memory_space<vmem>>, vector<64x256xbf16>
    %c6 = arith.constant 6 : index
    %c0_27 = arith.constant 0 : index
    %61 = vector.load %arg3[%c6, %c0_27] : memref<16x256xf32, #tpu.memory_space<vmem>>, vector<1x256xf32>
    %cst_28 = arith.constant dense<0.000000e+00> : vector<64x256xf32>
    %62 = tpu.matmul %59, %60, %cst_28 {dimension_numbers = #tpu.dot_dimension_numbers<[1], [0], [0], [1], [0, 0, 1, 1], [], []>} : vector<64x64xbf16>, vector<64x256xbf16>, vector<64x256xf32> -> vector<64x256xf32>
    %63 = vector.broadcast %61 : vector<1x256xf32> to vector<64x256xf32>
    %64 = arith.addf %62, %63 : vector<64x256xf32>
    %65 = vector.extract_strided_slice %64 {offsets = [0, 128], sizes = [64, 128], strides = [1, 1]} : vector<64x256xf32> to vector<64x128xf32>
    %66 = vector.extract_strided_slice %64 {offsets = [0, 0], sizes = [64, 128], strides = [1, 1]} : vector<64x256xf32> to vector<64x128xf32>
    %cst_29 = arith.constant 0.000000e+00 : f32
    %67 = vector.broadcast %cst_29 : f32 to vector<64x128xf32>
    %68 = arith.maximumf %66, %67 : vector<64x128xf32>
    %c272 = arith.constant 272 : index
    %c0_30 = arith.constant 0 : index
    %69 = vector.load %arg2[%c272, %c0_30] : memref<1040x256xbf16, #tpu.memory_space<vmem>>, vector<128x128xbf16>
    %c7 = arith.constant 7 : index
    %c0_31 = arith.constant 0 : index
    %70 = vector.load %arg3[%c7, %c0_31] : memref<16x256xf32, #tpu.memory_space<vmem>>, vector<1x128xf32>
    %71 = arith.truncf %68 : vector<64x128xf32> to vector<64x128xbf16>
    %cst_32 = arith.constant dense<0.000000e+00> : vector<64x128xf32>
    %72 = tpu.matmul %71, %69, %cst_32 {dimension_numbers = #tpu.dot_dimension_numbers<[1], [0], [0], [1], [0, 0, 1, 1], [], []>} : vector<64x128xbf16>, vector<128x128xbf16>, vector<64x128xf32> -> vector<64x128xf32>
    %73 = vector.broadcast %70 : vector<1x128xf32> to vector<64x128xf32>
    %74 = arith.addf %72, %73 : vector<64x128xf32>
    %75 = arith.addf %74, %65 : vector<64x128xf32>
    %cst_33 = arith.constant 0.000000e+00 : f32
    %76 = vector.broadcast %cst_33 : f32 to vector<64x128xf32>
    %77 = arith.maximumf %75, %76 : vector<64x128xf32>
    %78 = arith.truncf %77 : vector<64x128xf32> to vector<64x128xbf16>
    %c400 = arith.constant 400 : index
    %c0_34 = arith.constant 0 : index
    %79 = vector.load %arg2[%c400, %c0_34] : memref<1040x256xbf16, #tpu.memory_space<vmem>>, vector<128x128xbf16>
    %c8 = arith.constant 8 : index
    %c0_35 = arith.constant 0 : index
    %80 = vector.load %arg3[%c8, %c0_35] : memref<16x256xf32, #tpu.memory_space<vmem>>, vector<1x128xf32>
    %cst_36 = arith.constant dense<0.000000e+00> : vector<64x128xf32>
    %81 = tpu.matmul %78, %79, %cst_36 {dimension_numbers = #tpu.dot_dimension_numbers<[1], [0], [0], [1], [0, 0, 1, 1], [], []>} : vector<64x128xbf16>, vector<128x128xbf16>, vector<64x128xf32> -> vector<64x128xf32>
    %82 = vector.broadcast %80 : vector<1x128xf32> to vector<64x128xf32>
    %83 = arith.addf %81, %82 : vector<64x128xf32>
    %cst_37 = arith.constant 0.000000e+00 : f32
    %84 = vector.broadcast %cst_37 : f32 to vector<64x128xf32>
    %85 = arith.maximumf %83, %84 : vector<64x128xf32>
    %c528 = arith.constant 528 : index
    %c0_38 = arith.constant 0 : index
    %86 = vector.load %arg2[%c528, %c0_38] : memref<1040x256xbf16, #tpu.memory_space<vmem>>, vector<128x128xbf16>
    %c9 = arith.constant 9 : index
    %c0_39 = arith.constant 0 : index
    %87 = vector.load %arg3[%c9, %c0_39] : memref<16x256xf32, #tpu.memory_space<vmem>>, vector<1x128xf32>
    %88 = arith.truncf %85 : vector<64x128xf32> to vector<64x128xbf16>
    %cst_40 = arith.constant dense<0.000000e+00> : vector<64x128xf32>
    %89 = tpu.matmul %88, %86, %cst_40 {dimension_numbers = #tpu.dot_dimension_numbers<[1], [0], [0], [1], [0, 0, 1, 1], [], []>} : vector<64x128xbf16>, vector<128x128xbf16>, vector<64x128xf32> -> vector<64x128xf32>
    %90 = vector.broadcast %87 : vector<1x128xf32> to vector<64x128xf32>
    %91 = arith.addf %89, %90 : vector<64x128xf32>
    %92 = arith.addf %91, %77 : vector<64x128xf32>
    %cst_41 = arith.constant 0.000000e+00 : f32
    %93 = vector.broadcast %cst_41 : f32 to vector<64x128xf32>
    %94 = arith.maximumf %92, %93 : vector<64x128xf32>
    %95 = arith.truncf %94 : vector<64x128xf32> to vector<64x128xbf16>
    %c656 = arith.constant 656 : index
    %c0_42 = arith.constant 0 : index
    %96 = vector.load %arg2[%c656, %c0_42] : memref<1040x256xbf16, #tpu.memory_space<vmem>>, vector<128x128xbf16>
    %c10 = arith.constant 10 : index
    %c0_43 = arith.constant 0 : index
    %97 = vector.load %arg3[%c10, %c0_43] : memref<16x256xf32, #tpu.memory_space<vmem>>, vector<1x128xf32>
    %cst_44 = arith.constant dense<0.000000e+00> : vector<64x128xf32>
    %98 = tpu.matmul %95, %96, %cst_44 {dimension_numbers = #tpu.dot_dimension_numbers<[1], [0], [0], [1], [0, 0, 1, 1], [], []>} : vector<64x128xbf16>, vector<128x128xbf16>, vector<64x128xf32> -> vector<64x128xf32>
    %99 = vector.broadcast %97 : vector<1x128xf32> to vector<64x128xf32>
    %100 = arith.addf %98, %99 : vector<64x128xf32>
    %cst_45 = arith.constant 0.000000e+00 : f32
    %101 = vector.broadcast %cst_45 : f32 to vector<64x128xf32>
    %102 = arith.maximumf %100, %101 : vector<64x128xf32>
    %c784 = arith.constant 784 : index
    %c0_46 = arith.constant 0 : index
    %103 = vector.load %arg2[%c784, %c0_46] : memref<1040x256xbf16, #tpu.memory_space<vmem>>, vector<128x128xbf16>
    %c11 = arith.constant 11 : index
    %c0_47 = arith.constant 0 : index
    %104 = vector.load %arg3[%c11, %c0_47] : memref<16x256xf32, #tpu.memory_space<vmem>>, vector<1x128xf32>
    %105 = arith.truncf %102 : vector<64x128xf32> to vector<64x128xbf16>
    %cst_48 = arith.constant dense<0.000000e+00> : vector<64x128xf32>
    %106 = tpu.matmul %105, %103, %cst_48 {dimension_numbers = #tpu.dot_dimension_numbers<[1], [0], [0], [1], [0, 0, 1, 1], [], []>} : vector<64x128xbf16>, vector<128x128xbf16>, vector<64x128xf32> -> vector<64x128xf32>
    %107 = vector.broadcast %104 : vector<1x128xf32> to vector<64x128xf32>
    %108 = arith.addf %106, %107 : vector<64x128xf32>
    %109 = arith.addf %108, %94 : vector<64x128xf32>
    %cst_49 = arith.constant 0.000000e+00 : f32
    %110 = vector.broadcast %cst_49 : f32 to vector<64x128xf32>
    %111 = arith.maximumf %109, %110 : vector<64x128xf32>
    %c912 = arith.constant 912 : index
    %c0_50 = arith.constant 0 : index
    %112 = vector.load %arg2[%c912, %c0_50] : memref<1040x256xbf16, #tpu.memory_space<vmem>>, vector<128x64xbf16>
    %c12 = arith.constant 12 : index
    %c0_51 = arith.constant 0 : index
    %113 = vector.load %arg3[%c12, %c0_51] : memref<16x256xf32, #tpu.memory_space<vmem>>, vector<1x64xf32>
    %114 = arith.truncf %111 : vector<64x128xf32> to vector<64x128xbf16>
    %cst_52 = arith.constant dense<0.000000e+00> : vector<64x64xf32>
    %115 = tpu.matmul %114, %112, %cst_52 {dimension_numbers = #tpu.dot_dimension_numbers<[1], [0], [0], [1], [0, 0, 1, 1], [], []>} : vector<64x128xbf16>, vector<128x64xbf16>, vector<64x64xf32> -> vector<64x64xf32>
    %116 = vector.broadcast %113 : vector<1x64xf32> to vector<64x64xf32>
    %117 = arith.addf %115, %116 : vector<64x64xf32>
    %118 = vector.extract_strided_slice %117 {offsets = [0, 0], sizes = [64, 16], strides = [1, 1]} : vector<64x64xf32> to vector<64x16xf32>
    %cst_53 = arith.constant 1.000000e+01 : f32
    %119 = vector.broadcast %cst_53 : f32 to vector<64x16xf32>
    %120 = arith.divf %118, %119 : vector<64x16xf32>
    %121 = vector.extract_strided_slice %117 {offsets = [0, 16], sizes = [64, 48], strides = [1, 1]} : vector<64x64xf32> to vector<64x48xf32>
    %122 = tpu.iota {dimensions = array<i32: 0>} : vector<64x1xi32>
    %c32_i32 = arith.constant 32 : i32
    %123 = vector.broadcast %c32_i32 : i32 to vector<64x1xi32>
    %124 = arith.cmpi slt, %122, %123 : vector<64x1xi32>
    %cst_54 = arith.constant 1.000000e+00 : f32
    %cst_55 = arith.constant -1.000000e+00 : f32
    %125 = vector.broadcast %cst_54 : f32 to vector<64x1xf32>
    %126 = vector.broadcast %cst_55 : f32 to vector<64x1xf32>
    %127 = arith.select %124, %125, %126 : vector<64x1xi1>, vector<64x1xf32>
    %128 = math.absf %120 : vector<64x16xf32>
    %129 = vector.broadcast %127 : vector<64x1xf32> to vector<64x16xf32>
    %130 = arith.mulf %129, %128 : vector<64x16xf32>
    %131 = arith.addf %120, %130 : vector<64x16xf32>
    %132 = vector.extract_strided_slice %121 {offsets = [0, 0], sizes = [64, 16], strides = [1, 1]} : vector<64x48xf32> to vector<64x16xf32>
    %133 = vector.extract_strided_slice %121 {offsets = [0, 16], sizes = [64, 16], strides = [1, 1]} : vector<64x48xf32> to vector<64x16xf32>
    %134 = vector.extract_strided_slice %121 {offsets = [0, 32], sizes = [64, 16], strides = [1, 1]} : vector<64x48xf32> to vector<64x16xf32>
    %135 = arith.mulf %132, %132 : vector<64x16xf32>
    %cst_56 = arith.constant dense<0.000000e+00> : vector<64xf32>
    %136 = vector.multi_reduction <add>, %135, %cst_56 [1] : vector<64x16xf32> to vector<64xf32>
    %137 = vector.shape_cast %136 : vector<64xf32> to vector<64x1xf32>
    %138 = arith.mulf %132, %133 : vector<64x16xf32>
    %cst_57 = arith.constant dense<0.000000e+00> : vector<64xf32>
    %139 = vector.multi_reduction <add>, %138, %cst_57 [1] : vector<64x16xf32> to vector<64xf32>
    %140 = vector.shape_cast %139 : vector<64xf32> to vector<64x1xf32>
    %141 = arith.mulf %132, %134 : vector<64x16xf32>
    %cst_58 = arith.constant dense<0.000000e+00> : vector<64xf32>
    %142 = vector.multi_reduction <add>, %141, %cst_58 [1] : vector<64x16xf32> to vector<64xf32>
    %143 = vector.shape_cast %142 : vector<64xf32> to vector<64x1xf32>
    %144 = arith.mulf %133, %133 : vector<64x16xf32>
    %cst_59 = arith.constant dense<0.000000e+00> : vector<64xf32>
    %145 = vector.multi_reduction <add>, %144, %cst_59 [1] : vector<64x16xf32> to vector<64xf32>
    %146 = vector.shape_cast %145 : vector<64xf32> to vector<64x1xf32>
    %147 = arith.mulf %133, %134 : vector<64x16xf32>
    %cst_60 = arith.constant dense<0.000000e+00> : vector<64xf32>
    %148 = vector.multi_reduction <add>, %147, %cst_60 [1] : vector<64x16xf32> to vector<64xf32>
    %149 = vector.shape_cast %148 : vector<64xf32> to vector<64x1xf32>
    %150 = arith.mulf %134, %134 : vector<64x16xf32>
    %cst_61 = arith.constant dense<0.000000e+00> : vector<64xf32>
    %151 = vector.multi_reduction <add>, %150, %cst_61 [1] : vector<64x16xf32> to vector<64xf32>
    %152 = vector.shape_cast %151 : vector<64xf32> to vector<64x1xf32>
    %153 = arith.mulf %146, %152 : vector<64x1xf32>
    %154 = arith.mulf %149, %149 : vector<64x1xf32>
    %155 = arith.subf %153, %154 : vector<64x1xf32>
    %156 = arith.mulf %137, %155 : vector<64x1xf32>
    %157 = arith.mulf %140, %152 : vector<64x1xf32>
    %158 = arith.mulf %149, %143 : vector<64x1xf32>
    %159 = arith.subf %157, %158 : vector<64x1xf32>
    %160 = arith.mulf %140, %159 : vector<64x1xf32>
    %161 = arith.subf %156, %160 : vector<64x1xf32>
    %162 = arith.mulf %140, %149 : vector<64x1xf32>
    %163 = arith.mulf %146, %143 : vector<64x1xf32>
    %164 = arith.subf %162, %163 : vector<64x1xf32>
    %165 = arith.mulf %143, %164 : vector<64x1xf32>
    %166 = arith.addf %161, %165 : vector<64x1xf32>
    %cst_62 = arith.constant 1.000000e+00 : f32
    %167 = vector.broadcast %cst_62 : f32 to vector<64x1xf32>
    %168 = arith.divf %167, %166 : vector<64x1xf32>
    %169 = arith.mulf %146, %152 : vector<64x1xf32>
    %170 = arith.mulf %149, %149 : vector<64x1xf32>
    %171 = arith.subf %169, %170 : vector<64x1xf32>
    %172 = arith.mulf %171, %168 : vector<64x1xf32>
    %173 = arith.mulf %143, %149 : vector<64x1xf32>
    %174 = arith.mulf %140, %152 : vector<64x1xf32>
    %175 = arith.subf %173, %174 : vector<64x1xf32>
    %176 = arith.mulf %175, %168 : vector<64x1xf32>
    %177 = arith.mulf %140, %149 : vector<64x1xf32>
    %178 = arith.mulf %143, %146 : vector<64x1xf32>
    %179 = arith.subf %177, %178 : vector<64x1xf32>
    %180 = arith.mulf %179, %168 : vector<64x1xf32>
    %181 = arith.mulf %137, %152 : vector<64x1xf32>
    %182 = arith.mulf %143, %143 : vector<64x1xf32>
    %183 = arith.subf %181, %182 : vector<64x1xf32>
    %184 = arith.mulf %183, %168 : vector<64x1xf32>
    %185 = arith.mulf %143, %140 : vector<64x1xf32>
    %186 = arith.mulf %137, %149 : vector<64x1xf32>
    %187 = arith.subf %185, %186 : vector<64x1xf32>
    %188 = arith.mulf %187, %168 : vector<64x1xf32>
    %189 = arith.mulf %137, %146 : vector<64x1xf32>
    %190 = arith.mulf %140, %140 : vector<64x1xf32>
    %191 = arith.subf %189, %190 : vector<64x1xf32>
    %192 = arith.mulf %191, %168 : vector<64x1xf32>
    %193 = vector.extract_strided_slice %3 {offsets = [0, 0], sizes = [64, 1], strides = [1, 1]} : vector<64x3xf32> to vector<64x1xf32>
    %194 = vector.broadcast %193 : vector<64x1xf32> to vector<64x16xf32>
    %195 = arith.mulf %132, %194 : vector<64x16xf32>
    %196 = vector.extract_strided_slice %3 {offsets = [0, 1], sizes = [64, 1], strides = [1, 1]} : vector<64x3xf32> to vector<64x1xf32>
    %197 = vector.broadcast %196 : vector<64x1xf32> to vector<64x16xf32>
    %198 = arith.mulf %133, %197 : vector<64x16xf32>
    %199 = arith.addf %195, %198 : vector<64x16xf32>
    %200 = vector.extract_strided_slice %3 {offsets = [0, 2], sizes = [64, 1], strides = [1, 1]} : vector<64x3xf32> to vector<64x1xf32>
    %201 = vector.broadcast %200 : vector<64x1xf32> to vector<64x16xf32>
    %202 = arith.mulf %134, %201 : vector<64x16xf32>
    %203 = arith.addf %199, %202 : vector<64x16xf32>
    %204 = arith.mulf %131, %203 : vector<64x16xf32>
    %205 = arith.mulf %132, %204 : vector<64x16xf32>
    %cst_63 = arith.constant dense<0.000000e+00> : vector<64xf32>
    %206 = vector.multi_reduction <add>, %205, %cst_63 [1] : vector<64x16xf32> to vector<64xf32>
    %207 = vector.shape_cast %206 : vector<64xf32> to vector<64x1xf32>
    %208 = arith.mulf %133, %204 : vector<64x16xf32>
    %cst_64 = arith.constant dense<0.000000e+00> : vector<64xf32>
    %209 = vector.multi_reduction <add>, %208, %cst_64 [1] : vector<64x16xf32> to vector<64xf32>
    %210 = vector.shape_cast %209 : vector<64xf32> to vector<64x1xf32>
    %211 = arith.mulf %134, %204 : vector<64x16xf32>
    %cst_65 = arith.constant dense<0.000000e+00> : vector<64xf32>
    %212 = vector.multi_reduction <add>, %211, %cst_65 [1] : vector<64x16xf32> to vector<64xf32>
    %213 = vector.shape_cast %212 : vector<64xf32> to vector<64x1xf32>
    %214 = arith.mulf %172, %207 : vector<64x1xf32>
    %215 = arith.mulf %176, %210 : vector<64x1xf32>
    %216 = arith.addf %214, %215 : vector<64x1xf32>
    %217 = arith.mulf %180, %213 : vector<64x1xf32>
    %218 = arith.addf %216, %217 : vector<64x1xf32>
    %219 = arith.mulf %176, %207 : vector<64x1xf32>
    %220 = arith.mulf %184, %210 : vector<64x1xf32>
    %221 = arith.addf %219, %220 : vector<64x1xf32>
    %222 = arith.mulf %188, %213 : vector<64x1xf32>
    %223 = arith.addf %221, %222 : vector<64x1xf32>
    %224 = arith.mulf %180, %207 : vector<64x1xf32>
    %225 = arith.mulf %188, %210 : vector<64x1xf32>
    %226 = arith.addf %224, %225 : vector<64x1xf32>
    %227 = arith.mulf %192, %213 : vector<64x1xf32>
    %228 = arith.addf %226, %227 : vector<64x1xf32>
    %229 = vector.extract_strided_slice %218 {offsets = [0, 0], sizes = [32, 1], strides = [1, 1]} : vector<64x1xf32> to vector<32x1xf32>
    %230 = vector.extract_strided_slice %218 {offsets = [32, 0], sizes = [32, 1], strides = [1, 1]} : vector<64x1xf32> to vector<32x1xf32>
    %231 = arith.addf %229, %230 : vector<32x1xf32>
    %cst_66 = arith.constant -8.000000e+00 : f32
    %232 = vector.broadcast %cst_66 : f32 to vector<32x1xf32>
    %233 = arith.mulf %231, %232 : vector<32x1xf32>
    %234 = vector.extract_strided_slice %223 {offsets = [0, 0], sizes = [32, 1], strides = [1, 1]} : vector<64x1xf32> to vector<32x1xf32>
    %235 = vector.extract_strided_slice %223 {offsets = [32, 0], sizes = [32, 1], strides = [1, 1]} : vector<64x1xf32> to vector<32x1xf32>
    %236 = arith.addf %234, %235 : vector<32x1xf32>
    %cst_67 = arith.constant -8.000000e+00 : f32
    %237 = vector.broadcast %cst_67 : f32 to vector<32x1xf32>
    %238 = arith.mulf %236, %237 : vector<32x1xf32>
    %239 = vector.extract_strided_slice %228 {offsets = [0, 0], sizes = [32, 1], strides = [1, 1]} : vector<64x1xf32> to vector<32x1xf32>
    %240 = vector.extract_strided_slice %228 {offsets = [32, 0], sizes = [32, 1], strides = [1, 1]} : vector<64x1xf32> to vector<32x1xf32>
    %241 = arith.addf %239, %240 : vector<32x1xf32>
    %cst_68 = arith.constant -8.000000e+00 : f32
    %242 = vector.broadcast %cst_68 : f32 to vector<32x1xf32>
    %243 = arith.mulf %241, %242 : vector<32x1xf32>
    %244 = tpu.concatenate %233, %238, %243 in 1 : vector<32x1xf32>, vector<32x1xf32>, vector<32x1xf32> -> vector<32x3xf32>
    %c0_69 = arith.constant 0 : index
    %c0_70 = arith.constant 0 : index
    %245 = vector.load %arg4[%c0_69, %c0_70] : memref<32x3xf32, #tpu.memory_space<vmem>>, vector<32x3xf32>
    tpu.vector_store %arg4[%c0_69, %c0_70], %244 {strides = array<i32>} : memref<32x3xf32, #tpu.memory_space<vmem>>, vector<32x3xf32>,
    return
  }
  func.func @transform_0(%arg0: i32) -> (i32, i32) {
    %c0_i32 = arith.constant 0 : i32
    %c0_i32_0 = arith.constant 0 : i32
    return %arg0, %c0_i32 : i32, i32
  }
  func.func @transform_1(%arg0: i32) -> (i32, i32) {
    %c0_i32 = arith.constant 0 : i32
    %c0_i32_0 = arith.constant 0 : i32
    %c0_i32_1 = arith.constant 0 : i32
    return %c0_i32, %c0_i32_0 : i32, i32
  }
  func.func @transform_2(%arg0: i32) -> (i32, i32) {
    %c0_i32 = arith.constant 0 : i32
    %c0_i32_0 = arith.constant 0 : i32
    %c0_i32_1 = arith.constant 0 : i32
    return %c0_i32, %c0_i32_0 : i32, i32
  }
  func.func @transform_3(%arg0: i32) -> (i32, i32) {
    %c0_i32 = arith.constant 0 : i32
    %c0_i32_0 = arith.constant 0 : i32
    return %arg0, %c0_i32 : i32, i32
  }
}

</mosaic_0001>

<llo_original>
// kernel: run.4
$region0: #{run.4}
  #allocation0 [shape = 'u32[]', space=smem, size = 0x4, offset = 0x4, fixed_abs, tag = 'smem constant byte address 0x4 - core index']
  #allocation1 [shape = 'u32[144,128]{1,0:T(1,128)}', space=vmem, size = 0x12000, scoped, tag = 'internal scratch']
  %s0 = inlined_call_operand.vmem [shape: f32[64,6], index: 0, kind: input, shape index: {}]
  %s1 = inlined_call_operand.vmem [shape: bf16[1040,256], index: 1, kind: input, shape index: {}]
  %s2 = inlined_call_operand.vmem [shape: f32[16,256], index: 2, kind: input, shape index: {}]
  %s3 = inlined_call_operand.vmem [shape: f32[32,3], index: 3, kind: output, shape index: {}]
  %s4 = sld [smem:[#allocation0]]
  $region22: #{run.4} parent=0
    _
  %s6 = ssub.s32 1, %s4
  %s7 = scalar_select 0, %s6, %s4
  // Predicated region
  $region2: #{run.4} parent=0 // pred_check
    _
  $region3: #{run.4} parent=0 // pred_check_branch
    %9 = sbr.rel (0) target = $region5
  $region4: #{run.4} parent=0 // pred_region
    _
  $region5: #{run.4} parent=0 // pred_fallthru
    _
  // Predicated region
  $region6: #{run.4} parent=0 // pred_check
    _
  $region7: #{run.4} parent=0 // pred_check_branch
    %11 = sbr.rel (0) target = $region9
  $region8: #{run.4} parent=0 // pred_region
    _
  $region9: #{run.4} parent=0 // pred_fallthru
    _
  // Predicated region
  $region10: #{run.4} parent=0 // pred_check
    _
  $region11: #{run.4} parent=0 // pred_check_branch
    %13 = sbr.rel (0) target = $region13
  $region12: #{run.4} parent=0 // pred_region
    _
  $region13: #{run.4} parent=0 // pred_fallthru
    _
  %v15 = vld [vmem:[%s0] sm:$0xff]
  %v16 = vld [vmem:[%s0 + $0x8] sm:$0xff]
  %v17 = vld [vmem:[%s0 + $0x10] sm:$0xff]
  %v18 = vld [vmem:[%s0 + $0x18] sm:$0xff]
  %v19 = vld [vmem:[%s0 + $0x20] sm:$0xff]
  %v20 = vld [vmem:[%s0 + $0x28] sm:$0xff]
  %v21 = vld [vmem:[%s0 + $0x30] sm:$0xff]
  %v22 = vld [vmem:[%s0 + $0x38] sm:$0xff]
  %31 = vrot.lane.b32.xlu0 %v15, 3
  %v32 = vpop.permute.xlu0 %31
  %33 = vrot.lane.b32.xlu0 %v16, 3
  %v34 = vpop.permute.xlu0 %33
  %35 = vrot.lane.b32.xlu0 %v17, 3
  %v36 = vpop.permute.xlu0 %35
  %37 = vrot.lane.b32.xlu0 %v18, 3
  %v38 = vpop.permute.xlu0 %37
  %39 = vrot.lane.b32.xlu0 %v19, 3
  %v40 = vpop.permute.xlu0 %39
  %41 = vrot.lane.b32.xlu0 %v20, 3
  %v42 = vpop.permute.xlu0 %41
  %43 = vrot.lane.b32.xlu0 %v21, 3
  %v44 = vpop.permute.xlu0 %43
  %45 = vrot.lane.b32.xlu0 %v22, 3
  %v46 = vpop.permute.xlu0 %45
  %v55 = vsub.f32 %v15, %v32
  %v56 = vsub.f32 %v16, %v34
  %v57 = vsub.f32 %v17, %v36
  %v58 = vsub.f32 %v18, %v38
  %v59 = vsub.f32 %v19, %v40
  %v60 = vsub.f32 %v20, %v42
  %v61 = vsub.f32 %v21, %v44
  %v62 = vsub.f32 %v22, %v46
  %v63 = vpack.c.bf16 %v16, %v15
  %v64 = vpack.c.bf16 %v18, %v17
  %v65 = vpack.c.bf16 %v20, %v19
  %v66 = vpack.c.bf16 %v22, %v21
  %v67 = vld [vmem:[%s1] sm:$0x7]
  %v68 = vld [vmem:[%s2] ss:$0 sm:$0xff]
  %vm69 = vcmask 48128
  %v71 = vsel %vm69, %v63, 0
  %v74 = vsel %vm69, %v64, 0
  %v77 = vsel %vm69, %v65, 0
  %v80 = vsel %vm69, %v66, 0
  %vm82 = vcmask 1042432
  %v84 = vsel %vm82, %v67, 0
  %86 = vmatprep.subr.bf16.mxu0 0
  %87 = vmatpush1.bf16.msra.mxu0 %v84
  %88 = vmatprep.subr.bf16.mxu0 0
  %89 = vmatpush1.bf16.msra.mxu0 0
  %90 = vmatprep.subr.bf16.mxu0 0
  %91 = vmatpush1.bf16.msra.mxu0 0
  %92 = vmatprep.subr.bf16.mxu0 0
  %93 = vmatpush1.bf16.msra.mxu0 0
  %94 = vmatprep.subr.bf16.mxu0 0
  %95 = vmatpush1.bf16.msra.mxu0 0
  %96 = vmatprep.subr.bf16.mxu0 0
  %97 = vmatpush1.bf16.msra.mxu0 0
  %98 = vmatprep.subr.bf16.mxu0 0
  %99 = vmatpush1.bf16.msra.mxu0 0
  %100 = vmatprep.subr.bf16.mxu0 0
  %101 = vmatpush1.bf16.msra.mxu0 0
  %102 = vmatprep.subr.bf16.mxu0 0
  %103 = vmatpush1.bf16.msra.mxu0 0
  %104 = vmatprep.subr.bf16.mxu0 0
  %105 = vmatpush1.bf16.msra.mxu0 0
  %106 = vmatprep.subr.bf16.mxu0 0
  %107 = vmatpush1.bf16.msra.mxu0 0
  %108 = vmatprep.subr.bf16.mxu0 0
  %109 = vmatpush1.bf16.msra.mxu0 0
  %110 = vmatprep.subr.bf16.mxu0 0
  %111 = vmatpush1.bf16.msra.mxu0 0
  %112 = vmatprep.subr.bf16.mxu0 0
  %113 = vmatpush1.bf16.msra.mxu0 0
  %114 = vmatprep.subr.bf16.mxu0 0
  %115 = vmatpush1.bf16.msra.mxu0 0
  %116 = vmatprep.subr.bf16.mxu0 0
  %117 = vmatpush1.bf16.msra.mxu0 0
  %118 = vmatprep.mubr.bf16.mxu0 0
  %119 = vmatmul.mubr.bf16.gmra.mrb[0].mxu0 %v71
  %v120 = vpop.f32.mrb[0].mxu0
  %v121 = vadd.f32 %v68, %v120
  %v122 = vpop.f32.mrb[0].mxu0
  %v123 = vpop.f32.mrb[0].mxu0
  %v124 = vadd.f32 %v68, %v123
  %v125 = vpop.f32.mrb[0].mxu0
  %126 = vmatprep.mubr.bf16.mxu0 0
  %127 = vmatmul.mubr.bf16.gmra.mrb[0].mxu0 %v74
  %v128 = vpop.f32.mrb[0].mxu0
  %v129 = vadd.f32 %v68, %v128
  %v130 = vpop.f32.mrb[0].mxu0
  %v131 = vpop.f32.mrb[0].mxu0
  %v132 = vadd.f32 %v68, %v131
  %v133 = vpop.f32.mrb[0].mxu0
  %134 = vmatprep.mubr.bf16.mxu0 0
  %135 = vmatmul.mubr.bf16.gmra.mrb[0].mxu0 %v77
  %v136 = vpop.f32.mrb[0].mxu0
  %v137 = vadd.f32 %v68, %v136
  %v138 = vpop.f32.mrb[0].mxu0
  %v139 = vpop.f32.mrb[0].mxu0
  %v140 = vadd.f32 %v68, %v139
  %v141 = vpop.f32.mrb[0].mxu0
  %142 = vmatprep.mubr.bf16.mxu0 0
  %143 = vmatmul.mubr.bf16.gmra.mrb[0].mxu0 %v80
  %v144 = vpop.f32.mrb[0].mxu0
  %v145 = vadd.f32 %v68, %v144
  %v146 = vpop.f32.mrb[0].mxu0
  %v147 = vpop.f32.mrb[0].mxu0
  %v148 = vadd.f32 %v68, %v147
  %v149 = vpop.f32.mrb[0].mxu0
  %150 = vdwg.mxu0
  %v151 = vmax.f32 %v121, 0.0
  %v152 = vmax.f32 %v124, 0.0
  %v153 = vmax.f32 %v129, 0.0
  %v154 = vmax.f32 %v132, 0.0
  %v155 = vmax.f32 %v137, 0.0
  %v156 = vmax.f32 %v140, 0.0
  %v157 = vmax.f32 %v145, 0.0
  %v158 = vmax.f32 %v148, 0.0
  %v159 = vld [vmem:[%s1 + $0x10] sm:$0xf]
  %v160 = vld [vmem:[%s1 + $0x18] sm:$0xf]
  %v161 = vld [vmem:[%s1 + $0x20] sm:$0xf]
  %v162 = vld [vmem:[%s1 + $0x28] sm:$0xf]
  %v163 = vld [vmem:[%s2 + $0x1] ss:$0 sm:$0xff]
  %v164 = vpack.c.bf16 %v152, %v151
  %v165 = vpack.c.bf16 %v154, %v153
  %v166 = vpack.c.bf16 %v156, %v155
  %v167 = vpack.c.bf16 %v158, %v157
  %v172 = vunpack.c.l.b16 %v159
  %v173 = vunpack.c.l.b16 %v160
  %v174 = vunpack.c.l.b16 %v161
  %v175 = vunpack.c.l.b16 %v162
  %v176 = vpack.c.b16 %v173, %v172
  %v177 = vpack.c.b16 %v175, %v174
  %vm180 = vcmask 261120
  %v182 = vsel %vm180, %v164, 0
  %v185 = vsel %vm180, %v165, 0
  %v188 = vsel %vm180, %v166, 0
  %v191 = vsel %vm180, %v167, 0
  %193 = vmatprep.subr.bf16.mxu0 0
  %194 = vmatpush1.bf16.msra.mxu0 %v176
  %195 = vmatprep.subr.bf16.mxu0 0
  %196 = vmatpush1.bf16.msra.mxu0 %v177
  %197 = vmatprep.subr.bf16.mxu0 0
  %198 = vmatpush1.bf16.msra.mxu0 0
  %199 = vmatprep.subr.bf16.mxu0 0
  %200 = vmatpush1.bf16.msra.mxu0 0
  %201 = vmatprep.subr.bf16.mxu0 0
  %202 = vmatpush1.bf16.msra.mxu0 0
  %203 = vmatprep.subr.bf16.mxu0 0
  %204 = vmatpush1.bf16.msra.mxu0 0
  %205 = vmatprep.subr.bf16.mxu0 0
  %206 = vmatpush1.bf16.msra.mxu0 0
  %207 = vmatprep.subr.bf16.mxu0 0
  %208 = vmatpush1.bf16.msra.mxu0 0
  %209 = vmatprep.subr.bf16.mxu0 0
  %210 = vmatpush1.bf16.msra.mxu0 0
  %211 = vmatprep.subr.bf16.mxu0 0
  %212 = vmatpush1.bf16.msra.mxu0 0
  %213 = vmatprep.subr.bf16.mxu0 0
  %214 = vmatpush1.bf16.msra.mxu0 0
  %215 = vmatprep.subr.bf16.mxu0 0
  %216 = vmatpush1.bf16.msra.mxu0 0
  %217 = vmatprep.subr.bf16.mxu0 0
  %218 = vmatpush1.bf16.msra.mxu0 0
  %219 = vmatprep.subr.bf16.mxu0 0
  %220 = vmatpush1.bf16.msra.mxu0 0
  %221 = vmatprep.subr.bf16.mxu0 0
  %222 = vmatpush1.bf16.msra.mxu0 0
  %223 = vmatprep.subr.bf16.mxu0 0
  %224 = vmatpush1.bf16.msra.mxu0 0
  %225 = vmatprep.mubr.bf16.mxu0 0
  %226 = vmatmul.mubr.bf16.gmra.mrb[0].mxu0 %v182
  %v227 = vpop.f32.mrb[0].mxu0
  %v228 = vadd.f32 %v163, %v227
  %v229 = vpop.f32.mrb[0].mxu0
  %v230 = vpop.f32.mrb[0].mxu0
  %v231 = vadd.f32 %v163, %v230
  %v232 = vpop.f32.mrb[0].mxu0
  %233 = vmatprep.mubr.bf16.mxu0 0
  %234 = vmatmul.mubr.bf16.gmra.mrb[0].mxu0 %v185
  %v235 = vpop.f32.mrb[0].mxu0
  %v236 = vadd.f32 %v163, %v235
  %v237 = vpop.f32.mrb[0].mxu0
  %v238 = vpop.f32.mrb[0].mxu0
  %v239 = vadd.f32 %v163, %v238
  %v240 = vpop.f32.mrb[0].mxu0
  %241 = vmatprep.mubr.bf16.mxu0 0
  %242 = vmatmul.mubr.bf16.gmra.mrb[0].mxu0 %v188
  %v243 = vpop.f32.mrb[0].mxu0
  %v244 = vadd.f32 %v163, %v243
  %v245 = vpop.f32.mrb[0].mxu0
  %v246 = vpop.f32.mrb[0].mxu0
  %v247 = vadd.f32 %v163, %v246
  %v248 = vpop.f32.mrb[0].mxu0
  %249 = vmatprep.mubr.bf16.mxu0 0
  %250 = vmatmul.mubr.bf16.gmra.mrb[0].mxu0 %v191
  %v251 = vpop.f32.mrb[0].mxu0
  %v252 = vadd.f32 %v163, %v251
  %v253 = vpop.f32.mrb[0].mxu0
  %v254 = vpop.f32.mrb[0].mxu0
  %v255 = vadd.f32 %v163, %v254
  %v256 = vpop.f32.mrb[0].mxu0
  %257 = vdwg.mxu0
  %266 = vrot.lane.b32.xlu0 %v121, 96
  %v267 = vpop.permute.xlu0 %266
  %268 = vrot.lane.b32.xlu0 %v124, 96
  %v269 = vpop.permute.xlu0 %268
  %270 = vrot.lane.b32.xlu0 %v129, 96
  %v271 = vpop.permute.xlu0 %270
  %272 = vrot.lane.b32.xlu0 %v132, 96
  %v273 = vpop.permute.xlu0 %272
  %274 = vrot.lane.b32.xlu0 %v137, 96
  %v275 = vpop.permute.xlu0 %274
  %276 = vrot.lane.b32.xlu0 %v140, 96
  %v277 = vpop.permute.xlu0 %276
  %278 = vrot.lane.b32.xlu0 %v145, 96
  %v279 = vpop.permute.xlu0 %278
  %280 = vrot.lane.b32.xlu0 %v148, 96
  %v281 = vpop.permute.xlu0 %280
  %v290 = vadd.f32 %v228, %v267
  %v291 = vadd.f32 %v231, %v269
  %v292 = vadd.f32 %v236, %v271
  %v293 = vadd.f32 %v239, %v273
  %v294 = vadd.f32 %v244, %v275
  %v295 = vadd.f32 %v247, %v277
  %v296 = vadd.f32 %v252, %v279
  %v297 = vadd.f32 %v255, %v281
  %v298 = vmax.f32 %v290, 0.0
  %v299 = vmax.f32 %v291, 0.0
  %v300 = vmax.f32 %v292, 0.0
  %v301 = vmax.f32 %v293, 0.0
  %v302 = vmax.f32 %v294, 0.0
  %v303 = vmax.f32 %v295, 0.0
  %v304 = vmax.f32 %v296, 0.0
  %v305 = vmax.f32 %v297, 0.0
  %v306 = vpack.c.bf16 %v299, %v298
  %v307 = vpack.c.bf16 %v301, %v300
  %v308 = vpack.c.bf16 %v303, %v302
  %v309 = vpack.c.bf16 %v305, %v304
  %v310 = vld [vmem:[%s1 + $0x30] sm:$0xf]
  %v311 = vld [vmem:[%s1 + $0x38] sm:$0xf]
  %v312 = vld [vmem:[%s1 + $0x40] sm:$0xf]
  %v313 = vld [vmem:[%s1 + $0x48] sm:$0xf]
  %v314 = vld [vmem:[%s2 + $0x2] ss:$0 sm:$0xff]
  %v319 = vunpack.c.l.b16 %v310
  %v320 = vunpack.c.l.b16 %v311
  %v321 = vunpack.c.l.b16 %v312
  %v322 = vunpack.c.l.b16 %v313
  %v323 = vpack.c.b16 %v320, %v319
  %v324 = vpack.c.b16 %v322, %v321
  %v328 = vsel %vm180, %v306, 0
  %v331 = vsel %vm180, %v307, 0
  %v334 = vsel %vm180, %v308, 0
  %v337 = vsel %vm180, %v309, 0
  %339 = vmatprep.subr.bf16.mxu0 0
  %340 = vmatpush1.bf16.msra.mxu0 %v323
  %341 = vmatprep.subr.bf16.mxu0 0
  %342 = vmatpush1.bf16.msra.mxu0 %v324
  %343 = vmatprep.subr.bf16.mxu0 0
  %344 = vmatpush1.bf16.msra.mxu0 0
  %345 = vmatprep.subr.bf16.mxu0 0
  %346 = vmatpush1.bf16.msra.mxu0 0
  %347 = vmatprep.subr.bf16.mxu0 0
  %348 = vmatpush1.bf16.msra.mxu0 0
  %349 = vmatprep.subr.bf16.mxu0 0
  %350 = vmatpush1.bf16.msra.mxu0 0
  %351 = vmatprep.subr.bf16.mxu0 0
  %352 = vmatpush1.bf16.msra.mxu0 0
  %353 = vmatprep.subr.bf16.mxu0 0
  %354 = vmatpush1.bf16.msra.mxu0 0
  %355 = vmatprep.subr.bf16.mxu0 0
  %356 = vmatpush1.bf16.msra.mxu0 0
  %357 = vmatprep.subr.bf16.mxu0 0
  %358 = vmatpush1.bf16.msra.mxu0 0
  %359 = vmatprep.subr.bf16.mxu0 0
  %360 = vmatpush1.bf16.msra.mxu0 0
  %361 = vmatprep.subr.bf16.mxu0 0
  %362 = vmatpush1.bf16.msra.mxu0 0
  %363 = vmatprep.subr.bf16.mxu0 0
  %364 = vmatpush1.bf16.msra.mxu0 0
  %365 = vmatprep.subr.bf16.mxu0 0
  %366 = vmatpush1.bf16.msra.mxu0 0
  %367 = vmatprep.subr.bf16.mxu0 0
  %368 = vmatpush1.bf16.msra.mxu0 0
  %369 = vmatprep.subr.bf16.mxu0 0
  %370 = vmatpush1.bf16.msra.mxu0 0
  %371 = vmatprep.mubr.bf16.mxu0 0
  %372 = vmatmul.mubr.bf16.gmra.mrb[0].mxu0 %v328
  %v373 = vpop.f32.mrb[0].mxu0
  %v374 = vadd.f32 %v314, %v373
  %v375 = vpop.f32.mrb[0].mxu0
  %v376 = vpop.f32.mrb[0].mxu0
  %v377 = vadd.f32 %v314, %v376
  %v378 = vpop.f32.mrb[0].mxu0
  %379 = vmatprep.mubr.bf16.mxu0 0
  %380 = vmatmul.mubr.bf16.gmra.mrb[0].mxu0 %v331
  %v381 = vpop.f32.mrb[0].mxu0
  %v382 = vadd.f32 %v314, %v381
  %v383 = vpop.f32.mrb[0].mxu0
  %v384 = vpop.f32.mrb[0].mxu0
  %v385 = vadd.f32 %v314, %v384
  %v386 = vpop.f32.mrb[0].mxu0
  %387 = vmatprep.mubr.bf16.mxu0 0
  %388 = vmatmul.mubr.bf16.gmra.mrb[0].mxu0 %v334
  %v389 = vpop.f32.mrb[0].mxu0
  %v390 = vadd.f32 %v314, %v389
  %v391 = vpop.f32.mrb[0].mxu0
  %v392 = vpop.f32.mrb[0].mxu0
  %v393 = vadd.f32 %v314, %v392
  %v394 = vpop.f32.mrb[0].mxu0
  %395 = vmatprep.mubr.bf16.mxu0 0
  %396 = vmatmul.mubr.bf16.gmra.mrb[0].mxu0 %v337
  %v397 = vpop.f32.mrb[0].mxu0
  %v398 = vadd.f32 %v314, %v397
  %v399 = vpop.f32.mrb[0].mxu0
  %v400 = vpop.f32.mrb[0].mxu0
  %v401 = vadd.f32 %v314, %v400
  %v402 = vpop.f32.mrb[0].mxu0
  %403 = vdwg.mxu0
  %v404 = vmax.f32 %v374, 0.0
  %v405 = vmax.f32 %v377, 0.0
  %v406 = vmax.f32 %v382, 0.0
  %v407 = vmax.f32 %v385, 0.0
  %v408 = vmax.f32 %v390, 0.0
  %v409 = vmax.f32 %v393, 0.0
  %v410 = vmax.f32 %v398, 0.0
  %v411 = vmax.f32 %v401, 0.0
  %v412 = vld [vmem:[%s1 + $0x50] sm:$0xf]
  %v413 = vld [vmem:[%s1 + $0x58] sm:$0xf]
  %v414 = vld [vmem:[%s1 + $0x60] sm:$0xf]
  %v415 = vld [vmem:[%s1 + $0x68] sm:$0xf]
  %v416 = vld [vmem:[%s2 + $0x3] ss:$0 sm:$0xff]
  %v417 = vpack.c.bf16 %v405, %v404
  %v418 = vpack.c.bf16 %v407, %v406
  %v419 = vpack.c.bf16 %v409, %v408
  %v420 = vpack.c.bf16 %v411, %v410
  %v425 = vunpack.c.l.b16 %v412
  %v426 = vunpack.c.l.b16 %v413
  %v427 = vunpack.c.l.b16 %v414
  %v428 = vunpack.c.l.b16 %v415
  %v429 = vpack.c.b16 %v426, %v425
  %v430 = vpack.c.b16 %v428, %v427
  %v434 = vsel %vm180, %v417, 0
  %v437 = vsel %vm180, %v418, 0
  %v440 = vsel %vm180, %v419, 0
  %v443 = vsel %vm180, %v420, 0
  %445 = vmatprep.subr.bf16.mxu0 0
  %446 = vmatpush1.bf16.msra.mxu0 %v429
  %447 = vmatprep.subr.bf16.mxu0 0
  %448 = vmatpush1.bf16.msra.mxu0 %v430
  %449 = vmatprep.subr.bf16.mxu0 0
  %450 = vmatpush1.bf16.msra.mxu0 0
  %451 = vmatprep.subr.bf16.mxu0 0
  %452 = vmatpush1.bf16.msra.mxu0 0
  %453 = vmatprep.subr.bf16.mxu0 0
  %454 = vmatpush1.bf16.msra.mxu0 0
  %455 = vmatprep.subr.bf16.mxu0 0
  %456 = vmatpush1.bf16.msra.mxu0 0
  %457 = vmatprep.subr.bf16.mxu0 0
  %458 = vmatpush1.bf16.msra.mxu0 0
  %459 = vmatprep.subr.bf16.mxu0 0
  %460 = vmatpush1.bf16.msra.mxu0 0
  %461 = vmatprep.subr.bf16.mxu0 0
  %462 = vmatpush1.bf16.msra.mxu0 0
  %463 = vmatprep.subr.bf16.mxu0 0
  %464 = vmatpush1.bf16.msra.mxu0 0
  %465 = vmatprep.subr.bf16.mxu0 0
  %466 = vmatpush1.bf16.msra.mxu0 0
  %467 = vmatprep.subr.bf16.mxu0 0
  %468 = vmatpush1.bf16.msra.mxu0 0
  %469 = vmatprep.subr.bf16.mxu0 0
  %470 = vmatpush1.bf16.msra.mxu0 0
  %471 = vmatprep.subr.bf16.mxu0 0
  %472 = vmatpush1.bf16.msra.mxu0 0
  %473 = vmatprep.subr.bf16.mxu0 0
  %474 = vmatpush1.bf16.msra.mxu0 0
  %475 = vmatprep.subr.bf16.mxu0 0
  %476 = vmatpush1.bf16.msra.mxu0 0
  %477 = vmatprep.mubr.bf16.mxu0 0
  %478 = vmatmul.mubr.bf16.gmra.mrb[0].mxu0 %v434
  %v479 = vpop.f32.mrb[0].mxu0
  %v480 = vadd.f32 %v416, %v479
  %v481 = vpop.f32.mrb[0].mxu0
  %v482 = vpop.f32.mrb[0].mxu0
  %v483 = vadd.f32 %v416, %v482
  %v484 = vpop.f32.mrb[0].mxu0
  %485 = vmatprep.mubr.bf16.mxu0 0
  %486 = vmatmul.mubr.bf16.gmra.mrb[0].mxu0 %v437
  %v487 = vpop.f32.mrb[0].mxu0
  %v488 = vadd.f32 %v416, %v487
  %v489 = vpop.f32.mrb[0].mxu0
  %v490 = vpop.f32.mrb[0].mxu0
  %v491 = vadd.f32 %v416, %v490
  %v492 = vpop.f32.mrb[0].mxu0
  %493 = vmatprep.mubr.bf16.mxu0 0
  %494 = vmatmul.mubr.bf16.gmra.mrb[0].mxu0 %v440
  %v495 = vpop.f32.mrb[0].mxu0
  %v496 = vadd.f32 %v416, %v495
  %v497 = vpop.f32.mrb[0].mxu0
  %v498 = vpop.f32.mrb[0].mxu0
  %v499 = vadd.f32 %v416, %v498
  %v500 = vpop.f32.mrb[0].mxu0
  %501 = vmatprep.mubr.bf16.mxu0 0
  %502 = vmatmul.mubr.bf16.gmra.mrb[0].mxu0 %v443
  %v503 = vpop.f32.mrb[0].mxu0
  %v504 = vadd.f32 %v416, %v503
  %v505 = vpop.f32.mrb[0].mxu0
  %v506 = vpop.f32.mrb[0].mxu0
  %v507 = vadd.f32 %v416, %v506
  %v508 = vpop.f32.mrb[0].mxu0
  %509 = vdwg.mxu0
  %v510 = vadd.f32 %v480, %v298
  %v511 = vadd.f32 %v483, %v299
  %v512 = vadd.f32 %v488, %v300
  %v513 = vadd.f32 %v491, %v301
  %v514 = vadd.f32 %v496, %v302
  %v515 = vadd.f32 %v499, %v303
  %v516 = vadd.f32 %v504, %v304
  %v517 = vadd.f32 %v507, %v305
  %v518 = vmax.f32 %v510, 0.0
  %v519 = vmax.f32 %v511, 0.0
  %v520 = vmax.f32 %v512, 0.0
  %v521 = vmax.f32 %v513, 0.0
  %v522 = vmax.f32 %v514, 0.0
  %v523 = vmax.f32 %v515, 0.0
  %v524 = vmax.f32 %v516, 0.0
  %v525 = vmax.f32 %v517, 0.0
  %v526 = vpack.c.bf16 %v519, %v518
  %v527 = vpack.c.bf16 %v521, %v520
  %v528 = vpack.c.bf16 %v523, %v522
  %v529 = vpack.c.bf16 %v525, %v524
  %v530 = vld [vmem:[%s1 + $0x70] sm:$0xf]
  %v531 = vld [vmem:[%s1 + $0x78] sm:$0xf]
  %v532 = vld [vmem:[%s1 + $0x80] sm:$0xf]
  %v533 = vld [vmem:[%s1 + $0x88] sm:$0xf]
  %v534 = vld [vmem:[%s2 + $0x4] ss:$0 sm:$0xff]
  %v539 = vunpack.c.l.b16 %v530
  %v540 = vunpack.c.l.b16 %v531
  %v541 = vunpack.c.l.b16 %v532
  %v542 = vunpack.c.l.b16 %v533
  %v543 = vpack.c.b16 %v540, %v539
  %v544 = vpack.c.b16 %v542, %v541
  %v548 = vsel %vm180, %v526, 0
  %v551 = vsel %vm180, %v527, 0
  %v554 = vsel %vm180, %v528, 0
  %v557 = vsel %vm180, %v529, 0
  %559 = vmatprep.subr.bf16.mxu0 0
  %560 = vmatpush1.bf16.msra.mxu0 %v543
  %561 = vmatprep.subr.bf16.mxu0 0
  %562 = vmatpush1.bf16.msra.mxu0 %v544
  %563 = vmatprep.subr.bf16.mxu0 0
  %564 = vmatpush1.bf16.msra.mxu0 0
  %565 = vmatprep.subr.bf16.mxu0 0
  %566 = vmatpush1.bf16.msra.mxu0 0
  %567 = vmatprep.subr.bf16.mxu0 0
  %568 = vmatpush1.bf16.msra.mxu0 0
  %569 = vmatprep.subr.bf16.mxu0 0
  %570 = vmatpush1.bf16.msra.mxu0 0
  %571 = vmatprep.subr.bf16.mxu0 0
  %572 = vmatpush1.bf16.msra.mxu0 0
  %573 = vmatprep.subr.bf16.mxu0 0
  %574 = vmatpush1.bf16.msra.mxu0 0
  %575 = vmatprep.subr.bf16.mxu0 0
  %576 = vmatpush1.bf16.msra.mxu0 0
  %577 = vmatprep.subr.bf16.mxu0 0
  %578 = vmatpush1.bf16.msra.mxu0 0
  %579 = vmatprep.subr.bf16.mxu0 0
  %580 = vmatpush1.bf16.msra.mxu0 0
  %581 = vmatprep.subr.bf16.mxu0 0
  %582 = vmatpush1.bf16.msra.mxu0 0
  %583 = vmatprep.subr.bf16.mxu0 0
  %584 = vmatpush1.bf16.msra.mxu0 0
  %585 = vmatprep.subr.bf16.mxu0 0
  %586 = vmatpush1.bf16.msra.mxu0 0
  %587 = vmatprep.subr.bf16.mxu0 0
  %588 = vmatpush1.bf16.msra.mxu0 0
  %589 = vmatprep.subr.bf16.mxu0 0
  %590 = vmatpush1.bf16.msra.mxu0 0
  %591 = vmatprep.mubr.bf16.mxu0 0
  %592 = vmatmul.mubr.bf16.gmra.mrb[0].mxu0 %v548
  %v593 = vpop.f32.mrb[0].mxu0
  %v594 = vadd.f32 %v534, %v593
  %v595 = vpop.f32.mrb[0].mxu0
  %v596 = vpop.f32.mrb[0].mxu0
  %v597 = vadd.f32 %v534, %v596
  %v598 = vpop.f32.mrb[0].mxu0
  %599 = vmatprep.mubr.bf16.mxu0 0
  %600 = vmatmul.mubr.bf16.gmra.mrb[0].mxu0 %v551
  %v601 = vpop.f32.mrb[0].mxu0
  %v602 = vadd.f32 %v534, %v601
  %v603 = vpop.f32.mrb[0].mxu0
  %v604 = vpop.f32.mrb[0].mxu0
  %v605 = vadd.f32 %v534, %v604
  %v606 = vpop.f32.mrb[0].mxu0
  %607 = vmatprep.mubr.bf16.mxu0 0
  %608 = vmatmul.mubr.bf16.gmra.mrb[0].mxu0 %v554
  %v609 = vpop.f32.mrb[0].mxu0
  %v610 = vadd.f32 %v534, %v609
  %v611 = vpop.f32.mrb[0].mxu0
  %v612 = vpop.f32.mrb[0].mxu0
  %v613 = vadd.f32 %v534, %v612
  %v614 = vpop.f32.mrb[0].mxu0
  %615 = vmatprep.mubr.bf16.mxu0 0
  %616 = vmatmul.mubr.bf16.gmra.mrb[0].mxu0 %v557
  %v617 = vpop.f32.mrb[0].mxu0
  %v618 = vadd.f32 %v534, %v617
  %v619 = vpop.f32.mrb[0].mxu0
  %v620 = vpop.f32.mrb[0].mxu0
  %v621 = vadd.f32 %v534, %v620
  %v622 = vpop.f32.mrb[0].mxu0
  %623 = vdwg.mxu0
  %v624 = vmax.f32 %v594, 0.0
  %v625 = vmax.f32 %v597, 0.0
  %v626 = vmax.f32 %v602, 0.0
  %v627 = vmax.f32 %v605, 0.0
  %v628 = vmax.f32 %v610, 0.0
  %v629 = vmax.f32 %v613, 0.0
  %v630 = vmax.f32 %v618, 0.0
  %v631 = vmax.f32 %v621, 0.0
  %v632 = vld [vmem:[%s1 + $0x90] sm:$0xf]
  %v633 = vld [vmem:[%s1 + $0x98] sm:$0xf]
  %v634 = vld [vmem:[%s1 + $0xa0] sm:$0xf]
  %v635 = vld [vmem:[%s1 + $0xa8] sm:$0xf]
  %v636 = vld [vmem:[%s1 + $0xb0] sm:$0xf]
  %v637 = vld [vmem:[%s1 + $0xb8] sm:$0xf]
  %v638 = vld [vmem:[%s1 + $0xc0] sm:$0xf]
  %v639 = vld [vmem:[%s1 + $0xc8] sm:$0xf]
  %v640 = vld [vmem:[%s2 + $0x5] ss:$0 sm:$0xff]
  %v641 = vpack.c.bf16 %v625, %v624
  %v642 = vpack.c.bf16 %v627, %v626
  %v643 = vpack.c.bf16 %v629, %v628
  %v644 = vpack.c.bf16 %v631, %v630
  %v653 = vunpack.c.l.b16 %v632
  %v654 = vunpack.c.l.b16 %v633
  %v655 = vunpack.c.l.b16 %v634
  %v656 = vunpack.c.l.b16 %v635
  %v657 = vunpack.c.l.b16 %v636
  %v658 = vunpack.c.l.b16 %v637
  %v659 = vunpack.c.l.b16 %v638
  %v660 = vunpack.c.l.b16 %v639
  %v661 = vpack.c.b16 %v654, %v653
  %v662 = vpack.c.b16 %v656, %v655
  %v663 = vpack.c.b16 %v658, %v657
  %v664 = vpack.c.b16 %v660, %v659
  %vm669 = vcmask 523264
  %v671 = vsel %vm669, %v641, 0
  %v674 = vsel %vm669, %v642, 0
  %v677 = vsel %vm669, %v643, 0
  %v680 = vsel %vm669, %v644, 0
  %682 = vmatprep.subr.bf16.mxu0 0
  %683 = vmatpush1.bf16.msra.mxu0 %v661
  %684 = vmatprep.subr.bf16.mxu0 0
  %685 = vmatpush1.bf16.msra.mxu0 %v662
  %686 = vmatprep.subr.bf16.mxu0 0
  %687 = vmatpush1.bf16.msra.mxu0 %v663
  %688 = vmatprep.subr.bf16.mxu0 0
  %689 = vmatpush1.bf16.msra.mxu0 %v664
  %690 = vmatprep.subr.bf16.mxu0 0
  %691 = vmatpush1.bf16.msra.mxu0 0
  %692 = vmatprep.subr.bf16.mxu0 0
  %693 = vmatpush1.bf16.msra.mxu0 0
  %694 = vmatprep.subr.bf16.mxu0 0
  %695 = vmatpush1.bf16.msra.mxu0 0
  %696 = vmatprep.subr.bf16.mxu0 0
  %697 = vmatpush1.bf16.msra.mxu0 0
  %698 = vmatprep.subr.bf16.mxu0 0
  %699 = vmatpush1.bf16.msra.mxu0 0
  %700 = vmatprep.subr.bf16.mxu0 0
  %701 = vmatpush1.bf16.msra.mxu0 0
  %702 = vmatprep.subr.bf16.mxu0 0
  %703 = vmatpush1.bf16.msra.mxu0 0
  %704 = vmatprep.subr.bf16.mxu0 0
  %705 = vmatpush1.bf16.msra.mxu0 0
  %706 = vmatprep.subr.bf16.mxu0 0
  %707 = vmatpush1.bf16.msra.mxu0 0
  %708 = vmatprep.subr.bf16.mxu0 0
  %709 = vmatpush1.bf16.msra.mxu0 0
  %710 = vmatprep.subr.bf16.mxu0 0
  %711 = vmatpush1.bf16.msra.mxu0 0
  %712 = vmatprep.subr.bf16.mxu0 0
  %713 = vmatpush1.bf16.msra.mxu0 0
  %714 = vmatprep.mubr.bf16.mxu0 0
  %715 = vmatmul.mubr.bf16.gmra.mrb[0].mxu0 %v671
  %v716 = vpop.f32.mrb[0].mxu0
  %v717 = vadd.f32 %v640, %v716
  %v718 = vpop.f32.mrb[0].mxu0
  %v719 = vpop.f32.mrb[0].mxu0
  %v720 = vadd.f32 %v640, %v719
  %v721 = vpop.f32.mrb[0].mxu0
  %722 = vmatprep.mubr.bf16.mxu0 0
  %723 = vmatmul.mubr.bf16.gmra.mrb[0].mxu0 %v674
  %v724 = vpop.f32.mrb[0].mxu0
  %v725 = vadd.f32 %v640, %v724
  %v726 = vpop.f32.mrb[0].mxu0
  %v727 = vpop.f32.mrb[0].mxu0
  %v728 = vadd.f32 %v640, %v727
  %v729 = vpop.f32.mrb[0].mxu0
  %730 = vmatprep.mubr.bf16.mxu0 0
  %731 = vmatmul.mubr.bf16.gmra.mrb[0].mxu0 %v677
  %v732 = vpop.f32.mrb[0].mxu0
  %v733 = vadd.f32 %v640, %v732
  %v734 = vpop.f32.mrb[0].mxu0
  %v735 = vpop.f32.mrb[0].mxu0
  %v736 = vadd.f32 %v640, %v735
  %v737 = vpop.f32.mrb[0].mxu0
  %738 = vmatprep.mubr.bf16.mxu0 0
  %739 = vmatmul.mubr.bf16.gmra.mrb[0].mxu0 %v680
  %v740 = vpop.f32.mrb[0].mxu0
  %v741 = vadd.f32 %v640, %v740
  %v742 = vpop.f32.mrb[0].mxu0
  %v743 = vpop.f32.mrb[0].mxu0
  %v744 = vadd.f32 %v640, %v743
  %v745 = vpop.f32.mrb[0].mxu0
  %746 = vdwg.mxu0
  %755 = vrot.lane.b32.xlu0 %v594, 64
  %v756 = vpop.permute.xlu0 %755
  %757 = vrot.lane.b32.xlu0 %v597, 64
  %v758 = vpop.permute.xlu0 %757
  %759 = vrot.lane.b32.xlu0 %v602, 64
  %v760 = vpop.permute.xlu0 %759
  %761 = vrot.lane.b32.xlu0 %v605, 64
  %v762 = vpop.permute.xlu0 %761
  %763 = vrot.lane.b32.xlu0 %v610, 64
  %v764 = vpop.permute.xlu0 %763
  %765 = vrot.lane.b32.xlu0 %v613, 64
  %v766 = vpop.permute.xlu0 %765
  %767 = vrot.lane.b32.xlu0 %v618, 64
  %v768 = vpop.permute.xlu0 %767
  %769 = vrot.lane.b32.xlu0 %v621, 64
  %v770 = vpop.permute.xlu0 %769
  %v779 = vadd.f32 %v717, %v756
  %v780 = vadd.f32 %v720, %v758
  %v781 = vadd.f32 %v725, %v760
  %v782 = vadd.f32 %v728, %v762
  %v783 = vadd.f32 %v733, %v764
  %v784 = vadd.f32 %v736, %v766
  %v785 = vadd.f32 %v741, %v768
  %v786 = vadd.f32 %v744, %v770
  %v787 = vmax.f32 %v779, 0.0
  %v788 = vmax.f32 %v780, 0.0
  %v789 = vmax.f32 %v781, 0.0
  %v790 = vmax.f32 %v782, 0.0
  %v791 = vmax.f32 %v783, 0.0
  %v792 = vmax.f32 %v784, 0.0
  %v793 = vmax.f32 %v785, 0.0
  %v794 = vmax.f32 %v786, 0.0
  %v795 = vpack.c.bf16 %v788, %v787
  %v796 = vpack.c.bf16 %v790, %v789
  %v797 = vpack.c.bf16 %v792, %v791
  %v798 = vpack.c.bf16 %v794, %v793
  %v799 = vld [vmem:[%s1 + $0xd0] sm:$0xff]
  %v800 = vld [vmem:[%s1 + $0xd8] sm:$0xff]
  %v801 = vld [vmem:[%s1 + $0xe0] sm:$0xff]
  %v802 = vld [vmem:[%s1 + $0xe8] sm:$0xff]
  %v803 = vld [vmem:[%s1 + $0xf0] sm:$0xff]
  %v804 = vld [vmem:[%s1 + $0xf8] sm:$0xff]
  %v805 = vld [vmem:[%s1 + $0x100] sm:$0xff]
  %v806 = vld [vmem:[%s1 + $0x108] sm:$0xff]
  %s807 = scalar_lea.vmem %s2, 6
  %v808 = vld [vmem:[%s807] ss:$8 sm:$0x3]
  %v810 = vlaneseq
  %v811 = vshrl.u32 %v810, 7
  %v812 = vsub.s32 0, %v811
  %v813 = vrot.slane %v808, %v812
  %v814 = vlaneseq
  %v815 = vshrl.u32 %v814, 7
  %v816 = vsub.s32 1, %v815
  %v817 = vrot.slane %v808, %v816
  %v828 = vunpack.c.l.b16 %v799
  %v829 = vunpack.c.h.b16 %v799
  %v830 = vunpack.c.l.b16 %v800
  %v831 = vunpack.c.h.b16 %v800
  %v832 = vunpack.c.l.b16 %v801
  %v833 = vunpack.c.h.b16 %v801
  %v834 = vunpack.c.l.b16 %v802
  %v835 = vunpack.c.h.b16 %v802
  %v836 = vunpack.c.l.b16 %v803
  %v837 = vunpack.c.h.b16 %v803
  %v838 = vunpack.c.l.b16 %v804
  %v839 = vunpack.c.h.b16 %v804
  %v840 = vunpack.c.l.b16 %v805
  %v841 = vunpack.c.h.b16 %v805
  %v842 = vunpack.c.l.b16 %v806
  %v843 = vunpack.c.h.b16 %v806
  %v844 = vpack.c.b16 %v830, %v828
  %v845 = vpack.c.b16 %v831, %v829
  %v846 = vpack.c.b16 %v834, %v832
  %v847 = vpack.c.b16 %v835, %v833
  %v848 = vpack.c.b16 %v838, %v836
  %v849 = vpack.c.b16 %v839, %v837
  %v850 = vpack.c.b16 %v842, %v840
  %v851 = vpack.c.b16 %v843, %v841
  %v861 = vsel %vm669, %v795, 0
  %v864 = vsel %vm669, %v796, 0
  %v867 = vsel %vm669, %v797, 0
  %v870 = vsel %vm669, %v798, 0
  %872 = vmatprep.subr.bf16.mxu0 %v845
  %873 = vmatpush1.bf16.msra.mxu0 %v844
  %874 = vmatprep.subr.bf16.mxu0 %v847
  %875 = vmatpush1.bf16.msra.mxu0 %v846
  %876 = vmatprep.subr.bf16.mxu0 %v849
  %877 = vmatpush1.bf16.msra.mxu0 %v848
  %878 = vmatprep.subr.bf16.mxu0 %v851
  %879 = vmatpush1.bf16.msra.mxu0 %v850
  %880 = vmatprep.subr.bf16.mxu0 0
  %881 = vmatpush1.bf16.msra.mxu0 0
  %882 = vmatprep.subr.bf16.mxu0 0
  %883 = vmatpush1.bf16.msra.mxu0 0
  %884 = vmatprep.subr.bf16.mxu0 0
  %885 = vmatpush1.bf16.msra.mxu0 0
  %886 = vmatprep.subr.bf16.mxu0 0
  %887 = vmatpush1.bf16.msra.mxu0 0
  %888 = vmatprep.subr.bf16.mxu0 0
  %889 = vmatpush1.bf16.msra.mxu0 0
  %890 = vmatprep.subr.bf16.mxu0 0
  %891 = vmatpush1.bf16.msra.mxu0 0
  %892 = vmatprep.subr.bf16.mxu0 0
  %893 = vmatpush1.bf16.msra.mxu0 0
  %894 = vmatprep.subr.bf16.mxu0 0
  %895 = vmatpush1.bf16.msra.mxu0 0
  %896 = vmatprep.subr.bf16.mxu0 0
  %897 = vmatpush1.bf16.msra.mxu0 0
  %898 = vmatprep.subr.bf16.mxu0 0
  %899 = vmatpush1.bf16.msra.mxu0 0
  %900 = vmatprep.subr.bf16.mxu0 0
  %901 = vmatpush1.bf16.msra.mxu0 0
  %902 = vmatprep.subr.bf16.mxu0 0
  %903 = vmatpush1.bf16.msra.mxu0 0
  %904 = vmatprep.mubr.bf16.mxu0 0
  %905 = vmatmul.mubr.bf16.gmra.mrb[0].mxu0 %v861
  %v906 = vpop.f32.mrb[0].mxu0
  %v907 = vadd.f32 %v813, %v906
  %v908 = vpop.f32.mrb[0].mxu0
  %v909 = vadd.f32 %v817, %v908
  %v910 = vpop.f32.mrb[0].mxu0
  %v911 = vadd.f32 %v813, %v910
  %v912 = vpop.f32.mrb[0].mxu0
  %v913 = vadd.f32 %v817, %v912
  %914 = vmatprep.mubr.bf16.mxu0 0
  %915 = vmatmul.mubr.bf16.gmra.mrb[0].mxu0 %v864
  %v916 = vpop.f32.mrb[0].mxu0
  %v917 = vadd.f32 %v813, %v916
  %v918 = vpop.f32.mrb[0].mxu0
  %v919 = vadd.f32 %v817, %v918
  %v920 = vpop.f32.mrb[0].mxu0
  %v921 = vadd.f32 %v813, %v920
  %v922 = vpop.f32.mrb[0].mxu0
  %v923 = vadd.f32 %v817, %v922
  %924 = vmatprep.mubr.bf16.mxu0 0
  %925 = vmatmul.mubr.bf16.gmra.mrb[0].mxu0 %v867
  %v926 = vpop.f32.mrb[0].mxu0
  %v927 = vadd.f32 %v813, %v926
  %v928 = vpop.f32.mrb[0].mxu0
  %v929 = vadd.f32 %v817, %v928
  %v930 = vpop.f32.mrb[0].mxu0
  %v931 = vadd.f32 %v813, %v930
  %v932 = vpop.f32.mrb[0].mxu0
  %v933 = vadd.f32 %v817, %v932
  %934 = vmatprep.mubr.bf16.mxu0 0
  %935 = vmatmul.mubr.bf16.gmra.mrb[0].mxu0 %v870
  %v936 = vpop.f32.mrb[0].mxu0
  %v937 = vadd.f32 %v813, %v936
  %v938 = vpop.f32.mrb[0].mxu0
  %v939 = vadd.f32 %v817, %v938
  %v940 = vpop.f32.mrb[0].mxu0
  %v941 = vadd.f32 %v813, %v940
  %v942 = vpop.f32.mrb[0].mxu0
  %v943 = vadd.f32 %v817, %v942
  %944 = vdwg.mxu0
  %v945 = vmax.f32 %v907, 0.0
  %v946 = vmax.f32 %v911, 0.0
  %v947 = vmax.f32 %v917, 0.0
  %v948 = vmax.f32 %v921, 0.0
  %v949 = vmax.f32 %v927, 0.0
  %v950 = vmax.f32 %v931, 0.0
  %v951 = vmax.f32 %v937, 0.0
  %v952 = vmax.f32 %v941, 0.0
  %v953 = vld [vmem:[%s1 + $0x110] sm:$0xf]
  %v954 = vld [vmem:[%s1 + $0x118] sm:$0xf]
  %v955 = vld [vmem:[%s1 + $0x120] sm:$0xf]
  %v956 = vld [vmem:[%s1 + $0x128] sm:$0xf]
  %v957 = vld [vmem:[%s1 + $0x130] sm:$0xf]
  %v958 = vld [vmem:[%s1 + $0x138] sm:$0xf]
  %v959 = vld [vmem:[%s1 + $0x140] sm:$0xf]
  %v960 = vld [vmem:[%s1 + $0x148] sm:$0xf]
  %v961 = vld [vmem:[%s1 + $0x150] sm:$0xf]
  %v962 = vld [vmem:[%s1 + $0x158] sm:$0xf]
  %v963 = vld [vmem:[%s1 + $0x160] sm:$0xf]
  %v964 = vld [vmem:[%s1 + $0x168] sm:$0xf]
  %v965 = vld [vmem:[%s1 + $0x170] sm:$0xf]
  %v966 = vld [vmem:[%s1 + $0x178] sm:$0xf]
  %v967 = vld [vmem:[%s1 + $0x180] sm:$0xf]
  %v968 = vld [vmem:[%s1 + $0x188] sm:$0xf]
  %v969 = vld [vmem:[%s2 + $0x7] ss:$0 sm:$0xff]
  %v970 = vpack.c.bf16 %v946, %v945
  %v971 = vpack.c.bf16 %v948, %v947
  %v972 = vpack.c.bf16 %v950, %v949
  %v973 = vpack.c.bf16 %v952, %v951
  %v990 = vunpack.c.l.b16 %v953
  %v991 = vunpack.c.l.b16 %v954
  %v992 = vunpack.c.l.b16 %v955
  %v993 = vunpack.c.l.b16 %v956
  %v994 = vunpack.c.l.b16 %v957
  %v995 = vunpack.c.l.b16 %v958
  %v996 = vunpack.c.l.b16 %v959
  %v997 = vunpack.c.l.b16 %v960
  %v998 = vunpack.c.l.b16 %v961
  %v999 = vunpack.c.l.b16 %v962
  %v1000 = vunpack.c.l.b16 %v963
  %v1001 = vunpack.c.l.b16 %v964
  %v1002 = vunpack.c.l.b16 %v965
  %v1003 = vunpack.c.l.b16 %v966
  %v1004 = vunpack.c.l.b16 %v967
  %v1005 = vunpack.c.l.b16 %v968
  %v1006 = vpack.c.b16 %v991, %v990
  %v1007 = vpack.c.b16 %v993, %v992
  %v1008 = vpack.c.b16 %v995, %v994
  %v1009 = vpack.c.b16 %v997, %v996
  %v1010 = vpack.c.b16 %v999, %v998
  %v1011 = vpack.c.b16 %v1001, %v1000
  %v1012 = vpack.c.b16 %v1003, %v1002
  %v1013 = vpack.c.b16 %v1005, %v1004
  %1022 = vmatprep.subr.bf16.mxu0 0
  %1023 = vmatpush1.bf16.msra.mxu0 %v1006
  %1024 = vmatprep.subr.bf16.mxu0 0
  %1025 = vmatpush1.bf16.msra.mxu0 %v1007
  %1026 = vmatprep.subr.bf16.mxu0 0
  %1027 = vmatpush1.bf16.msra.mxu0 %v1008
  %1028 = vmatprep.subr.bf16.mxu0 0
  %1029 = vmatpush1.bf16.msra.mxu0 %v1009
  %1030 = vmatprep.subr.bf16.mxu0 0
  %1031 = vmatpush1.bf16.msra.mxu0 %v1010
  %1032 = vmatprep.subr.bf16.mxu0 0
  %1033 = vmatpush1.bf16.msra.mxu0 %v1011
  %1034 = vmatprep.subr.bf16.mxu0 0
  %1035 = vmatpush1.bf16.msra.mxu0 %v1012
  %1036 = vmatprep.subr.bf16.mxu0 0
  %1037 = vmatpush1.bf16.msra.mxu0 %v1013
  %1038 = vmatprep.subr.bf16.mxu0 0
  %1039 = vmatpush1.bf16.msra.mxu0 0
  %1040 = vmatprep.subr.bf16.mxu0 0
  %1041 = vmatpush1.bf16.msra.mxu0 0
  %1042 = vmatprep.subr.bf16.mxu0 0
  %1043 = vmatpush1.bf16.msra.mxu0 0
  %1044 = vmatprep.subr.bf16.mxu0 0
  %1045 = vmatpush1.bf16.msra.mxu0 0
  %1046 = vmatprep.subr.bf16.mxu0 0
  %1047 = vmatpush1.bf16.msra.mxu0 0
  %1048 = vmatprep.subr.bf16.mxu0 0
  %1049 = vmatpush1.bf16.msra.mxu0 0
  %1050 = vmatprep.subr.bf16.mxu0 0
  %1051 = vmatpush1.bf16.msra.mxu0 0
  %1052 = vmatprep.subr.bf16.mxu0 0
  %1053 = vmatpush1.bf16.msra.mxu0 0
  %1054 = vmatprep.mubr.bf16.mxu0 0
  %1055 = vmatmul.mubr.bf16.gmra.mrb[0].mxu0 %v970
  %v1056 = vpop.f32.mrb[0].mxu0
  %v1057 = vadd.f32 %v969, %v1056
  %v1058 = vpop.f32.mrb[0].mxu0
  %v1059 = vpop.f32.mrb[0].mxu0
  %v1060 = vadd.f32 %v969, %v1059
  %v1061 = vpop.f32.mrb[0].mxu0
  %1062 = vmatprep.mubr.bf16.mxu0 0
  %1063 = vmatmul.mubr.bf16.gmra.mrb[0].mxu0 %v971
  %v1064 = vpop.f32.mrb[0].mxu0
  %v1065 = vadd.f32 %v969, %v1064
  %v1066 = vpop.f32.mrb[0].mxu0
  %v1067 = vpop.f32.mrb[0].mxu0
  %v1068 = vadd.f32 %v969, %v1067
  %v1069 = vpop.f32.mrb[0].mxu0
  %1070 = vmatprep.mubr.bf16.mxu0 0
  %1071 = vmatmul.mubr.bf16.gmra.mrb[0].mxu0 %v972
  %v1072 = vpop.f32.mrb[0].mxu0
  %v1073 = vadd.f32 %v969, %v1072
  %v1074 = vpop.f32.mrb[0].mxu0
  %v1075 = vpop.f32.mrb[0].mxu0
  %v1076 = vadd.f32 %v969, %v1075
  %v1077 = vpop.f32.mrb[0].mxu0
  %1078 = vmatprep.mubr.bf16.mxu0 0
  %1079 = vmatmul.mubr.bf16.gmra.mrb[0].mxu0 %v973
  %v1080 = vpop.f32.mrb[0].mxu0
  %v1081 = vadd.f32 %v969, %v1080
  %v1082 = vpop.f32.mrb[0].mxu0
  %v1083 = vpop.f32.mrb[0].mxu0
  %v1084 = vadd.f32 %v969, %v1083
  %v1085 = vpop.f32.mrb[0].mxu0
  %1086 = vdwg.mxu0
  %v1087 = vadd.f32 %v1057, %v909
  %v1088 = vadd.f32 %v1060, %v913
  %v1089 = vadd.f32 %v1065, %v919
  %v1090 = vadd.f32 %v1068, %v923
  %v1091 = vadd.f32 %v1073, %v929
  %v1092 = vadd.f32 %v1076, %v933
  %v1093 = vadd.f32 %v1081, %v939
  %v1094 = vadd.f32 %v1084, %v943
  %v1095 = vmax.f32 %v1087, 0.0
  %v1096 = vmax.f32 %v1088, 0.0
  %v1097 = vmax.f32 %v1089, 0.0
  %v1098 = vmax.f32 %v1090, 0.0
  %v1099 = vmax.f32 %v1091, 0.0
  %v1100 = vmax.f32 %v1092, 0.0
  %v1101 = vmax.f32 %v1093, 0.0
  %v1102 = vmax.f32 %v1094, 0.0
  %v1103 = vpack.c.bf16 %v1096, %v1095
  %v1104 = vpack.c.bf16 %v1098, %v1097
  %v1105 = vpack.c.bf16 %v1100, %v1099
  %v1106 = vpack.c.bf16 %v1102, %v1101
  %v1107 = vld [vmem:[%s1 + $0x190] sm:$0xf]
  %v1108 = vld [vmem:[%s1 + $0x198] sm:$0xf]
  %v1109 = vld [vmem:[%s1 + $0x1a0] sm:$0xf]
  %v1110 = vld [vmem:[%s1 + $0x1a8] sm:$0xf]
  %v1111 = vld [vmem:[%s1 + $0x1b0] sm:$0xf]
  %v1112 = vld [vmem:[%s1 + $0x1b8] sm:$0xf]
  %v1113 = vld [vmem:[%s1 + $0x1c0] sm:$0xf]
  %v1114 = vld [vmem:[%s1 + $0x1c8] sm:$0xf]
  %v1115 = vld [vmem:[%s1 + $0x1d0] sm:$0xf]
  %v1116 = vld [vmem:[%s1 + $0x1d8] sm:$0xf]
  %v1117 = vld [vmem:[%s1 + $0x1e0] sm:$0xf]
  %v1118 = vld [vmem:[%s1 + $0x1e8] sm:$0xf]
  %v1119 = vld [vmem:[%s1 + $0x1f0] sm:$0xf]
  %v1120 = vld [vmem:[%s1 + $0x1f8] sm:$0xf]
  %v1121 = vld [vmem:[%s1 + $0x200] sm:$0xf]
  %v1122 = vld [vmem:[%s1 + $0x208] sm:$0xf]
  %v1123 = vld [vmem:[%s2 + $0x10] ss:$0 sm:$0xff]
  %v1140 = vunpack.c.l.b16 %v1107
  %v1141 = vunpack.c.l.b16 %v1108
  %v1142 = vunpack.c.l.b16 %v1109
  %v1143 = vunpack.c.l.b16 %v1110
  %v1144 = vunpack.c.l.b16 %v1111
  %v1145 = vunpack.c.l.b16 %v1112
  %v1146 = vunpack.c.l.b16 %v1113
  %v1147 = vunpack.c.l.b16 %v1114
  %v1148 = vunpack.c.l.b16 %v1115
  %v1149 = vunpack.c.l.b16 %v1116
  %v1150 = vunpack.c.l.b16 %v1117
  %v1151 = vunpack.c.l.b16 %v1118
  %v1152 = vunpack.c.l.b16 %v1119
  %v1153 = vunpack.c.l.b16 %v1120
  %v1154 = vunpack.c.l.b16 %v1121
  %v1155 = vunpack.c.l.b16 %v1122
  %v1156 = vpack.c.b16 %v1141, %v1140
  %v1157 = vpack.c.b16 %v1143, %v1142
  %v1158 = vpack.c.b16 %v1145, %v1144
  %v1159 = vpack.c.b16 %v1147, %v1146
  %v1160 = vpack.c.b16 %v1149, %v1148
  %v1161 = vpack.c.b16 %v1151, %v1150
  %v1162 = vpack.c.b16 %v1153, %v1152
  %v1163 = vpack.c.b16 %v1155, %v1154
  %1172 = vmatprep.subr.bf16.mxu0 0
  %1173 = vmatpush1.bf16.msra.mxu0 %v1156
  %1174 = vmatprep.subr.bf16.mxu0 0
  %1175 = vmatpush1.bf16.msra.mxu0 %v1157
  %1176 = vmatprep.subr.bf16.mxu0 0
  %1177 = vmatpush1.bf16.msra.mxu0 %v1158
  %1178 = vmatprep.subr.bf16.mxu0 0
  %1179 = vmatpush1.bf16.msra.mxu0 %v1159
  %1180 = vmatprep.subr.bf16.mxu0 0
  %1181 = vmatpush1.bf16.msra.mxu0 %v1160
  %1182 = vmatprep.subr.bf16.mxu0 0
  %1183 = vmatpush1.bf16.msra.mxu0 %v1161
  %1184 = vmatprep.subr.bf16.mxu0 0
  %1185 = vmatpush1.bf16.msra.mxu0 %v1162
  %1186 = vmatprep.subr.bf16.mxu0 0
  %1187 = vmatpush1.bf16.msra.mxu0 %v1163
  %1188 = vmatprep.subr.bf16.mxu0 0
  %1189 = vmatpush1.bf16.msra.mxu0 0
  %1190 = vmatprep.subr.bf16.mxu0 0
  %1191 = vmatpush1.bf16.msra.mxu0 0
  %1192 = vmatprep.subr.bf16.mxu0 0
  %1193 = vmatpush1.bf16.msra.mxu0 0
  %1194 = vmatprep.subr.bf16.mxu0 0
  %1195 = vmatpush1.bf16.msra.mxu0 0
  %1196 = vmatprep.subr.bf16.mxu0 0
  %1197 = vmatpush1.bf16.msra.mxu0 0
  %1198 = vmatprep.subr.bf16.mxu0 0
  %1199 = vmatpush1.bf16.msra.mxu0 0
  %1200 = vmatprep.subr.bf16.mxu0 0
  %1201 = vmatpush1.bf16.msra.mxu0 0
  %1202 = vmatprep.subr.bf16.mxu0 0
  %1203 = vmatpush1.bf16.msra.mxu0 0
  %1204 = vmatprep.mubr.bf16.mxu0 0
  %1205 = vmatmul.mubr.bf16.gmra.mrb[0].mxu0 %v1103
  %v1206 = vpop.f32.mrb[0].mxu0
  %v1207 = vadd.f32 %v1123, %v1206
  %v1208 = vpop.f32.mrb[0].mxu0
  %v1209 = vpop.f32.mrb[0].mxu0
  %v1210 = vadd.f32 %v1123, %v1209
  %v1211 = vpop.f32.mrb[0].mxu0
  %1212 = vmatprep.mubr.bf16.mxu0 0
  %1213 = vmatmul.mubr.bf16.gmra.mrb[0].mxu0 %v1104
  %v1214 = vpop.f32.mrb[0].mxu0
  %v1215 = vadd.f32 %v1123, %v1214
  %v1216 = vpop.f32.mrb[0].mxu0
  %v1217 = vpop.f32.mrb[0].mxu0
  %v1218 = vadd.f32 %v1123, %v1217
  %v1219 = vpop.f32.mrb[0].mxu0
  %1220 = vmatprep.mubr.bf16.mxu0 0
  %1221 = vmatmul.mubr.bf16.gmra.mrb[0].mxu0 %v1105
  %v1222 = vpop.f32.mrb[0].mxu0
  %v1223 = vadd.f32 %v1123, %v1222
  %v1224 = vpop.f32.mrb[0].mxu0
  %v1225 = vpop.f32.mrb[0].mxu0
  %v1226 = vadd.f32 %v1123, %v1225
  %v1227 = vpop.f32.mrb[0].mxu0
  %1228 = vmatprep.mubr.bf16.mxu0 0
  %1229 = vmatmul.mubr.bf16.gmra.mrb[0].mxu0 %v1106
  %v1230 = vpop.f32.mrb[0].mxu0
  %v1231 = vadd.f32 %v1123, %v1230
  %v1232 = vpop.f32.mrb[0].mxu0
  %v1233 = vpop.f32.mrb[0].mxu0
  %v1234 = vadd.f32 %v1123, %v1233
  %v1235 = vpop.f32.mrb[0].mxu0
  %1236 = vdwg.mxu0
  %v1237 = vmax.f32 %v1207, 0.0
  %v1238 = vmax.f32 %v1210, 0.0
  %v1239 = vmax.f32 %v1215, 0.0
  %v1240 = vmax.f32 %v1218, 0.0
  %v1241 = vmax.f32 %v1223, 0.0
  %v1242 = vmax.f32 %v1226, 0.0
  %v1243 = vmax.f32 %v1231, 0.0
  %v1244 = vmax.f32 %v1234, 0.0
  %v1245 = vld [vmem:[%s1 + $0x210] sm:$0xf]
  %v1246 = vld [vmem:[%s1 + $0x218] sm:$0xf]
  %v1247 = vld [vmem:[%s1 + $0x220] sm:$0xf]
  %v1248 = vld [vmem:[%s1 + $0x228] sm:$0xf]
  %v1249 = vld [vmem:[%s1 + $0x230] sm:$0xf]
  %v1250 = vld [vmem:[%s1 + $0x238] sm:$0xf]
  %v1251 = vld [vmem:[%s1 + $0x240] sm:$0xf]
  %v1252 = vld [vmem:[%s1 + $0x248] sm:$0xf]
  %v1253 = vld [vmem:[%s1 + $0x250] sm:$0xf]
  %v1254 = vld [vmem:[%s1 + $0x258] sm:$0xf]
  %v1255 = vld [vmem:[%s1 + $0x260] sm:$0xf]
  %v1256 = vld [vmem:[%s1 + $0x268] sm:$0xf]
  %v1257 = vld [vmem:[%s1 + $0x270] sm:$0xf]
  %v1258 = vld [vmem:[%s1 + $0x278] sm:$0xf]
  %v1259 = vld [vmem:[%s1 + $0x280] sm:$0xf]
  %v1260 = vld [vmem:[%s1 + $0x288] sm:$0xf]
  %v1261 = vld [vmem:[%s2 + $0x11] ss:$0 sm:$0xff]
  %v1262 = vpack.c.bf16 %v1238, %v1237
  %v1263 = vpack.c.bf16 %v1240, %v1239
  %v1264 = vpack.c.bf16 %v1242, %v1241
  %v1265 = vpack.c.bf16 %v1244, %v1243
  %v1282 = vunpack.c.l.b16 %v1245
  %v1283 = vunpack.c.l.b16 %v1246
  %v1284 = vunpack.c.l.b16 %v1247
  %v1285 = vunpack.c.l.b16 %v1248
  %v1286 = vunpack.c.l.b16 %v1249
  %v1287 = vunpack.c.l.b16 %v1250
  %v1288 = vunpack.c.l.b16 %v1251
  %v1289 = vunpack.c.l.b16 %v1252
  %v1290 = vunpack.c.l.b16 %v1253
  %v1291 = vunpack.c.l.b16 %v1254
  %v1292 = vunpack.c.l.b16 %v1255
  %v1293 = vunpack.c.l.b16 %v1256
  %v1294 = vunpack.c.l.b16 %v1257
  %v1295 = vunpack.c.l.b16 %v1258
  %v1296 = vunpack.c.l.b16 %v1259
  %v1297 = vunpack.c.l.b16 %v1260
  %v1298 = vpack.c.b16 %v1283, %v1282
  %v1299 = vpack.c.b16 %v1285, %v1284
  %v1300 = vpack.c.b16 %v1287, %v1286
  %v1301 = vpack.c.b16 %v1289, %v1288
  %v1302 = vpack.c.b16 %v1291, %v1290
  %v1303 = vpack.c.b16 %v1293, %v1292
  %v1304 = vpack.c.b16 %v1295, %v1294
  %v1305 = vpack.c.b16 %v1297, %v1296
  %1314 = vmatprep.subr.bf16.mxu0 0
  %1315 = vmatpush1.bf16.msra.mxu0 %v1298
  %1316 = vmatprep.subr.bf16.mxu0 0
  %1317 = vmatpush1.bf16.msra.mxu0 %v1299
  %1318 = vmatprep.subr.bf16.mxu0 0
  %1319 = vmatpush1.bf16.msra.mxu0 %v1300
  %1320 = vmatprep.subr.bf16.mxu0 0
  %1321 = vmatpush1.bf16.msra.mxu0 %v1301
  %1322 = vmatprep.subr.bf16.mxu0 0
  %1323 = vmatpush1.bf16.msra.mxu0 %v1302
  %1324 = vmatprep.subr.bf16.mxu0 0
  %1325 = vmatpush1.bf16.msra.mxu0 %v1303
  %1326 = vmatprep.subr.bf16.mxu0 0
  %1327 = vmatpush1.bf16.msra.mxu0 %v1304
  %1328 = vmatprep.subr.bf16.mxu0 0
  %1329 = vmatpush1.bf16.msra.mxu0 %v1305
  %1330 = vmatprep.subr.bf16.mxu0 0
  %1331 = vmatpush1.bf16.msra.mxu0 0
  %1332 = vmatprep.subr.bf16.mxu0 0
  %1333 = vmatpush1.bf16.msra.mxu0 0
  %1334 = vmatprep.subr.bf16.mxu0 0
  %1335 = vmatpush1.bf16.msra.mxu0 0
  %1336 = vmatprep.subr.bf16.mxu0 0
  %1337 = vmatpush1.bf16.msra.mxu0 0
  %1338 = vmatprep.subr.bf16.mxu0 0
  %1339 = vmatpush1.bf16.msra.mxu0 0
  %1340 = vmatprep.subr.bf16.mxu0 0
  %1341 = vmatpush1.bf16.msra.mxu0 0
  %1342 = vmatprep.subr.bf16.mxu0 0
  %1343 = vmatpush1.bf16.msra.mxu0 0
  %1344 = vmatprep.subr.bf16.mxu0 0
  %1345 = vmatpush1.bf16.msra.mxu0 0
  %1346 = vmatprep.mubr.bf16.mxu0 0
  %1347 = vmatmul.mubr.bf16.gmra.mrb[0].mxu0 %v1262
  %v1348 = vpop.f32.mrb[0].mxu0
  %v1349 = vadd.f32 %v1261, %v1348
  %v1350 = vpop.f32.mrb[0].mxu0
  %v1351 = vpop.f32.mrb[0].mxu0
  %v1352 = vadd.f32 %v1261, %v1351
  %v1353 = vpop.f32.mrb[0].mxu0
  %1354 = vmatprep.mubr.bf16.mxu0 0
  %1355 = vmatmul.mubr.bf16.gmra.mrb[0].mxu0 %v1263
  %v1356 = vpop.f32.mrb[0].mxu0
  %v1357 = vadd.f32 %v1261, %v1356
  %v1358 = vpop.f32.mrb[0].mxu0
  %v1359 = vpop.f32.mrb[0].mxu0
  %v1360 = vadd.f32 %v1261, %v1359
  %v1361 = vpop.f32.mrb[0].mxu0
  %1362 = vmatprep.mubr.bf16.mxu0 0
  %1363 = vmatmul.mubr.bf16.gmra.mrb[0].mxu0 %v1264
  %v1364 = vpop.f32.mrb[0].mxu0
  %v1365 = vadd.f32 %v1261, %v1364
  %v1366 = vpop.f32.mrb[0].mxu0
  %v1367 = vpop.f32.mrb[0].mxu0
  %v1368 = vadd.f32 %v1261, %v1367
  %v1369 = vpop.f32.mrb[0].mxu0
  %1370 = vmatprep.mubr.bf16.mxu0 0
  %1371 = vmatmul.mubr.bf16.gmra.mrb[0].mxu0 %v1265
  %v1372 = vpop.f32.mrb[0].mxu0
  %v1373 = vadd.f32 %v1261, %v1372
  %v1374 = vpop.f32.mrb[0].mxu0
  %v1375 = vpop.f32.mrb[0].mxu0
  %v1376 = vadd.f32 %v1261, %v1375
  %v1377 = vpop.f32.mrb[0].mxu0
  %1378 = vdwg.mxu0
  %v1379 = vadd.f32 %v1349, %v1095
  %v1380 = vadd.f32 %v1352, %v1096
  %v1381 = vadd.f32 %v1357, %v1097
  %v1382 = vadd.f32 %v1360, %v1098
  %v1383 = vadd.f32 %v1365, %v1099
  %v1384 = vadd.f32 %v1368, %v1100
  %v1385 = vadd.f32 %v1373, %v1101
  %v1386 = vadd.f32 %v1376, %v1102
  %v1387 = vmax.f32 %v1379, 0.0
  %v1388 = vmax.f32 %v1380, 0.0
  %v1389 = vmax.f32 %v1381, 0.0
  %v1390 = vmax.f32 %v1382, 0.0
  %v1391 = vmax.f32 %v1383, 0.0
  %v1392 = vmax.f32 %v1384, 0.0
  %v1393 = vmax.f32 %v1385, 0.0
  %v1394 = vmax.f32 %v1386, 0.0
  %v1395 = vpack.c.bf16 %v1388, %v1387
  %v1396 = vpack.c.bf16 %v1390, %v1389
  %v1397 = vpack.c.bf16 %v1392, %v1391
  %v1398 = vpack.c.bf16 %v1394, %v1393
  %v1399 = vld [vmem:[%s1 + $0x290] sm:$0xf]
  %v1400 = vld [vmem:[%s1 + $0x298] sm:$0xf]
  %v1401 = vld [vmem:[%s1 + $0x2a0] sm:$0xf]
  %v1402 = vld [vmem:[%s1 + $0x2a8] sm:$0xf]
  %v1403 = vld [vmem:[%s1 + $0x2b0] sm:$0xf]
  %v1404 = vld [vmem:[%s1 + $0x2b8] sm:$0xf]
  %v1405 = vld [vmem:[%s1 + $0x2c0] sm:$0xf]
  %v1406 = vld [vmem:[%s1 + $0x2c8] sm:$0xf]
  %v1407 = vld [vmem:[%s1 + $0x2d0] sm:$0xf]
  %v1408 = vld [vmem:[%s1 + $0x2d8] sm:$0xf]
  %v1409 = vld [vmem:[%s1 + $0x2e0] sm:$0xf]
  %v1410 = vld [vmem:[%s1 + $0x2e8] sm:$0xf]
  %v1411 = vld [vmem:[%s1 + $0x2f0] sm:$0xf]
  %v1412 = vld [vmem:[%s1 + $0x2f8] sm:$0xf]
  %v1413 = vld [vmem:[%s1 + $0x300] sm:$0xf]
  %v1414 = vld [vmem:[%s1 + $0x308] sm:$0xf]
  %v1415 = vld [vmem:[%s2 + $0x12] ss:$0 sm:$0xff]
  %v1432 = vunpack.c.l.b16 %v1399
  %v1433 = vunpack.c.l.b16 %v1400
  %v1434 = vunpack.c.l.b16 %v1401
  %v1435 = vunpack.c.l.b16 %v1402
  %v1436 = vunpack.c.l.b16 %v1403
  %v1437 = vunpack.c.l.b16 %v1404
  %v1438 = vunpack.c.l.b16 %v1405
  %v1439 = vunpack.c.l.b16 %v1406
  %v1440 = vunpack.c.l.b16 %v1407
  %v1441 = vunpack.c.l.b16 %v1408
  %v1442 = vunpack.c.l.b16 %v1409
  %v1443 = vunpack.c.l.b16 %v1410
  %v1444 = vunpack.c.l.b16 %v1411
  %v1445 = vunpack.c.l.b16 %v1412
  %v1446 = vunpack.c.l.b16 %v1413
  %v1447 = vunpack.c.l.b16 %v1414
  %v1448 = vpack.c.b16 %v1433, %v1432
  %v1449 = vpack.c.b16 %v1435, %v1434
  %v1450 = vpack.c.b16 %v1437, %v1436
  %v1451 = vpack.c.b16 %v1439, %v1438
  %v1452 = vpack.c.b16 %v1441, %v1440
  %v1453 = vpack.c.b16 %v1443, %v1442
  %v1454 = vpack.c.b16 %v1445, %v1444
  %v1455 = vpack.c.b16 %v1447, %v1446
  %1464 = vmatprep.subr.bf16.mxu0 0
  %1465 = vmatpush1.bf16.msra.mxu0 %v1448
  %1466 = vmatprep.subr.bf16.mxu0 0
  %1467 = vmatpush1.bf16.msra.mxu0 %v1449
  %1468 = vmatprep.subr.bf16.mxu0 0
  %1469 = vmatpush1.bf16.msra.mxu0 %v1450
  %1470 = vmatprep.subr.bf16.mxu0 0
  %1471 = vmatpush1.bf16.msra.mxu0 %v1451
  %1472 = vmatprep.subr.bf16.mxu0 0
  %1473 = vmatpush1.bf16.msra.mxu0 %v1452
  %1474 = vmatprep.subr.bf16.mxu0 0
  %1475 = vmatpush1.bf16.msra.mxu0 %v1453
  %1476 = vmatprep.subr.bf16.mxu0 0
  %1477 = vmatpush1.bf16.msra.mxu0 %v1454
  %1478 = vmatprep.subr.bf16.mxu0 0
  %1479 = vmatpush1.bf16.msra.mxu0 %v1455
  %1480 = vmatprep.subr.bf16.mxu0 0
  %1481 = vmatpush1.bf16.msra.mxu0 0
  %1482 = vmatprep.subr.bf16.mxu0 0
  %1483 = vmatpush1.bf16.msra.mxu0 0
  %1484 = vmatprep.subr.bf16.mxu0 0
  %1485 = vmatpush1.bf16.msra.mxu0 0
  %1486 = vmatprep.subr.bf16.mxu0 0
  %1487 = vmatpush1.bf16.msra.mxu0 0
  %1488 = vmatprep.subr.bf16.mxu0 0
  %1489 = vmatpush1.bf16.msra.mxu0 0
  %1490 = vmatprep.subr.bf16.mxu0 0
  %1491 = vmatpush1.bf16.msra.mxu0 0
  %1492 = vmatprep.subr.bf16.mxu0 0
  %1493 = vmatpush1.bf16.msra.mxu0 0
  %1494 = vmatprep.subr.bf16.mxu0 0
  %1495 = vmatpush1.bf16.msra.mxu0 0
  %1496 = vmatprep.mubr.bf16.mxu0 0
  %1497 = vmatmul.mubr.bf16.gmra.mrb[0].mxu0 %v1395
  %v1498 = vpop.f32.mrb[0].mxu0
  %v1499 = vadd.f32 %v1415, %v1498
  %v1500 = vpop.f32.mrb[0].mxu0
  %v1501 = vpop.f32.mrb[0].mxu0
  %v1502 = vadd.f32 %v1415, %v1501
  %v1503 = vpop.f32.mrb[0].mxu0
  %1504 = vmatprep.mubr.bf16.mxu0 0
  %1505 = vmatmul.mubr.bf16.gmra.mrb[0].mxu0 %v1396
  %v1506 = vpop.f32.mrb[0].mxu0
  %v1507 = vadd.f32 %v1415, %v1506
  %v1508 = vpop.f32.mrb[0].mxu0
  %v1509 = vpop.f32.mrb[0].mxu0
  %v1510 = vadd.f32 %v1415, %v1509
  %v1511 = vpop.f32.mrb[0].mxu0
  %1512 = vmatprep.mubr.bf16.mxu0 0
  %1513 = vmatmul.mubr.bf16.gmra.mrb[0].mxu0 %v1397
  %v1514 = vpop.f32.mrb[0].mxu0
  %v1515 = vadd.f32 %v1415, %v1514
  %v1516 = vpop.f32.mrb[0].mxu0
  %v1517 = vpop.f32.mrb[0].mxu0
  %v1518 = vadd.f32 %v1415, %v1517
  %v1519 = vpop.f32.mrb[0].mxu0
  %1520 = vmatprep.mubr.bf16.mxu0 0
  %1521 = vmatmul.mubr.bf16.gmra.mrb[0].mxu0 %v1398
  %v1522 = vpop.f32.mrb[0].mxu0
  %v1523 = vadd.f32 %v1415, %v1522
  %v1524 = vpop.f32.mrb[0].mxu0
  %v1525 = vpop.f32.mrb[0].mxu0
  %v1526 = vadd.f32 %v1415, %v1525
  %v1527 = vpop.f32.mrb[0].mxu0
  %1528 = vdwg.mxu0
  %v1529 = vmax.f32 %v1499, 0.0
  %v1530 = vmax.f32 %v1502, 0.0
  %v1531 = vmax.f32 %v1507, 0.0
  %v1532 = vmax.f32 %v1510, 0.0
  %v1533 = vmax.f32 %v1515, 0.0
  %v1534 = vmax.f32 %v1518, 0.0
  %v1535 = vmax.f32 %v1523, 0.0
  %v1536 = vmax.f32 %v1526, 0.0
  %v1537 = vld [vmem:[%s1 + $0x310] sm:$0xf]
  %v1538 = vld [vmem:[%s1 + $0x318] sm:$0xf]
  %v1539 = vld [vmem:[%s1 + $0x320] sm:$0xf]
  %v1540 = vld [vmem:[%s1 + $0x328] sm:$0xf]
  %v1541 = vld [vmem:[%s1 + $0x330] sm:$0xf]
  %v1542 = vld [vmem:[%s1 + $0x338] sm:$0xf]
  %v1543 = vld [vmem:[%s1 + $0x340] sm:$0xf]
  %v1544 = vld [vmem:[%s1 + $0x348] sm:$0xf]
  %v1545 = vld [vmem:[%s1 + $0x350] sm:$0xf]
  %v1546 = vld [vmem:[%s1 + $0x358] sm:$0xf]
  %v1547 = vld [vmem:[%s1 + $0x360] sm:$0xf]
  %v1548 = vld [vmem:[%s1 + $0x368] sm:$0xf]
  %v1549 = vld [vmem:[%s1 + $0x370] sm:$0xf]
  %v1550 = vld [vmem:[%s1 + $0x378] sm:$0xf]
  %v1551 = vld [vmem:[%s1 + $0x380] sm:$0xf]
  %v1552 = vld [vmem:[%s1 + $0x388] sm:$0xf]
  %v1553 = vld [vmem:[%s2 + $0x13] ss:$0 sm:$0xff]
  %v1554 = vpack.c.bf16 %v1530, %v1529
  %v1555 = vpack.c.bf16 %v1532, %v1531
  %v1556 = vpack.c.bf16 %v1534, %v1533
  %v1557 = vpack.c.bf16 %v1536, %v1535
  %v1574 = vunpack.c.l.b16 %v1537
  %v1575 = vunpack.c.l.b16 %v1538
  %v1576 = vunpack.c.l.b16 %v1539
  %v1577 = vunpack.c.l.b16 %v1540
  %v1578 = vunpack.c.l.b16 %v1541
  %v1579 = vunpack.c.l.b16 %v1542
  %v1580 = vunpack.c.l.b16 %v1543
  %v1581 = vunpack.c.l.b16 %v1544
  %v1582 = vunpack.c.l.b16 %v1545
  %v1583 = vunpack.c.l.b16 %v1546
  %v1584 = vunpack.c.l.b16 %v1547
  %v1585 = vunpack.c.l.b16 %v1548
  %v1586 = vunpack.c.l.b16 %v1549
  %v1587 = vunpack.c.l.b16 %v1550
  %v1588 = vunpack.c.l.b16 %v1551
  %v1589 = vunpack.c.l.b16 %v1552
  %v1590 = vpack.c.b16 %v1575, %v1574
  %v1591 = vpack.c.b16 %v1577, %v1576
  %v1592 = vpack.c.b16 %v1579, %v1578
  %v1593 = vpack.c.b16 %v1581, %v1580
  %v1594 = vpack.c.b16 %v1583, %v1582
  %v1595 = vpack.c.b16 %v1585, %v1584
  %v1596 = vpack.c.b16 %v1587, %v1586
  %v1597 = vpack.c.b16 %v1589, %v1588
  %1606 = vmatprep.subr.bf16.mxu0 0
  %1607 = vmatpush1.bf16.msra.mxu0 %v1590
  %1608 = vmatprep.subr.bf16.mxu0 0
  %1609 = vmatpush1.bf16.msra.mxu0 %v1591
  %1610 = vmatprep.subr.bf16.mxu0 0
  %1611 = vmatpush1.bf16.msra.mxu0 %v1592
  %1612 = vmatprep.subr.bf16.mxu0 0
  %1613 = vmatpush1.bf16.msra.mxu0 %v1593
  %1614 = vmatprep.subr.bf16.mxu0 0
  %1615 = vmatpush1.bf16.msra.mxu0 %v1594
  %1616 = vmatprep.subr.bf16.mxu0 0
  %1617 = vmatpush1.bf16.msra.mxu0 %v1595
  %1618 = vmatprep.subr.bf16.mxu0 0
  %1619 = vmatpush1.bf16.msra.mxu0 %v1596
  %1620 = vmatprep.subr.bf16.mxu0 0
  %1621 = vmatpush1.bf16.msra.mxu0 %v1597
  %1622 = vmatprep.subr.bf16.mxu0 0
  %1623 = vmatpush1.bf16.msra.mxu0 0
  %1624 = vmatprep.subr.bf16.mxu0 0
  %1625 = vmatpush1.bf16.msra.mxu0 0
  %1626 = vmatprep.subr.bf16.mxu0 0
  %1627 = vmatpush1.bf16.msra.mxu0 0
  %1628 = vmatprep.subr.bf16.mxu0 0
  %1629 = vmatpush1.bf16.msra.mxu0 0
  %1630 = vmatprep.subr.bf16.mxu0 0
  %1631 = vmatpush1.bf16.msra.mxu0 0
  %1632 = vmatprep.subr.bf16.mxu0 0
  %1633 = vmatpush1.bf16.msra.mxu0 0
  %1634 = vmatprep.subr.bf16.mxu0 0
  %1635 = vmatpush1.bf16.msra.mxu0 0
  %1636 = vmatprep.subr.bf16.mxu0 0
  %1637 = vmatpush1.bf16.msra.mxu0 0
  %1638 = vmatprep.mubr.bf16.mxu0 0
  %1639 = vmatmul.mubr.bf16.gmra.mrb[0].mxu0 %v1554
  %v1640 = vpop.f32.mrb[0].mxu0
  %v1641 = vadd.f32 %v1553, %v1640
  %v1642 = vpop.f32.mrb[0].mxu0
  %v1643 = vpop.f32.mrb[0].mxu0
  %v1644 = vadd.f32 %v1553, %v1643
  %v1645 = vpop.f32.mrb[0].mxu0
  %1646 = vmatprep.mubr.bf16.mxu0 0
  %1647 = vmatmul.mubr.bf16.gmra.mrb[0].mxu0 %v1555
  %v1648 = vpop.f32.mrb[0].mxu0
  %v1649 = vadd.f32 %v1553, %v1648
  %v1650 = vpop.f32.mrb[0].mxu0
  %v1651 = vpop.f32.mrb[0].mxu0
  %v1652 = vadd.f32 %v1553, %v1651
  %v1653 = vpop.f32.mrb[0].mxu0
  %1654 = vmatprep.mubr.bf16.mxu0 0
  %1655 = vmatmul.mubr.bf16.gmra.mrb[0].mxu0 %v1556
  %v1656 = vpop.f32.mrb[0].mxu0
  %v1657 = vadd.f32 %v1553, %v1656
  %v1658 = vpop.f32.mrb[0].mxu0
  %v1659 = vpop.f32.mrb[0].mxu0
  %v1660 = vadd.f32 %v1553, %v1659
  %v1661 = vpop.f32.mrb[0].mxu0
  %1662 = vmatprep.mubr.bf16.mxu0 0
  %1663 = vmatmul.mubr.bf16.gmra.mrb[0].mxu0 %v1557
  %v1664 = vpop.f32.mrb[0].mxu0
  %v1665 = vadd.f32 %v1553, %v1664
  %v1666 = vpop.f32.mrb[0].mxu0
  %v1667 = vpop.f32.mrb[0].mxu0
  %v1668 = vadd.f32 %v1553, %v1667
  %v1669 = vpop.f32.mrb[0].mxu0
  %1670 = vdwg.mxu0
  %v1671 = vadd.f32 %v1641, %v1387
  %v1672 = vadd.f32 %v1644, %v1388
  %v1673 = vadd.f32 %v1649, %v1389
  %v1674 = vadd.f32 %v1652, %v1390
  %v1675 = vadd.f32 %v1657, %v1391
  %v1676 = vadd.f32 %v1660, %v1392
  %v1677 = vadd.f32 %v1665, %v1393
  %v1678 = vadd.f32 %v1668, %v1394
  %v1679 = vmax.f32 %v1671, 0.0
  %v1680 = vmax.f32 %v1672, 0.0
  %v1681 = vmax.f32 %v1673, 0.0
  %v1682 = vmax.f32 %v1674, 0.0
  %v1683 = vmax.f32 %v1675, 0.0
  %v1684 = vmax.f32 %v1676, 0.0
  %v1685 = vmax.f32 %v1677, 0.0
  %v1686 = vmax.f32 %v1678, 0.0
  %v1687 = vld [vmem:[%s1 + $0x390] sm:$0xf]
  %v1688 = vld [vmem:[%s1 + $0x398] sm:$0xf]
  %v1689 = vld [vmem:[%s1 + $0x3a0] sm:$0xf]
  %v1690 = vld [vmem:[%s1 + $0x3a8] sm:$0xf]
  %v1691 = vld [vmem:[%s1 + $0x3b0] sm:$0xf]
  %v1692 = vld [vmem:[%s1 + $0x3b8] sm:$0xf]
  %v1693 = vld [vmem:[%s1 + $0x3c0] sm:$0xf]
  %v1694 = vld [vmem:[%s1 + $0x3c8] sm:$0xf]
  %v1695 = vld [vmem:[%s1 + $0x3d0] sm:$0xf]
  %v1696 = vld [vmem:[%s1 + $0x3d8] sm:$0xf]
  %v1697 = vld [vmem:[%s1 + $0x3e0] sm:$0xf]
  %v1698 = vld [vmem:[%s1 + $0x3e8] sm:$0xf]
  %v1699 = vld [vmem:[%s1 + $0x3f0] sm:$0xf]
  %v1700 = vld [vmem:[%s1 + $0x3f8] sm:$0xf]
  %v1701 = vld [vmem:[%s1 + $0x400] sm:$0xf]
  %v1702 = vld [vmem:[%s1 + $0x408] sm:$0xf]
  %v1703 = vld [vmem:[%s2 + $0x14] ss:$0 sm:$0xff]
  %v1704 = vpack.c.bf16 %v1680, %v1679
  %v1705 = vpack.c.bf16 %v1682, %v1681
  %v1706 = vpack.c.bf16 %v1684, %v1683
  %v1707 = vpack.c.bf16 %v1686, %v1685
  %v1724 = vunpack.c.l.b16 %v1687
  %v1725 = vunpack.c.l.b16 %v1688
  %v1726 = vunpack.c.l.b16 %v1689
  %v1727 = vunpack.c.l.b16 %v1690
  %v1728 = vunpack.c.l.b16 %v1691
  %v1729 = vunpack.c.l.b16 %v1692
  %v1730 = vunpack.c.l.b16 %v1693
  %v1731 = vunpack.c.l.b16 %v1694
  %v1732 = vunpack.c.l.b16 %v1695
  %v1733 = vunpack.c.l.b16 %v1696
  %v1734 = vunpack.c.l.b16 %v1697
  %v1735 = vunpack.c.l.b16 %v1698
  %v1736 = vunpack.c.l.b16 %v1699
  %v1737 = vunpack.c.l.b16 %v1700
  %v1738 = vunpack.c.l.b16 %v1701
  %v1739 = vunpack.c.l.b16 %v1702
  %v1740 = vpack.c.b16 %v1725, %v1724
  %v1741 = vpack.c.b16 %v1727, %v1726
  %v1742 = vpack.c.b16 %v1729, %v1728
  %v1743 = vpack.c.b16 %v1731, %v1730
  %v1744 = vpack.c.b16 %v1733, %v1732
  %v1745 = vpack.c.b16 %v1735, %v1734
  %v1746 = vpack.c.b16 %v1737, %v1736
  %v1747 = vpack.c.b16 %v1739, %v1738
  %1756 = vmatprep.subr.bf16.mxu0 0
  %1757 = vmatpush1.bf16.msra.mxu0 %v1740
  %1758 = vmatprep.subr.bf16.mxu0 0
  %1759 = vmatpush1.bf16.msra.mxu0 %v1741
  %1760 = vmatprep.subr.bf16.mxu0 0
  %1761 = vmatpush1.bf16.msra.mxu0 %v1742
  %1762 = vmatprep.subr.bf16.mxu0 0
  %1763 = vmatpush1.bf16.msra.mxu0 %v1743
  %1764 = vmatprep.subr.bf16.mxu0 0
  %1765 = vmatpush1.bf16.msra.mxu0 %v1744
  %1766 = vmatprep.subr.bf16.mxu0 0
  %1767 = vmatpush1.bf16.msra.mxu0 %v1745
  %1768 = vmatprep.subr.bf16.mxu0 0
  %1769 = vmatpush1.bf16.msra.mxu0 %v1746
  %1770 = vmatprep.subr.bf16.mxu0 0
  %1771 = vmatpush1.bf16.msra.mxu0 %v1747
  %1772 = vmatprep.subr.bf16.mxu0 0
  %1773 = vmatpush1.bf16.msra.mxu0 0
  %1774 = vmatprep.subr.bf16.mxu0 0
  %1775 = vmatpush1.bf16.msra.mxu0 0
  %1776 = vmatprep.subr.bf16.mxu0 0
  %1777 = vmatpush1.bf16.msra.mxu0 0
  %1778 = vmatprep.subr.bf16.mxu0 0
  %1779 = vmatpush1.bf16.msra.mxu0 0
  %1780 = vmatprep.subr.bf16.mxu0 0
  %1781 = vmatpush1.bf16.msra.mxu0 0
  %1782 = vmatprep.subr.bf16.mxu0 0
  %1783 = vmatpush1.bf16.msra.mxu0 0
  %1784 = vmatprep.subr.bf16.mxu0 0
  %1785 = vmatpush1.bf16.msra.mxu0 0
  %1786 = vmatprep.subr.bf16.mxu0 0
  %1787 = vmatpush1.bf16.msra.mxu0 0
  %1788 = vmatprep.mubr.bf16.mxu0 0
  %1789 = vmatmul.mubr.bf16.gmra.mrb[0].mxu0 %v1704
  %v1790 = vpop.f32.mrb[0].mxu0
  %v1791 = vadd.f32 %v1703, %v1790
  %v1792 = vpop.f32.mrb[0].mxu0
  %v1793 = vpop.f32.mrb[0].mxu0
  %v1794 = vadd.f32 %v1703, %v1793
  %v1795 = vpop.f32.mrb[0].mxu0
  %1796 = vmatprep.mubr.bf16.mxu0 0
  %1797 = vmatmul.mubr.bf16.gmra.mrb[0].mxu0 %v1705
  %v1798 = vpop.f32.mrb[0].mxu0
  %v1799 = vadd.f32 %v1703, %v1798
  %v1800 = vpop.f32.mrb[0].mxu0
  %v1801 = vpop.f32.mrb[0].mxu0
  %v1802 = vadd.f32 %v1703, %v1801
  %v1803 = vpop.f32.mrb[0].mxu0
  %1804 = vmatprep.mubr.bf16.mxu0 0
  %1805 = vmatmul.mubr.bf16.gmra.mrb[0].mxu0 %v1706
  %v1806 = vpop.f32.mrb[0].mxu0
  %v1807 = vadd.f32 %v1703, %v1806
  %v1808 = vpop.f32.mrb[0].mxu0
  %v1809 = vpop.f32.mrb[0].mxu0
  %v1810 = vadd.f32 %v1703, %v1809
  %v1811 = vpop.f32.mrb[0].mxu0
  %1812 = vmatprep.mubr.bf16.mxu0 0
  %1813 = vmatmul.mubr.bf16.gmra.mrb[0].mxu0 %v1707
  %v1814 = vpop.f32.mrb[0].mxu0
  %v1815 = vadd.f32 %v1703, %v1814
  %v1816 = vpop.f32.mrb[0].mxu0
  %v1817 = vpop.f32.mrb[0].mxu0
  %v1818 = vadd.f32 %v1703, %v1817
  %v1819 = vpop.f32.mrb[0].mxu0
  %1820 = vdwg.mxu0
  %v1821 = vrcp.pop 10.0
  %v1822 = vmul.f32 %v1791, %v1821
  %v1823 = vmul.f32 %v1794, %v1821
  %v1824 = vmul.f32 %v1799, %v1821
  %v1825 = vmul.f32 %v1802, %v1821
  %v1826 = vmul.f32 %v1807, %v1821
  %v1827 = vmul.f32 %v1810, %v1821
  %v1828 = vmul.f32 %v1815, %v1821
  %v1829 = vmul.f32 %v1818, %v1821
  %v1830 = vlaneseq
  %v1831 = vshrl.u32 %v1830, 7
  %v1832 = vadd.s32 %v1831, 8
  %v1833 = vadd.s32 %v1831, 16
  %v1834 = vadd.s32 %v1831, 24
  %v1835 = vadd.s32 %v1831, 32
  %v1836 = vadd.s32 %v1831, 40
  %v1837 = vadd.s32 %v1831, 48
  %v1838 = vadd.s32 %v1831, 56
  %vm1839 = vcmp.lt.s32.totalorder %v1831, 32
  %vm1840 = vcmp.lt.s32.totalorder %v1832, 32
  %vm1841 = vcmp.lt.s32.totalorder %v1833, 32
  %vm1842 = vcmp.lt.s32.totalorder %v1834, 32
  %vm1843 = vcmp.lt.s32.totalorder %v1835, 32
  %vm1844 = vcmp.lt.s32.totalorder %v1836, 32
  %vm1845 = vcmp.lt.s32.totalorder %v1837, 32
  %vm1846 = vcmp.lt.s32.totalorder %v1838, 32
  %v1847 = vsel %vm1839, 1.0, -1.0
  %v1848 = vsel %vm1840, 1.0, -1.0
  %v1849 = vsel %vm1841, 1.0, -1.0
  %v1850 = vsel %vm1842, 1.0, -1.0
  %v1851 = vsel %vm1843, 1.0, -1.0
  %v1852 = vsel %vm1844, 1.0, -1.0
  %v1853 = vsel %vm1845, 1.0, -1.0
  %v1854 = vsel %vm1846, 1.0, -1.0
  %v1855 = vand.u32 2147483647, %v1822
  %v1856 = vand.u32 2147483647, %v1823
  %v1857 = vand.u32 2147483647, %v1824
  %v1858 = vand.u32 2147483647, %v1825
  %v1859 = vand.u32 2147483647, %v1826
  %v1860 = vand.u32 2147483647, %v1827
  %v1861 = vand.u32 2147483647, %v1828
  %v1862 = vand.u32 2147483647, %v1829
  %v1863 = vmul.f32 %v1847, %v1855
  %v1864 = vmul.f32 %v1848, %v1856
  %v1865 = vmul.f32 %v1849, %v1857
  %v1866 = vmul.f32 %v1850, %v1858
  %v1867 = vmul.f32 %v1851, %v1859
  %v1868 = vmul.f32 %v1852, %v1860
  %v1869 = vmul.f32 %v1853, %v1861
  %v1870 = vmul.f32 %v1854, %v1862
  %v1871 = vadd.f32 %v1822, %v1863
  %v1872 = vadd.f32 %v1823, %v1864
  %v1873 = vadd.f32 %v1824, %v1865
  %v1874 = vadd.f32 %v1825, %v1866
  %v1875 = vadd.f32 %v1826, %v1867
  %v1876 = vadd.f32 %v1827, %v1868
  %v1877 = vadd.f32 %v1828, %v1869
  %v1878 = vadd.f32 %v1829, %v1870
  %v1879 = vmul.f32 %v1791, %v1791
  %v1880 = vmul.f32 %v1794, %v1794
  %v1881 = vmul.f32 %v1799, %v1799
  %v1882 = vmul.f32 %v1802, %v1802
  %v1883 = vmul.f32 %v1807, %v1807
  %v1884 = vmul.f32 %v1810, %v1810
  %v1885 = vmul.f32 %v1815, %v1815
  %v1886 = vmul.f32 %v1818, %v1818
  %1895 = vrot.lane.b32.xlu0 %v1879, 112
  %v1896 = vpop.permute.xlu0 %1895
  %1897 = vrot.lane.b32.xlu0 %v1880, 112
  %v1898 = vpop.permute.xlu0 %1897
  %1899 = vrot.lane.b32.xlu0 %v1881, 112
  %v1900 = vpop.permute.xlu0 %1899
  %1901 = vrot.lane.b32.xlu0 %v1882, 112
  %v1902 = vpop.permute.xlu0 %1901
  %1903 = vrot.lane.b32.xlu0 %v1883, 112
  %v1904 = vpop.permute.xlu0 %1903
  %1905 = vrot.lane.b32.xlu0 %v1884, 112
  %v1906 = vpop.permute.xlu0 %1905
  %1907 = vrot.lane.b32.xlu0 %v1885, 112
  %v1908 = vpop.permute.xlu0 %1907
  %1909 = vrot.lane.b32.xlu0 %v1886, 112
  %v1910 = vpop.permute.xlu0 %1909
  %vm1919 = vcmask 130048
  %v1920 = vsel %vm1919, %v1896, 0.0
  %1921 = vadd.xlane.f32.xlu0 %v1920
  %v1922 = vpop.xlane.xlu0 %1921
  %v1923 = vsel %vm1919, %v1898, 0.0
  %1924 = vadd.xlane.f32.xlu0 %v1923
  %v1925 = vpop.xlane.xlu0 %1924
  %v1926 = vsel %vm1919, %v1900, 0.0
  %1927 = vadd.xlane.f32.xlu0 %v1926
  %v1928 = vpop.xlane.xlu0 %1927
  %v1929 = vsel %vm1919, %v1902, 0.0
  %1930 = vadd.xlane.f32.xlu0 %v1929
  %v1931 = vpop.xlane.xlu0 %1930
  %v1932 = vsel %vm1919, %v1904, 0.0
  %1933 = vadd.xlane.f32.xlu0 %v1932
  %v1934 = vpop.xlane.xlu0 %1933
  %v1935 = vsel %vm1919, %v1906, 0.0
  %1936 = vadd.xlane.f32.xlu0 %v1935
  %v1937 = vpop.xlane.xlu0 %1936
  %v1938 = vsel %vm1919, %v1908, 0.0
  %1939 = vadd.xlane.f32.xlu0 %v1938
  %v1940 = vpop.xlane.xlu0 %1939
  %v1941 = vsel %vm1919, %v1910, 0.0
  %1942 = vadd.xlane.f32.xlu0 %v1941
  %v1943 = vpop.xlane.xlu0 %1942
  %1952 = vrot.lane.b32.xlu0 %v1791, 112
  %v1953 = vpop.permute.xlu0 %1952
  %1954 = vrot.lane.b32.xlu0 %v1794, 112
  %v1955 = vpop.permute.xlu0 %1954
  %1956 = vrot.lane.b32.xlu0 %v1799, 112
  %v1957 = vpop.permute.xlu0 %1956
  %1958 = vrot.lane.b32.xlu0 %v1802, 112
  %v1959 = vpop.permute.xlu0 %1958
  %1960 = vrot.lane.b32.xlu0 %v1807, 112
  %v1961 = vpop.permute.xlu0 %1960
  %1962 = vrot.lane.b32.xlu0 %v1810, 112
  %v1963 = vpop.permute.xlu0 %1962
  %1964 = vrot.lane.b32.xlu0 %v1815, 112
  %v1965 = vpop.permute.xlu0 %1964
  %1966 = vrot.lane.b32.xlu0 %v1818, 112
  %v1967 = vpop.permute.xlu0 %1966
  %v1976 = vmul.f32 %v1791, %v1953
  %v1977 = vmul.f32 %v1794, %v1955
  %v1978 = vmul.f32 %v1799, %v1957
  %v1979 = vmul.f32 %v1802, %v1959
  %v1980 = vmul.f32 %v1807, %v1961
  %v1981 = vmul.f32 %v1810, %v1963
  %v1982 = vmul.f32 %v1815, %v1965
  %v1983 = vmul.f32 %v1818, %v1967
  %1992 = vrot.lane.b32.xlu0 %v1976, 112
  %v1993 = vpop.permute.xlu0 %1992
  %1994 = vrot.lane.b32.xlu0 %v1977, 112
  %v1995 = vpop.permute.xlu0 %1994
  %1996 = vrot.lane.b32.xlu0 %v1978, 112
  %v1997 = vpop.permute.xlu0 %1996
  %1998 = vrot.lane.b32.xlu0 %v1979, 112
  %v1999 = vpop.permute.xlu0 %1998
  %2000 = vrot.lane.b32.xlu0 %v1980, 112
  %v2001 = vpop.permute.xlu0 %2000
  %2002 = vrot.lane.b32.xlu0 %v1981, 112
  %v2003 = vpop.permute.xlu0 %2002
  %2004 = vrot.lane.b32.xlu0 %v1982, 112
  %v2005 = vpop.permute.xlu0 %2004
  %2006 = vrot.lane.b32.xlu0 %v1983, 112
  %v2007 = vpop.permute.xlu0 %2006
  %v2016 = vsel %vm1919, %v1993, 0.0
  %2017 = vadd.xlane.f32.xlu0 %v2016
  %v2018 = vpop.xlane.xlu0 %2017
  %v2019 = vsel %vm1919, %v1995, 0.0
  %2020 = vadd.xlane.f32.xlu0 %v2019
  %v2021 = vpop.xlane.xlu0 %2020
  %v2022 = vsel %vm1919, %v1997, 0.0
  %2023 = vadd.xlane.f32.xlu0 %v2022
  %v2024 = vpop.xlane.xlu0 %2023
  %v2025 = vsel %vm1919, %v1999, 0.0
  %2026 = vadd.xlane.f32.xlu0 %v2025
  %v2027 = vpop.xlane.xlu0 %2026
  %v2028 = vsel %vm1919, %v2001, 0.0
  %2029 = vadd.xlane.f32.xlu0 %v2028
  %v2030 = vpop.xlane.xlu0 %2029
  %v2031 = vsel %vm1919, %v2003, 0.0
  %2032 = vadd.xlane.f32.xlu0 %v2031
  %v2033 = vpop.xlane.xlu0 %2032
  %v2034 = vsel %vm1919, %v2005, 0.0
  %2035 = vadd.xlane.f32.xlu0 %v2034
  %v2036 = vpop.xlane.xlu0 %2035
  %v2037 = vsel %vm1919, %v2007, 0.0
  %2038 = vadd.xlane.f32.xlu0 %v2037
  %v2039 = vpop.xlane.xlu0 %2038
  %2040 = vrot.lane.b32.xlu0 %v1791, 96
  %v2041 = vpop.permute.xlu0 %2040
  %2042 = vrot.lane.b32.xlu0 %v1794, 96
  %v2043 = vpop.permute.xlu0 %2042
  %2044 = vrot.lane.b32.xlu0 %v1799, 96
  %v2045 = vpop.permute.xlu0 %2044
  %2046 = vrot.lane.b32.xlu0 %v1802, 96
  %v2047 = vpop.permute.xlu0 %2046
  %2048 = vrot.lane.b32.xlu0 %v1807, 96
  %v2049 = vpop.permute.xlu0 %2048
  %2050 = vrot.lane.b32.xlu0 %v1810, 96
  %v2051 = vpop.permute.xlu0 %2050
  %2052 = vrot.lane.b32.xlu0 %v1815, 96
  %v2053 = vpop.permute.xlu0 %2052
  %2054 = vrot.lane.b32.xlu0 %v1818, 96
  %v2055 = vpop.permute.xlu0 %2054
  %v2064 = vmul.f32 %v1791, %v2041
  %v2065 = vmul.f32 %v1794, %v2043
  %v2066 = vmul.f32 %v1799, %v2045
  %v2067 = vmul.f32 %v1802, %v2047
  %v2068 = vmul.f32 %v1807, %v2049
  %v2069 = vmul.f32 %v1810, %v2051
  %v2070 = vmul.f32 %v1815, %v2053
  %v2071 = vmul.f32 %v1818, %v2055
  %2080 = vrot.lane.b32.xlu0 %v2064, 112
  %v2081 = vpop.permute.xlu0 %2080
  %2082 = vrot.lane.b32.xlu0 %v2065, 112
  %v2083 = vpop.permute.xlu0 %2082
  %2084 = vrot.lane.b32.xlu0 %v2066, 112
  %v2085 = vpop.permute.xlu0 %2084
  %2086 = vrot.lane.b32.xlu0 %v2067, 112
  %v2087 = vpop.permute.xlu0 %2086
  %2088 = vrot.lane.b32.xlu0 %v2068, 112
  %v2089 = vpop.permute.xlu0 %2088
  %2090 = vrot.lane.b32.xlu0 %v2069, 112
  %v2091 = vpop.permute.xlu0 %2090
  %2092 = vrot.lane.b32.xlu0 %v2070, 112
  %v2093 = vpop.permute.xlu0 %2092
  %2094 = vrot.lane.b32.xlu0 %v2071, 112
  %v2095 = vpop.permute.xlu0 %2094
  %v2104 = vsel %vm1919, %v2081, 0.0
  %2105 = vadd.xlane.f32.xlu0 %v2104
  %v2106 = vpop.xlane.xlu0 %2105
  %v2107 = vsel %vm1919, %v2083, 0.0
  %2108 = vadd.xlane.f32.xlu0 %v2107
  %v2109 = vpop.xlane.xlu0 %2108
  %v2110 = vsel %vm1919, %v2085, 0.0
  %2111 = vadd.xlane.f32.xlu0 %v2110
  %v2112 = vpop.xlane.xlu0 %2111
  %v2113 = vsel %vm1919, %v2087, 0.0
  %2114 = vadd.xlane.f32.xlu0 %v2113
  %v2115 = vpop.xlane.xlu0 %2114
  %v2116 = vsel %vm1919, %v2089, 0.0
  %2117 = vadd.xlane.f32.xlu0 %v2116
  %v2118 = vpop.xlane.xlu0 %2117
  %v2119 = vsel %vm1919, %v2091, 0.0
  %2120 = vadd.xlane.f32.xlu0 %v2119
  %v2121 = vpop.xlane.xlu0 %2120
  %v2122 = vsel %vm1919, %v2093, 0.0
  %2123 = vadd.xlane.f32.xlu0 %v2122
  %v2124 = vpop.xlane.xlu0 %2123
  %v2125 = vsel %vm1919, %v2095, 0.0
  %2126 = vadd.xlane.f32.xlu0 %v2125
  %v2127 = vpop.xlane.xlu0 %2126
  %2128 = vrot.lane.b32.xlu0 %v1879, 96
  %v2129 = vpop.permute.xlu0 %2128
  %2130 = vrot.lane.b32.xlu0 %v1880, 96
  %v2131 = vpop.permute.xlu0 %2130
  %2132 = vrot.lane.b32.xlu0 %v1881, 96
  %v2133 = vpop.permute.xlu0 %2132
  %2134 = vrot.lane.b32.xlu0 %v1882, 96
  %v2135 = vpop.permute.xlu0 %2134
  %2136 = vrot.lane.b32.xlu0 %v1883, 96
  %v2137 = vpop.permute.xlu0 %2136
  %2138 = vrot.lane.b32.xlu0 %v1884, 96
  %v2139 = vpop.permute.xlu0 %2138
  %2140 = vrot.lane.b32.xlu0 %v1885, 96
  %v2141 = vpop.permute.xlu0 %2140
  %2142 = vrot.lane.b32.xlu0 %v1886, 96
  %v2143 = vpop.permute.xlu0 %2142
  %v2152 = vsel %vm1919, %v2129, 0.0
  %2153 = vadd.xlane.f32.xlu0 %v2152
  %v2154 = vpop.xlane.xlu0 %2153
  %v2155 = vsel %vm1919, %v2131, 0.0
  %2156 = vadd.xlane.f32.xlu0 %v2155
  %v2157 = vpop.xlane.xlu0 %2156
  %v2158 = vsel %vm1919, %v2133, 0.0
  %2159 = vadd.xlane.f32.xlu0 %v2158
  %v2160 = vpop.xlane.xlu0 %2159
  %v2161 = vsel %vm1919, %v2135, 0.0
  %2162 = vadd.xlane.f32.xlu0 %v2161
  %v2163 = vpop.xlane.xlu0 %2162
  %v2164 = vsel %vm1919, %v2137, 0.0
  %2165 = vadd.xlane.f32.xlu0 %v2164
  %v2166 = vpop.xlane.xlu0 %2165
  %v2167 = vsel %vm1919, %v2139, 0.0
  %2168 = vadd.xlane.f32.xlu0 %v2167
  %v2169 = vpop.xlane.xlu0 %2168
  %v2170 = vsel %vm1919, %v2141, 0.0
  %2171 = vadd.xlane.f32.xlu0 %v2170
  %v2172 = vpop.xlane.xlu0 %2171
  %v2173 = vsel %vm1919, %v2143, 0.0
  %2174 = vadd.xlane.f32.xlu0 %v2173
  %v2175 = vpop.xlane.xlu0 %2174
  %2176 = vrot.lane.b32.xlu0 %v1976, 96
  %v2177 = vpop.permute.xlu0 %2176
  %2178 = vrot.lane.b32.xlu0 %v1977, 96
  %v2179 = vpop.permute.xlu0 %2178
  %2180 = vrot.lane.b32.xlu0 %v1978, 96
  %v2181 = vpop.permute.xlu0 %2180
  %2182 = vrot.lane.b32.xlu0 %v1979, 96
  %v2183 = vpop.permute.xlu0 %2182
  %2184 = vrot.lane.b32.xlu0 %v1980, 96
  %v2185 = vpop.permute.xlu0 %2184
  %2186 = vrot.lane.b32.xlu0 %v1981, 96
  %v2187 = vpop.permute.xlu0 %2186
  %2188 = vrot.lane.b32.xlu0 %v1982, 96
  %v2189 = vpop.permute.xlu0 %2188
  %2190 = vrot.lane.b32.xlu0 %v1983, 96
  %v2191 = vpop.permute.xlu0 %2190
  %v2200 = vsel %vm1919, %v2177, 0.0
  %2201 = vadd.xlane.f32.xlu0 %v2200
  %v2202 = vpop.xlane.xlu0 %2201
  %v2203 = vsel %vm1919, %v2179, 0.0
  %2204 = vadd.xlane.f32.xlu0 %v2203
  %v2205 = vpop.xlane.xlu0 %2204
  %v2206 = vsel %vm1919, %v2181, 0.0
  %2207 = vadd.xlane.f32.xlu0 %v2206
  %v2208 = vpop.xlane.xlu0 %2207
  %v2209 = vsel %vm1919, %v2183, 0.0
  %2210 = vadd.xlane.f32.xlu0 %v2209
  %v2211 = vpop.xlane.xlu0 %2210
  %v2212 = vsel %vm1919, %v2185, 0.0
  %2213 = vadd.xlane.f32.xlu0 %v2212
  %v2214 = vpop.xlane.xlu0 %2213
  %v2215 = vsel %vm1919, %v2187, 0.0
  %2216 = vadd.xlane.f32.xlu0 %v2215
  %v2217 = vpop.xlane.xlu0 %2216
  %v2218 = vsel %vm1919, %v2189, 0.0
  %2219 = vadd.xlane.f32.xlu0 %v2218
  %v2220 = vpop.xlane.xlu0 %2219
  %v2221 = vsel %vm1919, %v2191, 0.0
  %2222 = vadd.xlane.f32.xlu0 %v2221
  %v2223 = vpop.xlane.xlu0 %2222
  %2224 = vrot.lane.b32.xlu0 %v1879, 80
  %v2225 = vpop.permute.xlu0 %2224
  %2226 = vrot.lane.b32.xlu0 %v1880, 80
  %v2227 = vpop.permute.xlu0 %2226
  %2228 = vrot.lane.b32.xlu0 %v1881, 80
  %v2229 = vpop.permute.xlu0 %2228
  %2230 = vrot.lane.b32.xlu0 %v1882, 80
  %v2231 = vpop.permute.xlu0 %2230
  %2232 = vrot.lane.b32.xlu0 %v1883, 80
  %v2233 = vpop.permute.xlu0 %2232
  %2234 = vrot.lane.b32.xlu0 %v1884, 80
  %v2235 = vpop.permute.xlu0 %2234
  %2236 = vrot.lane.b32.xlu0 %v1885, 80
  %v2237 = vpop.permute.xlu0 %2236
  %2238 = vrot.lane.b32.xlu0 %v1886, 80
  %v2239 = vpop.permute.xlu0 %2238
  %v2248 = vsel %vm1919, %v2225, 0.0
  %2249 = vadd.xlane.f32.xlu0 %v2248
  %v2250 = vpop.xlane.xlu0 %2249
  %v2251 = vsel %vm1919, %v2227, 0.0
  %2252 = vadd.xlane.f32.xlu0 %v2251
  %v2253 = vpop.xlane.xlu0 %2252
  %v2254 = vsel %vm1919, %v2229, 0.0
  %2255 = vadd.xlane.f32.xlu0 %v2254
  %v2256 = vpop.xlane.xlu0 %2255
  %v2257 = vsel %vm1919, %v2231, 0.0
  %2258 = vadd.xlane.f32.xlu0 %v2257
  %v2259 = vpop.xlane.xlu0 %2258
  %v2260 = vsel %vm1919, %v2233, 0.0
  %2261 = vadd.xlane.f32.xlu0 %v2260
  %v2262 = vpop.xlane.xlu0 %2261
  %v2263 = vsel %vm1919, %v2235, 0.0
  %2264 = vadd.xlane.f32.xlu0 %v2263
  %v2265 = vpop.xlane.xlu0 %2264
  %v2266 = vsel %vm1919, %v2237, 0.0
  %2267 = vadd.xlane.f32.xlu0 %v2266
  %v2268 = vpop.xlane.xlu0 %2267
  %v2269 = vsel %vm1919, %v2239, 0.0
  %2270 = vadd.xlane.f32.xlu0 %v2269
  %v2271 = vpop.xlane.xlu0 %2270
  %v2272 = vmul.f32 %v2154, %v2250
  %v2273 = vmul.f32 %v2157, %v2253
  %v2274 = vmul.f32 %v2160, %v2256
  %v2275 = vmul.f32 %v2163, %v2259
  %v2276 = vmul.f32 %v2166, %v2262
  %v2277 = vmul.f32 %v2169, %v2265
  %v2278 = vmul.f32 %v2172, %v2268
  %v2279 = vmul.f32 %v2175, %v2271
  %v2280 = vmul.f32 %v2202, %v2202
  %v2281 = vmul.f32 %v2205, %v2205
  %v2282 = vmul.f32 %v2208, %v2208
  %v2283 = vmul.f32 %v2211, %v2211
  %v2284 = vmul.f32 %v2214, %v2214
  %v2285 = vmul.f32 %v2217, %v2217
  %v2286 = vmul.f32 %v2220, %v2220
  %v2287 = vmul.f32 %v2223, %v2223
  %v2288 = vsub.f32 %v2272, %v2280
  %v2289 = vsub.f32 %v2273, %v2281
  %v2290 = vsub.f32 %v2274, %v2282
  %v2291 = vsub.f32 %v2275, %v2283
  %v2292 = vsub.f32 %v2276, %v2284
  %v2293 = vsub.f32 %v2277, %v2285
  %v2294 = vsub.f32 %v2278, %v2286
  %v2295 = vsub.f32 %v2279, %v2287
  %v2296 = vmul.f32 %v1922, %v2288
  %v2297 = vmul.f32 %v1925, %v2289
  %v2298 = vmul.f32 %v1928, %v2290
  %v2299 = vmul.f32 %v1931, %v2291
  %v2300 = vmul.f32 %v1934, %v2292
  %v2301 = vmul.f32 %v1937, %v2293
  %v2302 = vmul.f32 %v1940, %v2294
  %v2303 = vmul.f32 %v1943, %v2295
  %v2304 = vmul.f32 %v2018, %v2250
  %v2305 = vmul.f32 %v2021, %v2253
  %v2306 = vmul.f32 %v2024, %v2256
  %v2307 = vmul.f32 %v2027, %v2259
  %v2308 = vmul.f32 %v2030, %v2262
  %v2309 = vmul.f32 %v2033, %v2265
  %v2310 = vmul.f32 %v2036, %v2268
  %v2311 = vmul.f32 %v2039, %v2271
  %v2312 = vmul.f32 %v2202, %v2106
  %v2313 = vmul.f32 %v2205, %v2109
  %v2314 = vmul.f32 %v2208, %v2112
  %v2315 = vmul.f32 %v2211, %v2115
  %v2316 = vmul.f32 %v2214, %v2118
  %v2317 = vmul.f32 %v2217, %v2121
  %v2318 = vmul.f32 %v2220, %v2124
  %v2319 = vmul.f32 %v2223, %v2127
  %v2320 = vsub.f32 %v2304, %v2312
  %v2321 = vsub.f32 %v2305, %v2313
  %v2322 = vsub.f32 %v2306, %v2314
  %v2323 = vsub.f32 %v2307, %v2315
  %v2324 = vsub.f32 %v2308, %v2316
  %v2325 = vsub.f32 %v2309, %v2317
  %v2326 = vsub.f32 %v2310, %v2318
  %v2327 = vsub.f32 %v2311, %v2319
  %v2328 = vmul.f32 %v2018, %v2320
  %v2329 = vmul.f32 %v2021, %v2321
  %v2330 = vmul.f32 %v2024, %v2322
  %v2331 = vmul.f32 %v2027, %v2323
  %v2332 = vmul.f32 %v2030, %v2324
  %v2333 = vmul.f32 %v2033, %v2325
  %v2334 = vmul.f32 %v2036, %v2326
  %v2335 = vmul.f32 %v2039, %v2327
  %v2336 = vsub.f32 %v2296, %v2328
  %v2337 = vsub.f32 %v2297, %v2329
  %v2338 = vsub.f32 %v2298, %v2330
  %v2339 = vsub.f32 %v2299, %v2331
  %v2340 = vsub.f32 %v2300, %v2332
  %v2341 = vsub.f32 %v2301, %v2333
  %v2342 = vsub.f32 %v2302, %v2334
  %v2343 = vsub.f32 %v2303, %v2335
  %v2344 = vmul.f32 %v2018, %v2202
  %v2345 = vmul.f32 %v2021, %v2205
  %v2346 = vmul.f32 %v2024, %v2208
  %v2347 = vmul.f32 %v2027, %v2211
  %v2348 = vmul.f32 %v2030, %v2214
  %v2349 = vmul.f32 %v2033, %v2217
  %v2350 = vmul.f32 %v2036, %v2220
  %v2351 = vmul.f32 %v2039, %v2223
  %v2352 = vmul.f32 %v2154, %v2106
  %v2353 = vmul.f32 %v2157, %v2109
  %v2354 = vmul.f32 %v2160, %v2112
  %v2355 = vmul.f32 %v2163, %v2115
  %v2356 = vmul.f32 %v2166, %v2118
  %v2357 = vmul.f32 %v2169, %v2121
  %v2358 = vmul.f32 %v2172, %v2124
  %v2359 = vmul.f32 %v2175, %v2127
  %v2360 = vsub.f32 %v2344, %v2352
  %v2361 = vsub.f32 %v2345, %v2353
  %v2362 = vsub.f32 %v2346, %v2354
  %v2363 = vsub.f32 %v2347, %v2355
  %v2364 = vsub.f32 %v2348, %v2356
  %v2365 = vsub.f32 %v2349, %v2357
  %v2366 = vsub.f32 %v2350, %v2358
  %v2367 = vsub.f32 %v2351, %v2359
  %v2368 = vmul.f32 %v2106, %v2360
  %v2369 = vmul.f32 %v2109, %v2361
  %v2370 = vmul.f32 %v2112, %v2362
  %v2371 = vmul.f32 %v2115, %v2363
  %v2372 = vmul.f32 %v2118, %v2364
  %v2373 = vmul.f32 %v2121, %v2365
  %v2374 = vmul.f32 %v2124, %v2366
  %v2375 = vmul.f32 %v2127, %v2367
  %v2376 = vadd.f32 %v2336, %v2368
  %v2377 = vadd.f32 %v2337, %v2369
  %v2378 = vadd.f32 %v2338, %v2370
  %v2379 = vadd.f32 %v2339, %v2371
  %v2380 = vadd.f32 %v2340, %v2372
  %v2381 = vadd.f32 %v2341, %v2373
  %v2382 = vadd.f32 %v2342, %v2374
  %v2383 = vadd.f32 %v2343, %v2375
  %v2384 = vrcp.pop %v2376
  %v2385 = vmul.f32 1.0, %v2384
  %v2386 = vrcp.pop %v2377
  %v2387 = vmul.f32 1.0, %v2386
  %v2388 = vrcp.pop %v2378
  %v2389 = vmul.f32 1.0, %v2388
  %v2390 = vrcp.pop %v2379
  %v2391 = vmul.f32 1.0, %v2390
  %v2392 = vrcp.pop %v2380
  %v2393 = vmul.f32 1.0, %v2392
  %v2394 = vrcp.pop %v2381
  %v2395 = vmul.f32 1.0, %v2394
  %v2396 = vrcp.pop %v2382
  %v2397 = vmul.f32 1.0, %v2396
  %v2398 = vrcp.pop %v2383
  %v2399 = vmul.f32 1.0, %v2398
  %v2400 = vmul.f32 %v2288, %v2385
  %v2401 = vmul.f32 %v2289, %v2387
  %v2402 = vmul.f32 %v2290, %v2389
  %v2403 = vmul.f32 %v2291, %v2391
  %v2404 = vmul.f32 %v2292, %v2393
  %v2405 = vmul.f32 %v2293, %v2395
  %v2406 = vmul.f32 %v2294, %v2397
  %v2407 = vmul.f32 %v2295, %v2399
  %v2408 = vsub.f32 %v2312, %v2304
  %v2409 = vsub.f32 %v2313, %v2305
  %v2410 = vsub.f32 %v2314, %v2306
  %v2411 = vsub.f32 %v2315, %v2307
  %v2412 = vsub.f32 %v2316, %v2308
  %v2413 = vsub.f32 %v2317, %v2309
  %v2414 = vsub.f32 %v2318, %v2310
  %v2415 = vsub.f32 %v2319, %v2311
  %v2416 = vmul.f32 %v2408, %v2385
  %v2417 = vmul.f32 %v2409, %v2387
  %v2418 = vmul.f32 %v2410, %v2389
  %v2419 = vmul.f32 %v2411, %v2391
  %v2420 = vmul.f32 %v2412, %v2393
  %v2421 = vmul.f32 %v2413, %v2395
  %v2422 = vmul.f32 %v2414, %v2397
  %v2423 = vmul.f32 %v2415, %v2399
  %v2424 = vmul.f32 %v2360, %v2385
  %v2425 = vmul.f32 %v2361, %v2387
  %v2426 = vmul.f32 %v2362, %v2389
  %v2427 = vmul.f32 %v2363, %v2391
  %v2428 = vmul.f32 %v2364, %v2393
  %v2429 = vmul.f32 %v2365, %v2395
  %v2430 = vmul.f32 %v2366, %v2397
  %v2431 = vmul.f32 %v2367, %v2399
  %v2432 = vmul.f32 %v1922, %v2250
  %v2433 = vmul.f32 %v1925, %v2253
  %v2434 = vmul.f32 %v1928, %v2256
  %v2435 = vmul.f32 %v1931, %v2259
  %v2436 = vmul.f32 %v1934, %v2262
  %v2437 = vmul.f32 %v1937, %v2265
  %v2438 = vmul.f32 %v1940, %v2268
  %v2439 = vmul.f32 %v1943, %v2271
  %v2440 = vmul.f32 %v2106, %v2106
  %v2441 = vmul.f32 %v2109, %v2109
  %v2442 = vmul.f32 %v2112, %v2112
  %v2443 = vmul.f32 %v2115, %v2115
  %v2444 = vmul.f32 %v2118, %v2118
  %v2445 = vmul.f32 %v2121, %v2121
  %v2446 = vmul.f32 %v2124, %v2124
  %v2447 = vmul.f32 %v2127, %v2127
  %v2448 = vsub.f32 %v2432, %v2440
  %v2449 = vsub.f32 %v2433, %v2441
  %v2450 = vsub.f32 %v2434, %v2442
  %v2451 = vsub.f32 %v2435, %v2443
  %v2452 = vsub.f32 %v2436, %v2444
  %v2453 = vsub.f32 %v2437, %v2445
  %v2454 = vsub.f32 %v2438, %v2446
  %v2455 = vsub.f32 %v2439, %v2447
  %v2456 = vmul.f32 %v2448, %v2385
  %v2457 = vmul.f32 %v2449, %v2387
  %v2458 = vmul.f32 %v2450, %v2389
  %v2459 = vmul.f32 %v2451, %v2391
  %v2460 = vmul.f32 %v2452, %v2393
  %v2461 = vmul.f32 %v2453, %v2395
  %v2462 = vmul.f32 %v2454, %v2397
  %v2463 = vmul.f32 %v2455, %v2399
  %v2464 = vmul.f32 %v2106, %v2018
  %v2465 = vmul.f32 %v2109, %v2021
  %v2466 = vmul.f32 %v2112, %v2024
  %v2467 = vmul.f32 %v2115, %v2027
  %v2468 = vmul.f32 %v2118, %v2030
  %v2469 = vmul.f32 %v2121, %v2033
  %v2470 = vmul.f32 %v2124, %v2036
  %v2471 = vmul.f32 %v2127, %v2039
  %v2472 = vmul.f32 %v1922, %v2202
  %v2473 = vmul.f32 %v1925, %v2205
  %v2474 = vmul.f32 %v1928, %v2208
  %v2475 = vmul.f32 %v1931, %v2211
  %v2476 = vmul.f32 %v1934, %v2214
  %v2477 = vmul.f32 %v1937, %v2217
  %v2478 = vmul.f32 %v1940, %v2220
  %v2479 = vmul.f32 %v1943, %v2223
  %v2480 = vsub.f32 %v2464, %v2472
  %v2481 = vsub.f32 %v2465, %v2473
  %v2482 = vsub.f32 %v2466, %v2474
  %v2483 = vsub.f32 %v2467, %v2475
  %v2484 = vsub.f32 %v2468, %v2476
  %v2485 = vsub.f32 %v2469, %v2477
  %v2486 = vsub.f32 %v2470, %v2478
  %v2487 = vsub.f32 %v2471, %v2479
  %v2488 = vmul.f32 %v2480, %v2385
  %v2489 = vmul.f32 %v2481, %v2387
  %v2490 = vmul.f32 %v2482, %v2389
  %v2491 = vmul.f32 %v2483, %v2391
  %v2492 = vmul.f32 %v2484, %v2393
  %v2493 = vmul.f32 %v2485, %v2395
  %v2494 = vmul.f32 %v2486, %v2397
  %v2495 = vmul.f32 %v2487, %v2399
  %v2496 = vmul.f32 %v1922, %v2154
  %v2497 = vmul.f32 %v1925, %v2157
  %v2498 = vmul.f32 %v1928, %v2160
  %v2499 = vmul.f32 %v1931, %v2163
  %v2500 = vmul.f32 %v1934, %v2166
  %v2501 = vmul.f32 %v1937, %v2169
  %v2502 = vmul.f32 %v1940, %v2172
  %v2503 = vmul.f32 %v1943, %v2175
  %v2504 = vmul.f32 %v2018, %v2018
  %v2505 = vmul.f32 %v2021, %v2021
  %v2506 = vmul.f32 %v2024, %v2024
  %v2507 = vmul.f32 %v2027, %v2027
  %v2508 = vmul.f32 %v2030, %v2030
  %v2509 = vmul.f32 %v2033, %v2033
  %v2510 = vmul.f32 %v2036, %v2036
  %v2511 = vmul.f32 %v2039, %v2039
  %v2512 = vsub.f32 %v2496, %v2504
  %v2513 = vsub.f32 %v2497, %v2505
  %v2514 = vsub.f32 %v2498, %v2506
  %v2515 = vsub.f32 %v2499, %v2507
  %v2516 = vsub.f32 %v2500, %v2508
  %v2517 = vsub.f32 %v2501, %v2509
  %v2518 = vsub.f32 %v2502, %v2510
  %v2519 = vsub.f32 %v2503, %v2511
  %v2520 = vmul.f32 %v2512, %v2385
  %v2521 = vmul.f32 %v2513, %v2387
  %v2522 = vmul.f32 %v2514, %v2389
  %v2523 = vmul.f32 %v2515, %v2391
  %v2524 = vmul.f32 %v2516, %v2393
  %v2525 = vmul.f32 %v2517, %v2395
  %v2526 = vmul.f32 %v2518, %v2397
  %v2527 = vmul.f32 %v2519, %v2399
  %2529 = vset.pattern.permute.xlu0 3
  %2530 = vperm.xlu0 %2529, %v55
  %v2531 = vpop.permute.xlu0 %2530
  %2534 = vset.pattern.permute.xlu0 3
  %2535 = vperm.xlu0 %2534, %v56
  %v2536 = vpop.permute.xlu0 %2535
  %2539 = vset.pattern.permute.xlu0 3
  %2540 = vperm.xlu0 %2539, %v57
  %v2541 = vpop.permute.xlu0 %2540
  %2544 = vset.pattern.permute.xlu0 3
  %2545 = vperm.xlu0 %2544, %v58
  %v2546 = vpop.permute.xlu0 %2545
  %2549 = vset.pattern.permute.xlu0 3
  %2550 = vperm.xlu0 %2549, %v59
  %v2551 = vpop.permute.xlu0 %2550
  %2554 = vset.pattern.permute.xlu0 3
  %2555 = vperm.xlu0 %2554, %v60
  %v2556 = vpop.permute.xlu0 %2555
  %2559 = vset.pattern.permute.xlu0 3
  %2560 = vperm.xlu0 %2559, %v61
  %v2561 = vpop.permute.xlu0 %2560
  %2564 = vset.pattern.permute.xlu0 3
  %2565 = vperm.xlu0 %2564, %v62
  %v2566 = vpop.permute.xlu0 %2565
  %v2568 = vmul.f32 %v1791, %v2531
  %v2569 = vmul.f32 %v1794, %v2536
  %v2570 = vmul.f32 %v1799, %v2541
  %v2571 = vmul.f32 %v1802, %v2546
  %v2572 = vmul.f32 %v1807, %v2551
  %v2573 = vmul.f32 %v1810, %v2556
  %v2574 = vmul.f32 %v1815, %v2561
  %v2575 = vmul.f32 %v1818, %v2566
  %2576 = vset.pattern.permute.xlu0 4
  %2577 = vperm.xlu0 %2576, %v55
  %v2578 = vpop.permute.xlu0 %2577
  %2580 = vset.pattern.permute.xlu0 4
  %2581 = vperm.xlu0 %2580, %v56
  %v2582 = vpop.permute.xlu0 %2581
  %2584 = vset.pattern.permute.xlu0 4
  %2585 = vperm.xlu0 %2584, %v57
  %v2586 = vpop.permute.xlu0 %2585
  %2588 = vset.pattern.permute.xlu0 4
  %2589 = vperm.xlu0 %2588, %v58
  %v2590 = vpop.permute.xlu0 %2589
  %2592 = vset.pattern.permute.xlu0 4
  %2593 = vperm.xlu0 %2592, %v59
  %v2594 = vpop.permute.xlu0 %2593
  %2596 = vset.pattern.permute.xlu0 4
  %2597 = vperm.xlu0 %2596, %v60
  %v2598 = vpop.permute.xlu0 %2597
  %2600 = vset.pattern.permute.xlu0 4
  %2601 = vperm.xlu0 %2600, %v61
  %v2602 = vpop.permute.xlu0 %2601
  %2604 = vset.pattern.permute.xlu0 4
  %2605 = vperm.xlu0 %2604, %v62
  %v2606 = vpop.permute.xlu0 %2605
  %v2608 = vmul.f32 %v1791, %v2578
  %v2609 = vmul.f32 %v1794, %v2582
  %v2610 = vmul.f32 %v1799, %v2586
  %v2611 = vmul.f32 %v1802, %v2590
  %v2612 = vmul.f32 %v1807, %v2594
  %v2613 = vmul.f32 %v1810, %v2598
  %v2614 = vmul.f32 %v1815, %v2602
  %v2615 = vmul.f32 %v1818, %v2606
  %2624 = vrot.lane.b32.xlu0 %v2608, 112
  %v2625 = vpop.permute.xlu0 %2624
  %2626 = vrot.lane.b32.xlu0 %v2609, 112
  %v2627 = vpop.permute.xlu0 %2626
  %2628 = vrot.lane.b32.xlu0 %v2610, 112
  %v2629 = vpop.permute.xlu0 %2628
  %2630 = vrot.lane.b32.xlu0 %v2611, 112
  %v2631 = vpop.permute.xlu0 %2630
  %2632 = vrot.lane.b32.xlu0 %v2612, 112
  %v2633 = vpop.permute.xlu0 %2632
  %2634 = vrot.lane.b32.xlu0 %v2613, 112
  %v2635 = vpop.permute.xlu0 %2634
  %2636 = vrot.lane.b32.xlu0 %v2614, 112
  %v2637 = vpop.permute.xlu0 %2636
  %2638 = vrot.lane.b32.xlu0 %v2615, 112
  %v2639 = vpop.permute.xlu0 %2638
  %v2648 = vadd.f32 %v2568, %v2625
  %v2649 = vadd.f32 %v2569, %v2627
  %v2650 = vadd.f32 %v2570, %v2629
  %v2651 = vadd.f32 %v2571, %v2631
  %v2652 = vadd.f32 %v2572, %v2633
  %v2653 = vadd.f32 %v2573, %v2635
  %v2654 = vadd.f32 %v2574, %v2637
  %v2655 = vadd.f32 %v2575, %v2639
  %2656 = vset.pattern.permute.xlu0 5
  %2657 = vperm.xlu0 %2656, %v55
  %v2658 = vpop.permute.xlu0 %2657
  %2660 = vset.pattern.permute.xlu0 5
  %2661 = vperm.xlu0 %2660, %v56
  %v2662 = vpop.permute.xlu0 %2661
  %2664 = vset.pattern.permute.xlu0 5
  %2665 = vperm.xlu0 %2664, %v57
  %v2666 = vpop.permute.xlu0 %2665
  %2668 = vset.pattern.permute.xlu0 5
  %2669 = vperm.xlu0 %2668, %v58
  %v2670 = vpop.permute.xlu0 %2669
  %2672 = vset.pattern.permute.xlu0 5
  %2673 = vperm.xlu0 %2672, %v59
  %v2674 = vpop.permute.xlu0 %2673
  %2676 = vset.pattern.permute.xlu0 5
  %2677 = vperm.xlu0 %2676, %v60
  %v2678 = vpop.permute.xlu0 %2677
  %2680 = vset.pattern.permute.xlu0 5
  %2681 = vperm.xlu0 %2680, %v61
  %v2682 = vpop.permute.xlu0 %2681
  %2684 = vset.pattern.permute.xlu0 5
  %2685 = vperm.xlu0 %2684, %v62
  %v2686 = vpop.permute.xlu0 %2685
  %v2688 = vmul.f32 %v1791, %v2658
  %v2689 = vmul.f32 %v1794, %v2662
  %v2690 = vmul.f32 %v1799, %v2666
  %v2691 = vmul.f32 %v1802, %v2670
  %v2692 = vmul.f32 %v1807, %v2674
  %v2693 = vmul.f32 %v1810, %v2678
  %v2694 = vmul.f32 %v1815, %v2682
  %v2695 = vmul.f32 %v1818, %v2686
  %2704 = vrot.lane.b32.xlu0 %v2688, 96
  %v2705 = vpop.permute.xlu0 %2704
  %2706 = vrot.lane.b32.xlu0 %v2689, 96
  %v2707 = vpop.permute.xlu0 %2706
  %2708 = vrot.lane.b32.xlu0 %v2690, 96
  %v2709 = vpop.permute.xlu0 %2708
  %2710 = vrot.lane.b32.xlu0 %v2691, 96
  %v2711 = vpop.permute.xlu0 %2710
  %2712 = vrot.lane.b32.xlu0 %v2692, 96
  %v2713 = vpop.permute.xlu0 %2712
  %2714 = vrot.lane.b32.xlu0 %v2693, 96
  %v2715 = vpop.permute.xlu0 %2714
  %2716 = vrot.lane.b32.xlu0 %v2694, 96
  %v2717 = vpop.permute.xlu0 %2716
  %2718 = vrot.lane.b32.xlu0 %v2695, 96
  %v2719 = vpop.permute.xlu0 %2718
  %v2728 = vadd.f32 %v2648, %v2705
  %v2729 = vadd.f32 %v2649, %v2707
  %v2730 = vadd.f32 %v2650, %v2709
  %v2731 = vadd.f32 %v2651, %v2711
  %v2732 = vadd.f32 %v2652, %v2713
  %v2733 = vadd.f32 %v2653, %v2715
  %v2734 = vadd.f32 %v2654, %v2717
  %v2735 = vadd.f32 %v2655, %v2719
  %2744 = vrot.lane.b32.xlu0 %v2728, 112
  %v2745 = vpop.permute.xlu0 %2744
  %2746 = vrot.lane.b32.xlu0 %v2729, 112
  %v2747 = vpop.permute.xlu0 %2746
  %2748 = vrot.lane.b32.xlu0 %v2730, 112
  %v2749 = vpop.permute.xlu0 %2748
  %2750 = vrot.lane.b32.xlu0 %v2731, 112
  %v2751 = vpop.permute.xlu0 %2750
  %2752 = vrot.lane.b32.xlu0 %v2732, 112
  %v2753 = vpop.permute.xlu0 %2752
  %2754 = vrot.lane.b32.xlu0 %v2733, 112
  %v2755 = vpop.permute.xlu0 %2754
  %2756 = vrot.lane.b32.xlu0 %v2734, 112
  %v2757 = vpop.permute.xlu0 %2756
  %2758 = vrot.lane.b32.xlu0 %v2735, 112
  %v2759 = vpop.permute.xlu0 %2758
  %v2768 = vmul.f32 %v1871, %v2745
  %v2769 = vmul.f32 %v1872, %v2747
  %v2770 = vmul.f32 %v1873, %v2749
  %v2771 = vmul.f32 %v1874, %v2751
  %v2772 = vmul.f32 %v1875, %v2753
  %v2773 = vmul.f32 %v1876, %v2755
  %v2774 = vmul.f32 %v1877, %v2757
  %v2775 = vmul.f32 %v1878, %v2759
  %2784 = vrot.lane.b32.xlu0 %v2768, 16
  %v2785 = vpop.permute.xlu0 %2784
  %2786 = vrot.lane.b32.xlu0 %v2769, 16
  %v2787 = vpop.permute.xlu0 %2786
  %2788 = vrot.lane.b32.xlu0 %v2770, 16
  %v2789 = vpop.permute.xlu0 %2788
  %2790 = vrot.lane.b32.xlu0 %v2771, 16
  %v2791 = vpop.permute.xlu0 %2790
  %2792 = vrot.lane.b32.xlu0 %v2772, 16
  %v2793 = vpop.permute.xlu0 %2792
  %2794 = vrot.lane.b32.xlu0 %v2773, 16
  %v2795 = vpop.permute.xlu0 %2794
  %2796 = vrot.lane.b32.xlu0 %v2774, 16
  %v2797 = vpop.permute.xlu0 %2796
  %2798 = vrot.lane.b32.xlu0 %v2775, 16
  %v2799 = vpop.permute.xlu0 %2798
  %v2808 = vmul.f32 %v1791, %v2785
  %v2809 = vmul.f32 %v1794, %v2787
  %v2810 = vmul.f32 %v1799, %v2789
  %v2811 = vmul.f32 %v1802, %v2791
  %v2812 = vmul.f32 %v1807, %v2793
  %v2813 = vmul.f32 %v1810, %v2795
  %v2814 = vmul.f32 %v1815, %v2797
  %v2815 = vmul.f32 %v1818, %v2799
  %2824 = vrot.lane.b32.xlu0 %v2808, 112
  %v2825 = vpop.permute.xlu0 %2824
  %2826 = vrot.lane.b32.xlu0 %v2809, 112
  %v2827 = vpop.permute.xlu0 %2826
  %2828 = vrot.lane.b32.xlu0 %v2810, 112
  %v2829 = vpop.permute.xlu0 %2828
  %2830 = vrot.lane.b32.xlu0 %v2811, 112
  %v2831 = vpop.permute.xlu0 %2830
  %2832 = vrot.lane.b32.xlu0 %v2812, 112
  %v2833 = vpop.permute.xlu0 %2832
  %2834 = vrot.lane.b32.xlu0 %v2813, 112
  %v2835 = vpop.permute.xlu0 %2834
  %2836 = vrot.lane.b32.xlu0 %v2814, 112
  %v2837 = vpop.permute.xlu0 %2836
  %2838 = vrot.lane.b32.xlu0 %v2815, 112
  %v2839 = vpop.permute.xlu0 %2838
  %v2848 = vsel %vm1919, %v2825, 0.0
  %2849 = vadd.xlane.f32.xlu0 %v2848
  %v2850 = vpop.xlane.xlu0 %2849
  %v2851 = vsel %vm1919, %v2827, 0.0
  %2852 = vadd.xlane.f32.xlu0 %v2851
  %v2853 = vpop.xlane.xlu0 %2852
  %v2854 = vsel %vm1919, %v2829, 0.0
  %2855 = vadd.xlane.f32.xlu0 %v2854
  %v2856 = vpop.xlane.xlu0 %2855
  %v2857 = vsel %vm1919, %v2831, 0.0
  %2858 = vadd.xlane.f32.xlu0 %v2857
  %v2859 = vpop.xlane.xlu0 %2858
  %v2860 = vsel %vm1919, %v2833, 0.0
  %2861 = vadd.xlane.f32.xlu0 %v2860
  %v2862 = vpop.xlane.xlu0 %2861
  %v2863 = vsel %vm1919, %v2835, 0.0
  %2864 = vadd.xlane.f32.xlu0 %v2863
  %v2865 = vpop.xlane.xlu0 %2864
  %v2866 = vsel %vm1919, %v2837, 0.0
  %2867 = vadd.xlane.f32.xlu0 %v2866
  %v2868 = vpop.xlane.xlu0 %2867
  %v2869 = vsel %vm1919, %v2839, 0.0
  %2870 = vadd.xlane.f32.xlu0 %v2869
  %v2871 = vpop.xlane.xlu0 %2870
  %2872 = vrot.lane.b32.xlu0 %v2768, 32
  %v2873 = vpop.permute.xlu0 %2872
  %2874 = vrot.lane.b32.xlu0 %v2769, 32
  %v2875 = vpop.permute.xlu0 %2874
  %2876 = vrot.lane.b32.xlu0 %v2770, 32
  %v2877 = vpop.permute.xlu0 %2876
  %2878 = vrot.lane.b32.xlu0 %v2771, 32
  %v2879 = vpop.permute.xlu0 %2878
  %2880 = vrot.lane.b32.xlu0 %v2772, 32
  %v2881 = vpop.permute.xlu0 %2880
  %2882 = vrot.lane.b32.xlu0 %v2773, 32
  %v2883 = vpop.permute.xlu0 %2882
  %2884 = vrot.lane.b32.xlu0 %v2774, 32
  %v2885 = vpop.permute.xlu0 %2884
  %2886 = vrot.lane.b32.xlu0 %v2775, 32
  %v2887 = vpop.permute.xlu0 %2886
  %v2896 = vmul.f32 %v1791, %v2873
  %v2897 = vmul.f32 %v1794, %v2875
  %v2898 = vmul.f32 %v1799, %v2877
  %v2899 = vmul.f32 %v1802, %v2879
  %v2900 = vmul.f32 %v1807, %v2881
  %v2901 = vmul.f32 %v1810, %v2883
  %v2902 = vmul.f32 %v1815, %v2885
  %v2903 = vmul.f32 %v1818, %v2887
  %2912 = vrot.lane.b32.xlu0 %v2896, 96
  %v2913 = vpop.permute.xlu0 %2912
  %2914 = vrot.lane.b32.xlu0 %v2897, 96
  %v2915 = vpop.permute.xlu0 %2914
  %2916 = vrot.lane.b32.xlu0 %v2898, 96
  %v2917 = vpop.permute.xlu0 %2916
  %2918 = vrot.lane.b32.xlu0 %v2899, 96
  %v2919 = vpop.permute.xlu0 %2918
  %2920 = vrot.lane.b32.xlu0 %v2900, 96
  %v2921 = vpop.permute.xlu0 %2920
  %2922 = vrot.lane.b32.xlu0 %v2901, 96
  %v2923 = vpop.permute.xlu0 %2922
  %2924 = vrot.lane.b32.xlu0 %v2902, 96
  %v2925 = vpop.permute.xlu0 %2924
  %2926 = vrot.lane.b32.xlu0 %v2903, 96
  %v2927 = vpop.permute.xlu0 %2926
  %v2936 = vsel %vm1919, %v2913, 0.0
  %2937 = vadd.xlane.f32.xlu0 %v2936
  %v2938 = vpop.xlane.xlu0 %2937
  %v2939 = vsel %vm1919, %v2915, 0.0
  %2940 = vadd.xlane.f32.xlu0 %v2939
  %v2941 = vpop.xlane.xlu0 %2940
  %v2942 = vsel %vm1919, %v2917, 0.0
  %2943 = vadd.xlane.f32.xlu0 %v2942
  %v2944 = vpop.xlane.xlu0 %2943
  %v2945 = vsel %vm1919, %v2919, 0.0
  %2946 = vadd.xlane.f32.xlu0 %v2945
  %v2947 = vpop.xlane.xlu0 %2946
  %v2948 = vsel %vm1919, %v2921, 0.0
  %2949 = vadd.xlane.f32.xlu0 %v2948
  %v2950 = vpop.xlane.xlu0 %2949
  %v2951 = vsel %vm1919, %v2923, 0.0
  %2952 = vadd.xlane.f32.xlu0 %v2951
  %v2953 = vpop.xlane.xlu0 %2952
  %v2954 = vsel %vm1919, %v2925, 0.0
  %2955 = vadd.xlane.f32.xlu0 %v2954
  %v2956 = vpop.xlane.xlu0 %2955
  %v2957 = vsel %vm1919, %v2927, 0.0
  %2958 = vadd.xlane.f32.xlu0 %v2957
  %v2959 = vpop.xlane.xlu0 %2958
  %2960 = vrot.lane.b32.xlu0 %v2768, 48
  %v2961 = vpop.permute.xlu0 %2960
  %2962 = vrot.lane.b32.xlu0 %v2769, 48
  %v2963 = vpop.permute.xlu0 %2962
  %2964 = vrot.lane.b32.xlu0 %v2770, 48
  %v2965 = vpop.permute.xlu0 %2964
  %2966 = vrot.lane.b32.xlu0 %v2771, 48
  %v2967 = vpop.permute.xlu0 %2966
  %2968 = vrot.lane.b32.xlu0 %v2772, 48
  %v2969 = vpop.permute.xlu0 %2968
  %2970 = vrot.lane.b32.xlu0 %v2773, 48
  %v2971 = vpop.permute.xlu0 %2970
  %2972 = vrot.lane.b32.xlu0 %v2774, 48
  %v2973 = vpop.permute.xlu0 %2972
  %2974 = vrot.lane.b32.xlu0 %v2775, 48
  %v2975 = vpop.permute.xlu0 %2974
  %v2984 = vmul.f32 %v1791, %v2961
  %v2985 = vmul.f32 %v1794, %v2963
  %v2986 = vmul.f32 %v1799, %v2965
  %v2987 = vmul.f32 %v1802, %v2967
  %v2988 = vmul.f32 %v1807, %v2969
  %v2989 = vmul.f32 %v1810, %v2971
  %v2990 = vmul.f32 %v1815, %v2973
  %v2991 = vmul.f32 %v1818, %v2975
  %3000 = vrot.lane.b32.xlu0 %v2984, 80
  %v3001 = vpop.permute.xlu0 %3000
  %3002 = vrot.lane.b32.xlu0 %v2985, 80
  %v3003 = vpop.permute.xlu0 %3002
  %3004 = vrot.lane.b32.xlu0 %v2986, 80
  %v3005 = vpop.permute.xlu0 %3004
  %3006 = vrot.lane.b32.xlu0 %v2987, 80
  %v3007 = vpop.permute.xlu0 %3006
  %3008 = vrot.lane.b32.xlu0 %v2988, 80
  %v3009 = vpop.permute.xlu0 %3008
  %3010 = vrot.lane.b32.xlu0 %v2989, 80
  %v3011 = vpop.permute.xlu0 %3010
  %3012 = vrot.lane.b32.xlu0 %v2990, 80
  %v3013 = vpop.permute.xlu0 %3012
  %3014 = vrot.lane.b32.xlu0 %v2991, 80
  %v3015 = vpop.permute.xlu0 %3014
  %v3024 = vsel %vm1919, %v3001, 0.0
  %3025 = vadd.xlane.f32.xlu0 %v3024
  %v3026 = vpop.xlane.xlu0 %3025
  %v3027 = vsel %vm1919, %v3003, 0.0
  %3028 = vadd.xlane.f32.xlu0 %v3027
  %v3029 = vpop.xlane.xlu0 %3028
  %v3030 = vsel %vm1919, %v3005, 0.0
  %3031 = vadd.xlane.f32.xlu0 %v3030
  %v3032 = vpop.xlane.xlu0 %3031
  %v3033 = vsel %vm1919, %v3007, 0.0
  %3034 = vadd.xlane.f32.xlu0 %v3033
  %v3035 = vpop.xlane.xlu0 %3034
  %v3036 = vsel %vm1919, %v3009, 0.0
  %3037 = vadd.xlane.f32.xlu0 %v3036
  %v3038 = vpop.xlane.xlu0 %3037
  %v3039 = vsel %vm1919, %v3011, 0.0
  %3040 = vadd.xlane.f32.xlu0 %v3039
  %v3041 = vpop.xlane.xlu0 %3040
  %v3042 = vsel %vm1919, %v3013, 0.0
  %3043 = vadd.xlane.f32.xlu0 %v3042
  %v3044 = vpop.xlane.xlu0 %3043
  %v3045 = vsel %vm1919, %v3015, 0.0
  %3046 = vadd.xlane.f32.xlu0 %v3045
  %v3047 = vpop.xlane.xlu0 %3046
  %v3048 = vmul.f32 %v2400, %v2850
  %v3049 = vmul.f32 %v2401, %v2853
  %v3050 = vmul.f32 %v2402, %v2856
  %v3051 = vmul.f32 %v2403, %v2859
  %v3052 = vmul.f32 %v2404, %v2862
  %v3053 = vmul.f32 %v2405, %v2865
  %v3054 = vmul.f32 %v2406, %v2868
  %v3055 = vmul.f32 %v2407, %v2871
  %v3056 = vmul.f32 %v2416, %v2938
  %v3057 = vmul.f32 %v2417, %v2941
  %v3058 = vmul.f32 %v2418, %v2944
  %v3059 = vmul.f32 %v2419, %v2947
  %v3060 = vmul.f32 %v2420, %v2950
  %v3061 = vmul.f32 %v2421, %v2953
  %v3062 = vmul.f32 %v2422, %v2956
  %v3063 = vmul.f32 %v2423, %v2959
  %v3064 = vadd.f32 %v3048, %v3056
  %v3065 = vadd.f32 %v3049, %v3057
  %v3066 = vadd.f32 %v3050, %v3058
  %v3067 = vadd.f32 %v3051, %v3059
  %v3068 = vadd.f32 %v3052, %v3060
  %v3069 = vadd.f32 %v3053, %v3061
  %v3070 = vadd.f32 %v3054, %v3062
  %v3071 = vadd.f32 %v3055, %v3063
  %v3072 = vmul.f32 %v2424, %v3026
  %v3073 = vmul.f32 %v2425, %v3029
  %v3074 = vmul.f32 %v2426, %v3032
  %v3075 = vmul.f32 %v2427, %v3035
  %v3076 = vmul.f32 %v2428, %v3038
  %v3077 = vmul.f32 %v2429, %v3041
  %v3078 = vmul.f32 %v2430, %v3044
  %v3079 = vmul.f32 %v2431, %v3047
  %v3080 = vadd.f32 %v3064, %v3072
  %v3081 = vadd.f32 %v3065, %v3073
  %v3082 = vadd.f32 %v3066, %v3074
  %v3083 = vadd.f32 %v3067, %v3075
  %v3084 = vadd.f32 %v3068, %v3076
  %v3085 = vadd.f32 %v3069, %v3077
  %v3086 = vadd.f32 %v3070, %v3078
  %v3087 = vadd.f32 %v3071, %v3079
  %v3088 = vmul.f32 %v2416, %v2850
  %v3089 = vmul.f32 %v2417, %v2853
  %v3090 = vmul.f32 %v2418, %v2856
  %v3091 = vmul.f32 %v2419, %v2859
  %v3092 = vmul.f32 %v2420, %v2862
  %v3093 = vmul.f32 %v2421, %v2865
  %v3094 = vmul.f32 %v2422, %v2868
  %v3095 = vmul.f32 %v2423, %v2871
  %v3096 = vmul.f32 %v2456, %v2938
  %v3097 = vmul.f32 %v2457, %v2941
  %v3098 = vmul.f32 %v2458, %v2944
  %v3099 = vmul.f32 %v2459, %v2947
  %v3100 = vmul.f32 %v2460, %v2950
  %v3101 = vmul.f32 %v2461, %v2953
  %v3102 = vmul.f32 %v2462, %v2956
  %v3103 = vmul.f32 %v2463, %v2959
  %v3104 = vadd.f32 %v3088, %v3096
  %v3105 = vadd.f32 %v3089, %v3097
  %v3106 = vadd.f32 %v3090, %v3098
  %v3107 = vadd.f32 %v3091, %v3099
  %v3108 = vadd.f32 %v3092, %v3100
  %v3109 = vadd.f32 %v3093, %v3101
  %v3110 = vadd.f32 %v3094, %v3102
  %v3111 = vadd.f32 %v3095, %v3103
  %v3112 = vmul.f32 %v2488, %v3026
  %v3113 = vmul.f32 %v2489, %v3029
  %v3114 = vmul.f32 %v2490, %v3032
  %v3115 = vmul.f32 %v2491, %v3035
  %v3116 = vmul.f32 %v2492, %v3038
  %v3117 = vmul.f32 %v2493, %v3041
  %v3118 = vmul.f32 %v2494, %v3044
  %v3119 = vmul.f32 %v2495, %v3047
  %v3120 = vadd.f32 %v3104, %v3112
  %v3121 = vadd.f32 %v3105, %v3113
  %v3122 = vadd.f32 %v3106, %v3114
  %v3123 = vadd.f32 %v3107, %v3115
  %v3124 = vadd.f32 %v3108, %v3116
  %v3125 = vadd.f32 %v3109, %v3117
  %v3126 = vadd.f32 %v3110, %v3118
  %v3127 = vadd.f32 %v3111, %v3119
  %v3128 = vmul.f32 %v2424, %v2850
  %v3129 = vmul.f32 %v2425, %v2853
  %v3130 = vmul.f32 %v2426, %v2856
  %v3131 = vmul.f32 %v2427, %v2859
  %v3132 = vmul.f32 %v2428, %v2862
  %v3133 = vmul.f32 %v2429, %v2865
  %v3134 = vmul.f32 %v2430, %v2868
  %v3135 = vmul.f32 %v2431, %v2871
  %v3136 = vmul.f32 %v2488, %v2938
  %v3137 = vmul.f32 %v2489, %v2941
  %v3138 = vmul.f32 %v2490, %v2944
  %v3139 = vmul.f32 %v2491, %v2947
  %v3140 = vmul.f32 %v2492, %v2950
  %v3141 = vmul.f32 %v2493, %v2953
  %v3142 = vmul.f32 %v2494, %v2956
  %v3143 = vmul.f32 %v2495, %v2959
  %v3144 = vadd.f32 %v3128, %v3136
  %v3145 = vadd.f32 %v3129, %v3137
  %v3146 = vadd.f32 %v3130, %v3138
  %v3147 = vadd.f32 %v3131, %v3139
  %v3148 = vadd.f32 %v3132, %v3140
  %v3149 = vadd.f32 %v3133, %v3141
  %v3150 = vadd.f32 %v3134, %v3142
  %v3151 = vadd.f32 %v3135, %v3143
  %v3152 = vmul.f32 %v2520, %v3026
  %v3153 = vmul.f32 %v2521, %v3029
  %v3154 = vmul.f32 %v2522, %v3032
  %v3155 = vmul.f32 %v2523, %v3035
  %v3156 = vmul.f32 %v2524, %v3038
  %v3157 = vmul.f32 %v2525, %v3041
  %v3158 = vmul.f32 %v2526, %v3044
  %v3159 = vmul.f32 %v2527, %v3047
  %v3160 = vadd.f32 %v3144, %v3152
  %v3161 = vadd.f32 %v3145, %v3153
  %v3162 = vadd.f32 %v3146, %v3154
  %v3163 = vadd.f32 %v3147, %v3155
  %v3164 = vadd.f32 %v3148, %v3156
  %v3165 = vadd.f32 %v3149, %v3157
  %v3166 = vadd.f32 %v3150, %v3158
  %v3167 = vadd.f32 %v3151, %v3159
  %v3168 = vadd.f32 %v3080, %v3084
  %v3169 = vadd.f32 %v3081, %v3085
  %v3170 = vadd.f32 %v3082, %v3086
  %v3171 = vadd.f32 %v3083, %v3087
  %v3172 = vmul.f32 %v3168, -8.0
  %v3173 = vmul.f32 %v3169, -8.0
  %v3174 = vmul.f32 %v3170, -8.0
  %v3175 = vmul.f32 %v3171, -8.0
  %v3176 = vadd.f32 %v3120, %v3124
  %v3177 = vadd.f32 %v3121, %v3125
  %v3178 = vadd.f32 %v3122, %v3126
  %v3179 = vadd.f32 %v3123, %v3127
  %v3180 = vmul.f32 %v3176, -8.0
  %v3181 = vmul.f32 %v3177, -8.0
  %v3182 = vmul.f32 %v3178, -8.0
  %v3183 = vmul.f32 %v3179, -8.0
  %v3184 = vadd.f32 %v3160, %v3164
  %v3185 = vadd.f32 %v3161, %v3165
  %v3186 = vadd.f32 %v3162, %v3166
  %v3187 = vadd.f32 %v3163, %v3167
  %v3188 = vmul.f32 %v3184, -8.0
  %v3189 = vmul.f32 %v3185, -8.0
  %v3190 = vmul.f32 %v3186, -8.0
  %v3191 = vmul.f32 %v3187, -8.0
  %vm3192 = vcmask 7168
  %v3193 = vsel %vm3192, %v3172, %v3180
  %v3194 = vsel %vm3192, %v3173, %v3181
  %v3195 = vsel %vm3192, %v3174, %v3182
  %v3196 = vsel %vm3192, %v3175, %v3183
  %vm3197 = vcmask 15360
  %v3198 = vsel %vm3197, %v3193, %v3188
  %v3199 = vsel %vm3197, %v3194, %v3189
  %v3200 = vsel %vm3197, %v3195, %v3190
  %v3201 = vsel %vm3197, %v3196, %v3191
  %vm3202 = vcmask 23552
  %3203 = vst.msk [vmem:[%s3] sm:$0xff] %vm3202, %v3198
  %3204 = vst.msk [vmem:[%s3 + $0x8] sm:$0xff] %vm3202, %v3199
  %3205 = vst.msk [vmem:[%s3 + $0x10] sm:$0xff] %vm3202, %v3200
  %3206 = vst.msk [vmem:[%s3 + $0x18] sm:$0xff] %vm3202, %v3201
  // Predicated region
  $region14: #{run.4} parent=0 // pred_check
    _
  $region15: #{run.4} parent=0 // pred_check_branch
    %3208 = sbr.rel (0) target = $region17
  $region16: #{run.4} parent=0 // pred_region
    _
  $region17: #{run.4} parent=0 // pred_fallthru
    _
  // Predicated region
  $region18: #{run.4} parent=0 // pred_check
    _
  $region19: #{run.4} parent=0 // pred_check_branch
    %3210 = sbr.rel (0) target = $region21
  $region20: #{run.4} parent=0 // pred_region
    _
  $region21: #{run.4} parent=0 // pred_fallthru
    _

</llo_original>
